<compile_context>
chip_gen: v7x
topology: tpu7x:2x2x1
jax: 0.10.0
libtpu: 0.0.40
codegen_flags: <defaults>
</compile_context>

<pallas_src>
import functools
import numpy as np

import jax
import jax.numpy as jnp
from jax import lax
from jax.experimental import pallas as pl
from jax.experimental.pallas import tpu as pltpu


# ----------------------------------------------------------------------------
# Fused DDPM sampling kernel: all T reverse steps in one pallas_call.
# ----------------------------------------------------------------------------

def _ddpm_chunk_kernel(c1_ref, c2_ref, sv_ref,          # SMEM (T,) schedule (reversed)
                       xT_ref, w1_ref, w2_ref,           # VMEM: init state + weights
                       labc_ref, labu_ref,               # VMEM: (TB, Hh) label biases (resident)
                       temb_ref, noise_ref,              # VMEM: streamed per time chunk
                       out_ref,                          # VMEM output (TB, D)
                       x_scr,                            # VMEM carry across time chunks
                       *, w, unroll):
    c = pl.program_id(1)                                  # time-chunk index
    num_chunks = pl.num_programs(1)
    K = temb_ref.shape[0]                                 # reverse steps in this chunk

    # Initialize the carried state from x_T at the start of each batch tile.
    @pl.when(c == 0)
    def _():
        x_scr[...] = xT_ref[...]

    # Hoist loop invariants (weights / label biases) out of the time loop.
    w1 = w1_ref[...]                                      # (D, Hh) bf16
    w2 = w2_ref[...]                                      # (Hh, D) bf16
    lab_c = labc_ref[...]                                 # (TB, Hh) f32
    lab_u = labu_ref[...]                                 # (TB, Hh) f32

    def step(i, x):                                       # x: (TB, D) f32
        g = c * K + i                                     # global reversed step; time_step = T-1-g

        # Shared first matmul for cond/uncond branches (bf16 MXU, f32 acc).
        # NOTE: at B=2 the MXU M-dim is starved (~1.5% utilization); size the
        # batch tile to >=128 rows at real problem sizes.
        h0 = jnp.dot(x.astype(jnp.bfloat16), w1,
                     preferred_element_type=jnp.float32)  # (TB, Hh) f32
        te = temb_ref[i]                                  # (1, Hh) f32
        h_c = jnp.tanh(h0 + te + lab_c)                   # f32 elementwise (v5e-safe)
        h_u = jnp.tanh(h0 + te + lab_u)

        # Classifier-free guidance folded before the second matmul:
        #   (1+w)*(h_c@W2) - w*(h_u@W2) == ((1+w)h_c - w h_u) @ W2
        h_mix = (1.0 + w) * h_c - w * h_u
        eps = jnp.dot(h_mix.astype(jnp.bfloat16), w2,
                      preferred_element_type=jnp.float32)  # (TB, D) f32

        # xt_prev_mean = coeff1[t]*x_t - coeff2[t]*eps ; x_{t-1} = mean + sqrt(var)*noise
        mean = c1_ref[g] * x - c2_ref[g] * eps
        noise = noise_ref[i].astype(jnp.float32)           # (TB, D); zero slab at last step
        return mean + sv_ref[g] * noise

    x = lax.fori_loop(0, K, step, x_scr[...], unroll=unroll)
    x_scr[...] = x                                         # carry to next time chunk

    # Final reverse step done: clip x_0 to [-1, 1] and emit.
    @pl.when(c == num_chunks - 1)
    def _():
        out_ref[...] = jnp.clip(x, -1.0, 1.0)


def ddpm_sample_fused(c1_rev, c2_rev, sv_rev, x_T_flat, w1, w2,
                      lab_c, lab_u, t_emb_rev, noise_rev, *, w,
                      steps_per_chunk=None):
    T = int(c1_rev.shape[0])
    B, D = x_T_flat.shape
    Hh = w1.shape[1]

    # Time chunking: K reverse steps per grid iteration. At the toy size the
    # whole chain fits in VMEM, so one chunk (grid=(1,1)) removes all per-step
    # grid overhead. For large T pick K so the (K, TB, D) noise block is a few
    # hundred KB to stay near the HBM roofline.
    K = T if steps_per_chunk is None else int(steps_per_chunk)
    assert T % K == 0, "steps_per_chunk must divide T"
    num_chunks = T // K

    # Batch tiling: one tile at B=2; with larger batches use a multiple of 8
    # (f32 sublane tile) so the "parallel" axis shards across v7x's two cores.
    TB = B

    kernel = functools.partial(_ddpm_chunk_kernel, w=float(w), unroll=(K <= 16))
    return pl.pallas_call(
        kernel,
        out_shape=jax.ShapeDtypeStruct((B, D), jnp.float32),
        grid=(B // TB, num_chunks),
        in_specs=[
            pl.BlockSpec(memory_space=pltpu.MemorySpace.SMEM),    # coeff1 (T,)
            pl.BlockSpec(memory_space=pltpu.MemorySpace.SMEM),    # coeff2 (T,)
            pl.BlockSpec(memory_space=pltpu.MemorySpace.SMEM),    # sqrt(var) (T,)
            pl.BlockSpec((TB, D), lambda b, c: (b, 0)),           # x_T (loaded once)
            pl.BlockSpec((D, Hh), lambda b, c: (0, 0)),           # W1 (VMEM-resident)
            pl.BlockSpec((Hh, D), lambda b, c: (0, 0)),           # W2 (VMEM-resident)
            pl.BlockSpec((TB, Hh), lambda b, c: (b, 0)),          # cond label bias (resident)
            pl.BlockSpec((TB, Hh), lambda b, c: (b, 0)),          # uncond label bias (resident)
            pl.BlockSpec((K, 1, Hh), lambda b, c: (c, 0, 0)),     # time emb per chunk
            pl.BlockSpec((K, TB, D), lambda b, c: (c, b, 0)),     # bf16 noise per chunk
        ],
        out_specs=pl.BlockSpec((TB, D), lambda b, c: (b, 0)),
        scratch_shapes=[pltpu.VMEM((TB, D), jnp.float32)],        # x_t carry
        compiler_params=pltpu.CompilerParams(
            dimension_semantics=("parallel", "arbitrary"),         # batch ∥, time serial
            vmem_limit_bytes=64 * 1024 * 1024),
    )(c1_rev, c2_rev, sv_rev, x_T_flat, w1, w2, lab_c, lab_u,
      t_emb_rev, noise_rev)


# ----------------------------------------------------------------------------
# Schedule / synthetic model params (schedule built in float64 numpy to match
# torch's double buffers, then used in float32 like `extract(...)`).
# ----------------------------------------------------------------------------

def make_schedule(beta_1, beta_T, T):
    betas = np.linspace(beta_1, beta_T, T, dtype=np.float64)
    alphas = 1.0 - betas
    alphas_bar = np.cumprod(alphas, axis=0)
    alphas_bar_prev = np.concatenate([[1.0], alphas_bar])[:T]
    coeff1 = np.sqrt(1.0 / alphas)
    coeff2 = coeff1 * (1.0 - alphas) / np.sqrt(1.0 - alphas_bar)
    posterior_var = betas * (1.0 - alphas_bar_prev) / (1.0 - alphas_bar)
    var = np.concatenate([posterior_var[1:2], betas[1:]])   # torch.cat([pv[1:2], betas[1:]])
    return {
        "coeff1": jnp.asarray(coeff1, dtype=jnp.float32),
        "coeff2": jnp.asarray(coeff2, dtype=jnp.float32),
        "var": jnp.asarray(var, dtype=jnp.float32),
    }


def make_model_params(key, D, hidden, T, num_classes):
    k1, k2, k3, k4 = jax.random.split(key, 4)
    return {
        # matmul weights stored bf16 (f32 accumulation inside the kernel)
        "w1": (jax.random.normal(k1, (D, hidden), jnp.float32)
               * (1.0 / np.sqrt(D))).astype(jnp.bfloat16),
        "w2": (jax.random.normal(k2, (hidden, D), jnp.float32)
               * (1.0 / np.sqrt(hidden))).astype(jnp.bfloat16),
        "t_emb": jax.random.normal(k3, (T, hidden), jnp.float32) * 0.1,
        # row 0 is the "null" label used for the unconditional branch
        "label_emb": jax.random.normal(k4, (num_classes + 1, hidden),
                                       jnp.float32) * 0.1,
    }


# ----------------------------------------------------------------------------
# Sampler wrapper (DDPM Algorithm 2 with classifier-free guidance).
# ----------------------------------------------------------------------------

def sample(x_T, labels, params, sched, noise, *, T, w):
    B, C, H, W = x_T.shape
    D = C * H * W
    x_T_flat = x_T.reshape(B, D).astype(jnp.float32)

    # Grid-global reverse index g corresponds to time_step = T-1-g.
    rev = jnp.arange(T - 1, -1, -1)
    c1_rev = sched["coeff1"][rev]
    c2_rev = sched["coeff2"][rev]
    sv_rev = jnp.sqrt(sched["var"])[rev]

    t_emb_rev = params["t_emb"][rev][:, None, :]               # (T, 1, Hh)
    lab_c = params["label_emb"][labels]                        # (B, Hh) conditional
    lab_u = params["label_emb"][jnp.zeros_like(labels)]        # (B, Hh) unconditional

    # Zero the noise slab for the final reverse step (time_step == 0) so the
    # kernel's unconditional `mean + sqrt(var)*noise` reproduces torch's
    # `noise = 0` branch exactly; stream bf16 to halve HBM bytes.
    noise_rev = (noise.astype(jnp.float32)
                 .at[T - 1].set(0.0)
                 .astype(jnp.bfloat16))                        # (T, B, D)

    x_0 = ddpm_sample_fused(c1_rev, c2_rev, sv_rev, x_T_flat,
                            params["w1"], params["w2"],
                            lab_c, lab_u, t_emb_rev, noise_rev, w=w)
    return x_0.reshape(B, C, H, W)


# ----------------------------------------------------------------------------
# Main
# ----------------------------------------------------------------------------

if __name__ == "__main__":
    B, C, H, W = 2, 4, 16, 16
    D = C * H * W
    hidden = 128
    T = 8
    num_classes = 10
    w_guidance = 0.5
    beta_1, beta_T = 1e-4, 0.02

    root = jax.random.PRNGKey(0)
    k_params, k_x, k_labels, k_noise = jax.random.split(root, 4)

    params = make_model_params(k_params, D, hidden, T, num_classes)
    sched = make_schedule(beta_1, beta_T, T)

    x_T = jax.random.normal(k_x, (B, C, H, W), dtype=jnp.float32)
    labels = jax.random.randint(k_labels, (B,), 1, num_classes + 1, dtype=jnp.int32)
    # Fresh Gaussian noise per reverse step (the time_step==0 slab is zeroed
    # inside sample() to match the torch reference).
    noise = jax.random.normal(k_noise, (T, B, D), dtype=jnp.float32)

    sample_fn = jax.jit(functools.partial(sample, T=T, w=w_guidance))
    x_0 = sample_fn(x_T, labels, params, sched, noise)
    x_0 = jax.block_until_ready(x_0)

    assert x_0.shape == (B, C, H, W)
    assert not bool(jnp.any(jnp.isnan(x_0)))
    assert float(jnp.max(x_0)) <= 1.0 and float(jnp.min(x_0)) >= -1.0
    print("KERNEL_OK")
</pallas_src>

<mosaic_0001>
module attributes {stable_mosaic.version = 11 : i64} {
  func.func @_ddpm_chunk_kernel(%arg0: i32, %arg1: i32, %arg2: memref<8xf32, #tpu.memory_space<smem>>, %arg3: memref<8xf32, #tpu.memory_space<smem>>, %arg4: memref<8xf32, #tpu.memory_space<smem>>, %arg5: memref<2x1024xf32, #tpu.memory_space<vmem>>, %arg6: memref<1024x128xbf16, #tpu.memory_space<vmem>>, %arg7: memref<128x1024xbf16, #tpu.memory_space<vmem>>, %arg8: memref<2x128xf32, #tpu.memory_space<vmem>>, %arg9: memref<2x128xf32, #tpu.memory_space<vmem>>, %arg10: memref<8x1x128xf32, #tpu.memory_space<vmem>>, %arg11: memref<8x2x1024xbf16, #tpu.memory_space<vmem>>, %arg12: memref<2x1024xf32, #tpu.memory_space<vmem>>, %arg13: memref<2x1024xf32, #tpu.memory_space<vmem>>) attributes {dimension_semantics = [#tpu.dimension_semantics<parallel>, #tpu.dimension_semantics<arbitrary>], iteration_bounds = array<i64: 1, 1>, scalar_prefetch = 0 : i64, scratch_operands = 1 : i64, tpu.core_type = #tpu.core_type<tc>, window_params = [{transform_indices = @transform_0, window_bounds = array<i64: 8>}, {transform_indices = @transform_1, window_bounds = array<i64: 8>}, {transform_indices = @transform_2, window_bounds = array<i64: 8>}, {transform_indices = @transform_3, window_bounds = array<i64: 2, 1024>}, {pipeline_mode = #tpu.pipeline_mode<synchronous>, transform_indices = @transform_4, window_bounds = array<i64: 1024, 128>}, {pipeline_mode = #tpu.pipeline_mode<synchronous>, transform_indices = @transform_5, window_bounds = array<i64: 128, 1024>}, {transform_indices = @transform_6, window_bounds = array<i64: 2, 128>}, {transform_indices = @transform_7, window_bounds = array<i64: 2, 128>}, {transform_indices = @transform_8, window_bounds = array<i64: 8, 1, 128>}, {transform_indices = @transform_9, window_bounds = array<i64: 8, 2, 1024>}, {transform_indices = @transform_10, window_bounds = array<i64: 2, 1024>}]} {
    %c0_i32 = arith.constant 0 : i32
    %0 = arith.cmpi eq, %arg1, %c0_i32 : i32
    %1 = arith.extui %0 : i1 to i32
    %c0_i32_0 = arith.constant 0 : i32
    %2 = arith.cmpi ne, %1, %c0_i32_0 : i32
    scf.if %2 {
      %c0_86 = arith.constant 0 : index
      %c0_87 = arith.constant 0 : index
      %332 = vector.load %arg5[%c0_86, %c0_87] : memref<2x1024xf32, #tpu.memory_space<vmem>>, vector<2x1024xf32>
      %c0_88 = arith.constant 0 : index
      %c0_89 = arith.constant 0 : index
      %333 = vector.load %arg13[%c0_88, %c0_89] : memref<2x1024xf32, #tpu.memory_space<vmem>>, vector<2x1024xf32>
      tpu.vector_store %arg13[%c0_88, %c0_89], %332 {strides = array<i32>} : memref<2x1024xf32, #tpu.memory_space<vmem>>, vector<2x1024xf32>,
    } else {
    }
    %c0 = arith.constant 0 : index
    %c0_1 = arith.constant 0 : index
    %3 = vector.load %arg6[%c0, %c0_1] : memref<1024x128xbf16, #tpu.memory_space<vmem>>, vector<1024x128xbf16>
    %c0_2 = arith.constant 0 : index
    %c0_3 = arith.constant 0 : index
    %4 = vector.load %arg7[%c0_2, %c0_3] : memref<128x1024xbf16, #tpu.memory_space<vmem>>, vector<128x1024xbf16>
    %c0_4 = arith.constant 0 : index
    %c0_5 = arith.constant 0 : index
    %5 = vector.load %arg8[%c0_4, %c0_5] : memref<2x128xf32, #tpu.memory_space<vmem>>, vector<2x128xf32>
    %c0_6 = arith.constant 0 : index
    %c0_7 = arith.constant 0 : index
    %6 = vector.load %arg9[%c0_6, %c0_7] : memref<2x128xf32, #tpu.memory_space<vmem>>, vector<2x128xf32>
    %c0_8 = arith.constant 0 : index
    %c0_9 = arith.constant 0 : index
    %7 = vector.load %arg13[%c0_8, %c0_9] : memref<2x1024xf32, #tpu.memory_space<vmem>>, vector<2x1024xf32>
    %c0_i32_10 = arith.constant 0 : i32
    %c8_i32 = arith.constant 8 : i32
    %8 = arith.muli %arg1, %c8_i32 : i32
    %9 = arith.addi %8, %c0_i32_10 : i32
    %10 = arith.truncf %7 : vector<2x1024xf32> to vector<2x1024xbf16>
    %cst = arith.constant dense<0.000000e+00> : vector<2x128xf32>
    %11 = tpu.matmul %10, %3, %cst {dimension_numbers = #tpu.dot_dimension_numbers<[1], [0], [0], [1], [0, 0, 1, 1], [], []>} : vector<2x1024xbf16>, vector<1024x128xbf16>, vector<2x128xf32> -> vector<2x128xf32>
    %12 = arith.index_cast %c0_i32_10 : i32 to index
    %c0_11 = arith.constant 0 : index
    %c0_12 = arith.constant 0 : index
    %13 = vector.load %arg10[%12, %c0_11, %c0_12] : memref<8x1x128xf32, #tpu.memory_space<vmem>>, vector<1x1x128xf32>
    %14 = vector.shape_cast %13 : vector<1x1x128xf32> to vector<1x128xf32>
    %15 = vector.broadcast %14 : vector<1x128xf32> to vector<2x128xf32>
    %16 = arith.addf %11, %15 : vector<2x128xf32>
    %17 = arith.addf %16, %5 : vector<2x128xf32>
    %18 = math.tanh %17 : vector<2x128xf32>
    %19 = vector.broadcast %14 : vector<1x128xf32> to vector<2x128xf32>
    %20 = arith.addf %11, %19 : vector<2x128xf32>
    %21 = arith.addf %20, %6 : vector<2x128xf32>
    %22 = math.tanh %21 : vector<2x128xf32>
    %cst_13 = arith.constant 1.500000e+00 : f32
    %23 = vector.broadcast %cst_13 : f32 to vector<2x128xf32>
    %24 = arith.mulf %23, %18 : vector<2x128xf32>
    %cst_14 = arith.constant 5.000000e-01 : f32
    %25 = vector.broadcast %cst_14 : f32 to vector<2x128xf32>
    %26 = arith.mulf %25, %22 : vector<2x128xf32>
    %27 = arith.subf %24, %26 : vector<2x128xf32>
    %28 = arith.truncf %27 : vector<2x128xf32> to vector<2x128xbf16>
    %cst_15 = arith.constant dense<0.000000e+00> : vector<2x1024xf32>
    %29 = tpu.matmul %28, %4, %cst_15 {dimension_numbers = #tpu.dot_dimension_numbers<[1], [0], [0], [1], [0, 0, 1, 1], [], []>} : vector<2x128xbf16>, vector<128x1024xbf16>, vector<2x1024xf32> -> vector<2x1024xf32>
    %30 = arith.index_cast %9 : i32 to index
    %31 = memref.load %arg2[%30] : memref<8xf32, #tpu.memory_space<smem>>
    %32 = vector.broadcast %31 : f32 to vector<2x1024xf32>
    %33 = arith.mulf %32, %7 : vector<2x1024xf32>
    %34 = arith.index_cast %9 : i32 to index
    %35 = memref.load %arg3[%34] : memref<8xf32, #tpu.memory_space<smem>>
    %36 = vector.broadcast %35 : f32 to vector<2x1024xf32>
    %37 = arith.mulf %36, %29 : vector<2x1024xf32>
    %38 = arith.subf %33, %37 : vector<2x1024xf32>
    %39 = arith.index_cast %c0_i32_10 : i32 to index
    %c0_16 = arith.constant 0 : index
    %c0_17 = arith.constant 0 : index
    %40 = vector.load %arg11[%39, %c0_16, %c0_17] : memref<8x2x1024xbf16, #tpu.memory_space<vmem>>, vector<1x2x1024xbf16>
    %41 = vector.shape_cast %40 : vector<1x2x1024xbf16> to vector<2x1024xbf16>
    %42 = arith.extf %41 : vector<2x1024xbf16> to vector<2x1024xf32>
    %43 = arith.index_cast %9 : i32 to index
    %44 = memref.load %arg4[%43] : memref<8xf32, #tpu.memory_space<smem>>
    %45 = vector.broadcast %44 : f32 to vector<2x1024xf32>
    %46 = arith.mulf %45, %42 : vector<2x1024xf32>
    %47 = arith.addf %38, %46 : vector<2x1024xf32>
    %c1_i32 = arith.constant 1 : i32
    %c8_i32_18 = arith.constant 8 : i32
    %48 = arith.muli %arg1, %c8_i32_18 : i32
    %49 = arith.addi %48, %c1_i32 : i32
    %50 = arith.truncf %47 : vector<2x1024xf32> to vector<2x1024xbf16>
    %cst_19 = arith.constant dense<0.000000e+00> : vector<2x128xf32>
    %51 = tpu.matmul %50, %3, %cst_19 {dimension_numbers = #tpu.dot_dimension_numbers<[1], [0], [0], [1], [0, 0, 1, 1], [], []>} : vector<2x1024xbf16>, vector<1024x128xbf16>, vector<2x128xf32> -> vector<2x128xf32>
    %52 = arith.index_cast %c1_i32 : i32 to index
    %c0_20 = arith.constant 0 : index
    %c0_21 = arith.constant 0 : index
    %53 = vector.load %arg10[%52, %c0_20, %c0_21] : memref<8x1x128xf32, #tpu.memory_space<vmem>>, vector<1x1x128xf32>
    %54 = vector.shape_cast %53 : vector<1x1x128xf32> to vector<1x128xf32>
    %55 = vector.broadcast %54 : vector<1x128xf32> to vector<2x128xf32>
    %56 = arith.addf %51, %55 : vector<2x128xf32>
    %57 = arith.addf %56, %5 : vector<2x128xf32>
    %58 = math.tanh %57 : vector<2x128xf32>
    %59 = vector.broadcast %54 : vector<1x128xf32> to vector<2x128xf32>
    %60 = arith.addf %51, %59 : vector<2x128xf32>
    %61 = arith.addf %60, %6 : vector<2x128xf32>
    %62 = math.tanh %61 : vector<2x128xf32>
    %cst_22 = arith.constant 1.500000e+00 : f32
    %63 = vector.broadcast %cst_22 : f32 to vector<2x128xf32>
    %64 = arith.mulf %63, %58 : vector<2x128xf32>
    %cst_23 = arith.constant 5.000000e-01 : f32
    %65 = vector.broadcast %cst_23 : f32 to vector<2x128xf32>
    %66 = arith.mulf %65, %62 : vector<2x128xf32>
    %67 = arith.subf %64, %66 : vector<2x128xf32>
    %68 = arith.truncf %67 : vector<2x128xf32> to vector<2x128xbf16>
    %cst_24 = arith.constant dense<0.000000e+00> : vector<2x1024xf32>
    %69 = tpu.matmul %68, %4, %cst_24 {dimension_numbers = #tpu.dot_dimension_numbers<[1], [0], [0], [1], [0, 0, 1, 1], [], []>} : vector<2x128xbf16>, vector<128x1024xbf16>, vector<2x1024xf32> -> vector<2x1024xf32>
    %70 = arith.index_cast %49 : i32 to index
    %71 = memref.load %arg2[%70] : memref<8xf32, #tpu.memory_space<smem>>
    %72 = vector.broadcast %71 : f32 to vector<2x1024xf32>
    %73 = arith.mulf %72, %47 : vector<2x1024xf32>
    %74 = arith.index_cast %49 : i32 to index
    %75 = memref.load %arg3[%74] : memref<8xf32, #tpu.memory_space<smem>>
    %76 = vector.broadcast %75 : f32 to vector<2x1024xf32>
    %77 = arith.mulf %76, %69 : vector<2x1024xf32>
    %78 = arith.subf %73, %77 : vector<2x1024xf32>
    %79 = arith.index_cast %c1_i32 : i32 to index
    %c0_25 = arith.constant 0 : index
    %c0_26 = arith.constant 0 : index
    %80 = vector.load %arg11[%79, %c0_25, %c0_26] : memref<8x2x1024xbf16, #tpu.memory_space<vmem>>, vector<1x2x1024xbf16>
    %81 = vector.shape_cast %80 : vector<1x2x1024xbf16> to vector<2x1024xbf16>
    %82 = arith.extf %81 : vector<2x1024xbf16> to vector<2x1024xf32>
    %83 = arith.index_cast %49 : i32 to index
    %84 = memref.load %arg4[%83] : memref<8xf32, #tpu.memory_space<smem>>
    %85 = vector.broadcast %84 : f32 to vector<2x1024xf32>
    %86 = arith.mulf %85, %82 : vector<2x1024xf32>
    %87 = arith.addf %78, %86 : vector<2x1024xf32>
    %c2_i32 = arith.constant 2 : i32
    %c8_i32_27 = arith.constant 8 : i32
    %88 = arith.muli %arg1, %c8_i32_27 : i32
    %89 = arith.addi %88, %c2_i32 : i32
    %90 = arith.truncf %87 : vector<2x1024xf32> to vector<2x1024xbf16>
    %cst_28 = arith.constant dense<0.000000e+00> : vector<2x128xf32>
    %91 = tpu.matmul %90, %3, %cst_28 {dimension_numbers = #tpu.dot_dimension_numbers<[1], [0], [0], [1], [0, 0, 1, 1], [], []>} : vector<2x1024xbf16>, vector<1024x128xbf16>, vector<2x128xf32> -> vector<2x128xf32>
    %92 = arith.index_cast %c2_i32 : i32 to index
    %c0_29 = arith.constant 0 : index
    %c0_30 = arith.constant 0 : index
    %93 = vector.load %arg10[%92, %c0_29, %c0_30] : memref<8x1x128xf32, #tpu.memory_space<vmem>>, vector<1x1x128xf32>
    %94 = vector.shape_cast %93 : vector<1x1x128xf32> to vector<1x128xf32>
    %95 = vector.broadcast %94 : vector<1x128xf32> to vector<2x128xf32>
    %96 = arith.addf %91, %95 : vector<2x128xf32>
    %97 = arith.addf %96, %5 : vector<2x128xf32>
    %98 = math.tanh %97 : vector<2x128xf32>
    %99 = vector.broadcast %94 : vector<1x128xf32> to vector<2x128xf32>
    %100 = arith.addf %91, %99 : vector<2x128xf32>
    %101 = arith.addf %100, %6 : vector<2x128xf32>
    %102 = math.tanh %101 : vector<2x128xf32>
    %cst_31 = arith.constant 1.500000e+00 : f32
    %103 = vector.broadcast %cst_31 : f32 to vector<2x128xf32>
    %104 = arith.mulf %103, %98 : vector<2x128xf32>
    %cst_32 = arith.constant 5.000000e-01 : f32
    %105 = vector.broadcast %cst_32 : f32 to vector<2x128xf32>
    %106 = arith.mulf %105, %102 : vector<2x128xf32>
    %107 = arith.subf %104, %106 : vector<2x128xf32>
    %108 = arith.truncf %107 : vector<2x128xf32> to vector<2x128xbf16>
    %cst_33 = arith.constant dense<0.000000e+00> : vector<2x1024xf32>
    %109 = tpu.matmul %108, %4, %cst_33 {dimension_numbers = #tpu.dot_dimension_numbers<[1], [0], [0], [1], [0, 0, 1, 1], [], []>} : vector<2x128xbf16>, vector<128x1024xbf16>, vector<2x1024xf32> -> vector<2x1024xf32>
    %110 = arith.index_cast %89 : i32 to index
    %111 = memref.load %arg2[%110] : memref<8xf32, #tpu.memory_space<smem>>
    %112 = vector.broadcast %111 : f32 to vector<2x1024xf32>
    %113 = arith.mulf %112, %87 : vector<2x1024xf32>
    %114 = arith.index_cast %89 : i32 to index
    %115 = memref.load %arg3[%114] : memref<8xf32, #tpu.memory_space<smem>>
    %116 = vector.broadcast %115 : f32 to vector<2x1024xf32>
    %117 = arith.mulf %116, %109 : vector<2x1024xf32>
    %118 = arith.subf %113, %117 : vector<2x1024xf32>
    %119 = arith.index_cast %c2_i32 : i32 to index
    %c0_34 = arith.constant 0 : index
    %c0_35 = arith.constant 0 : index
    %120 = vector.load %arg11[%119, %c0_34, %c0_35] : memref<8x2x1024xbf16, #tpu.memory_space<vmem>>, vector<1x2x1024xbf16>
    %121 = vector.shape_cast %120 : vector<1x2x1024xbf16> to vector<2x1024xbf16>
    %122 = arith.extf %121 : vector<2x1024xbf16> to vector<2x1024xf32>
    %123 = arith.index_cast %89 : i32 to index
    %124 = memref.load %arg4[%123] : memref<8xf32, #tpu.memory_space<smem>>
    %125 = vector.broadcast %124 : f32 to vector<2x1024xf32>
    %126 = arith.mulf %125, %122 : vector<2x1024xf32>
    %127 = arith.addf %118, %126 : vector<2x1024xf32>
    %c3_i32 = arith.constant 3 : i32
    %c8_i32_36 = arith.constant 8 : i32
    %128 = arith.muli %arg1, %c8_i32_36 : i32
    %129 = arith.addi %128, %c3_i32 : i32
    %130 = arith.truncf %127 : vector<2x1024xf32> to vector<2x1024xbf16>
    %cst_37 = arith.constant dense<0.000000e+00> : vector<2x128xf32>
    %131 = tpu.matmul %130, %3, %cst_37 {dimension_numbers = #tpu.dot_dimension_numbers<[1], [0], [0], [1], [0, 0, 1, 1], [], []>} : vector<2x1024xbf16>, vector<1024x128xbf16>, vector<2x128xf32> -> vector<2x128xf32>
    %132 = arith.index_cast %c3_i32 : i32 to index
    %c0_38 = arith.constant 0 : index
    %c0_39 = arith.constant 0 : index
    %133 = vector.load %arg10[%132, %c0_38, %c0_39] : memref<8x1x128xf32, #tpu.memory_space<vmem>>, vector<1x1x128xf32>
    %134 = vector.shape_cast %133 : vector<1x1x128xf32> to vector<1x128xf32>
    %135 = vector.broadcast %134 : vector<1x128xf32> to vector<2x128xf32>
    %136 = arith.addf %131, %135 : vector<2x128xf32>
    %137 = arith.addf %136, %5 : vector<2x128xf32>
    %138 = math.tanh %137 : vector<2x128xf32>
    %139 = vector.broadcast %134 : vector<1x128xf32> to vector<2x128xf32>
    %140 = arith.addf %131, %139 : vector<2x128xf32>
    %141 = arith.addf %140, %6 : vector<2x128xf32>
    %142 = math.tanh %141 : vector<2x128xf32>
    %cst_40 = arith.constant 1.500000e+00 : f32
    %143 = vector.broadcast %cst_40 : f32 to vector<2x128xf32>
    %144 = arith.mulf %143, %138 : vector<2x128xf32>
    %cst_41 = arith.constant 5.000000e-01 : f32
    %145 = vector.broadcast %cst_41 : f32 to vector<2x128xf32>
    %146 = arith.mulf %145, %142 : vector<2x128xf32>
    %147 = arith.subf %144, %146 : vector<2x128xf32>
    %148 = arith.truncf %147 : vector<2x128xf32> to vector<2x128xbf16>
    %cst_42 = arith.constant dense<0.000000e+00> : vector<2x1024xf32>
    %149 = tpu.matmul %148, %4, %cst_42 {dimension_numbers = #tpu.dot_dimension_numbers<[1], [0], [0], [1], [0, 0, 1, 1], [], []>} : vector<2x128xbf16>, vector<128x1024xbf16>, vector<2x1024xf32> -> vector<2x1024xf32>
    %150 = arith.index_cast %129 : i32 to index
    %151 = memref.load %arg2[%150] : memref<8xf32, #tpu.memory_space<smem>>
    %152 = vector.broadcast %151 : f32 to vector<2x1024xf32>
    %153 = arith.mulf %152, %127 : vector<2x1024xf32>
    %154 = arith.index_cast %129 : i32 to index
    %155 = memref.load %arg3[%154] : memref<8xf32, #tpu.memory_space<smem>>
    %156 = vector.broadcast %155 : f32 to vector<2x1024xf32>
    %157 = arith.mulf %156, %149 : vector<2x1024xf32>
    %158 = arith.subf %153, %157 : vector<2x1024xf32>
    %159 = arith.index_cast %c3_i32 : i32 to index
    %c0_43 = arith.constant 0 : index
    %c0_44 = arith.constant 0 : index
    %160 = vector.load %arg11[%159, %c0_43, %c0_44] : memref<8x2x1024xbf16, #tpu.memory_space<vmem>>, vector<1x2x1024xbf16>
    %161 = vector.shape_cast %160 : vector<1x2x1024xbf16> to vector<2x1024xbf16>
    %162 = arith.extf %161 : vector<2x1024xbf16> to vector<2x1024xf32>
    %163 = arith.index_cast %129 : i32 to index
    %164 = memref.load %arg4[%163] : memref<8xf32, #tpu.memory_space<smem>>
    %165 = vector.broadcast %164 : f32 to vector<2x1024xf32>
    %166 = arith.mulf %165, %162 : vector<2x1024xf32>
    %167 = arith.addf %158, %166 : vector<2x1024xf32>
    %c4_i32 = arith.constant 4 : i32
    %c8_i32_45 = arith.constant 8 : i32
    %168 = arith.muli %arg1, %c8_i32_45 : i32
    %169 = arith.addi %168, %c4_i32 : i32
    %170 = arith.truncf %167 : vector<2x1024xf32> to vector<2x1024xbf16>
    %cst_46 = arith.constant dense<0.000000e+00> : vector<2x128xf32>
    %171 = tpu.matmul %170, %3, %cst_46 {dimension_numbers = #tpu.dot_dimension_numbers<[1], [0], [0], [1], [0, 0, 1, 1], [], []>} : vector<2x1024xbf16>, vector<1024x128xbf16>, vector<2x128xf32> -> vector<2x128xf32>
    %172 = arith.index_cast %c4_i32 : i32 to index
    %c0_47 = arith.constant 0 : index
    %c0_48 = arith.constant 0 : index
    %173 = vector.load %arg10[%172, %c0_47, %c0_48] : memref<8x1x128xf32, #tpu.memory_space<vmem>>, vector<1x1x128xf32>
    %174 = vector.shape_cast %173 : vector<1x1x128xf32> to vector<1x128xf32>
    %175 = vector.broadcast %174 : vector<1x128xf32> to vector<2x128xf32>
    %176 = arith.addf %171, %175 : vector<2x128xf32>
    %177 = arith.addf %176, %5 : vector<2x128xf32>
    %178 = math.tanh %177 : vector<2x128xf32>
    %179 = vector.broadcast %174 : vector<1x128xf32> to vector<2x128xf32>
    %180 = arith.addf %171, %179 : vector<2x128xf32>
    %181 = arith.addf %180, %6 : vector<2x128xf32>
    %182 = math.tanh %181 : vector<2x128xf32>
    %cst_49 = arith.constant 1.500000e+00 : f32
    %183 = vector.broadcast %cst_49 : f32 to vector<2x128xf32>
    %184 = arith.mulf %183, %178 : vector<2x128xf32>
    %cst_50 = arith.constant 5.000000e-01 : f32
    %185 = vector.broadcast %cst_50 : f32 to vector<2x128xf32>
    %186 = arith.mulf %185, %182 : vector<2x128xf32>
    %187 = arith.subf %184, %186 : vector<2x128xf32>
    %188 = arith.truncf %187 : vector<2x128xf32> to vector<2x128xbf16>
    %cst_51 = arith.constant dense<0.000000e+00> : vector<2x1024xf32>
    %189 = tpu.matmul %188, %4, %cst_51 {dimension_numbers = #tpu.dot_dimension_numbers<[1], [0], [0], [1], [0, 0, 1, 1], [], []>} : vector<2x128xbf16>, vector<128x1024xbf16>, vector<2x1024xf32> -> vector<2x1024xf32>
    %190 = arith.index_cast %169 : i32 to index
    %191 = memref.load %arg2[%190] : memref<8xf32, #tpu.memory_space<smem>>
    %192 = vector.broadcast %191 : f32 to vector<2x1024xf32>
    %193 = arith.mulf %192, %167 : vector<2x1024xf32>
    %194 = arith.index_cast %169 : i32 to index
    %195 = memref.load %arg3[%194] : memref<8xf32, #tpu.memory_space<smem>>
    %196 = vector.broadcast %195 : f32 to vector<2x1024xf32>
    %197 = arith.mulf %196, %189 : vector<2x1024xf32>
    %198 = arith.subf %193, %197 : vector<2x1024xf32>
    %199 = arith.index_cast %c4_i32 : i32 to index
    %c0_52 = arith.constant 0 : index
    %c0_53 = arith.constant 0 : index
    %200 = vector.load %arg11[%199, %c0_52, %c0_53] : memref<8x2x1024xbf16, #tpu.memory_space<vmem>>, vector<1x2x1024xbf16>
    %201 = vector.shape_cast %200 : vector<1x2x1024xbf16> to vector<2x1024xbf16>
    %202 = arith.extf %201 : vector<2x1024xbf16> to vector<2x1024xf32>
    %203 = arith.index_cast %169 : i32 to index
    %204 = memref.load %arg4[%203] : memref<8xf32, #tpu.memory_space<smem>>
    %205 = vector.broadcast %204 : f32 to vector<2x1024xf32>
    %206 = arith.mulf %205, %202 : vector<2x1024xf32>
    %207 = arith.addf %198, %206 : vector<2x1024xf32>
    %c5_i32 = arith.constant 5 : i32
    %c8_i32_54 = arith.constant 8 : i32
    %208 = arith.muli %arg1, %c8_i32_54 : i32
    %209 = arith.addi %208, %c5_i32 : i32
    %210 = arith.truncf %207 : vector<2x1024xf32> to vector<2x1024xbf16>
    %cst_55 = arith.constant dense<0.000000e+00> : vector<2x128xf32>
    %211 = tpu.matmul %210, %3, %cst_55 {dimension_numbers = #tpu.dot_dimension_numbers<[1], [0], [0], [1], [0, 0, 1, 1], [], []>} : vector<2x1024xbf16>, vector<1024x128xbf16>, vector<2x128xf32> -> vector<2x128xf32>
    %212 = arith.index_cast %c5_i32 : i32 to index
    %c0_56 = arith.constant 0 : index
    %c0_57 = arith.constant 0 : index
    %213 = vector.load %arg10[%212, %c0_56, %c0_57] : memref<8x1x128xf32, #tpu.memory_space<vmem>>, vector<1x1x128xf32>
    %214 = vector.shape_cast %213 : vector<1x1x128xf32> to vector<1x128xf32>
    %215 = vector.broadcast %214 : vector<1x128xf32> to vector<2x128xf32>
    %216 = arith.addf %211, %215 : vector<2x128xf32>
    %217 = arith.addf %216, %5 : vector<2x128xf32>
    %218 = math.tanh %217 : vector<2x128xf32>
    %219 = vector.broadcast %214 : vector<1x128xf32> to vector<2x128xf32>
    %220 = arith.addf %211, %219 : vector<2x128xf32>
    %221 = arith.addf %220, %6 : vector<2x128xf32>
    %222 = math.tanh %221 : vector<2x128xf32>
    %cst_58 = arith.constant 1.500000e+00 : f32
    %223 = vector.broadcast %cst_58 : f32 to vector<2x128xf32>
    %224 = arith.mulf %223, %218 : vector<2x128xf32>
    %cst_59 = arith.constant 5.000000e-01 : f32
    %225 = vector.broadcast %cst_59 : f32 to vector<2x128xf32>
    %226 = arith.mulf %225, %222 : vector<2x128xf32>
    %227 = arith.subf %224, %226 : vector<2x128xf32>
    %228 = arith.truncf %227 : vector<2x128xf32> to vector<2x128xbf16>
    %cst_60 = arith.constant dense<0.000000e+00> : vector<2x1024xf32>
    %229 = tpu.matmul %228, %4, %cst_60 {dimension_numbers = #tpu.dot_dimension_numbers<[1], [0], [0], [1], [0, 0, 1, 1], [], []>} : vector<2x128xbf16>, vector<128x1024xbf16>, vector<2x1024xf32> -> vector<2x1024xf32>
    %230 = arith.index_cast %209 : i32 to index
    %231 = memref.load %arg2[%230] : memref<8xf32, #tpu.memory_space<smem>>
    %232 = vector.broadcast %231 : f32 to vector<2x1024xf32>
    %233 = arith.mulf %232, %207 : vector<2x1024xf32>
    %234 = arith.index_cast %209 : i32 to index
    %235 = memref.load %arg3[%234] : memref<8xf32, #tpu.memory_space<smem>>
    %236 = vector.broadcast %235 : f32 to vector<2x1024xf32>
    %237 = arith.mulf %236, %229 : vector<2x1024xf32>
    %238 = arith.subf %233, %237 : vector<2x1024xf32>
    %239 = arith.index_cast %c5_i32 : i32 to index
    %c0_61 = arith.constant 0 : index
    %c0_62 = arith.constant 0 : index
    %240 = vector.load %arg11[%239, %c0_61, %c0_62] : memref<8x2x1024xbf16, #tpu.memory_space<vmem>>, vector<1x2x1024xbf16>
    %241 = vector.shape_cast %240 : vector<1x2x1024xbf16> to vector<2x1024xbf16>
    %242 = arith.extf %241 : vector<2x1024xbf16> to vector<2x1024xf32>
    %243 = arith.index_cast %209 : i32 to index
    %244 = memref.load %arg4[%243] : memref<8xf32, #tpu.memory_space<smem>>
    %245 = vector.broadcast %244 : f32 to vector<2x1024xf32>
    %246 = arith.mulf %245, %242 : vector<2x1024xf32>
    %247 = arith.addf %238, %246 : vector<2x1024xf32>
    %c6_i32 = arith.constant 6 : i32
    %c8_i32_63 = arith.constant 8 : i32
    %248 = arith.muli %arg1, %c8_i32_63 : i32
    %249 = arith.addi %248, %c6_i32 : i32
    %250 = arith.truncf %247 : vector<2x1024xf32> to vector<2x1024xbf16>
    %cst_64 = arith.constant dense<0.000000e+00> : vector<2x128xf32>
    %251 = tpu.matmul %250, %3, %cst_64 {dimension_numbers = #tpu.dot_dimension_numbers<[1], [0], [0], [1], [0, 0, 1, 1], [], []>} : vector<2x1024xbf16>, vector<1024x128xbf16>, vector<2x128xf32> -> vector<2x128xf32>
    %252 = arith.index_cast %c6_i32 : i32 to index
    %c0_65 = arith.constant 0 : index
    %c0_66 = arith.constant 0 : index
    %253 = vector.load %arg10[%252, %c0_65, %c0_66] : memref<8x1x128xf32, #tpu.memory_space<vmem>>, vector<1x1x128xf32>
    %254 = vector.shape_cast %253 : vector<1x1x128xf32> to vector<1x128xf32>
    %255 = vector.broadcast %254 : vector<1x128xf32> to vector<2x128xf32>
    %256 = arith.addf %251, %255 : vector<2x128xf32>
    %257 = arith.addf %256, %5 : vector<2x128xf32>
    %258 = math.tanh %257 : vector<2x128xf32>
    %259 = vector.broadcast %254 : vector<1x128xf32> to vector<2x128xf32>
    %260 = arith.addf %251, %259 : vector<2x128xf32>
    %261 = arith.addf %260, %6 : vector<2x128xf32>
    %262 = math.tanh %261 : vector<2x128xf32>
    %cst_67 = arith.constant 1.500000e+00 : f32
    %263 = vector.broadcast %cst_67 : f32 to vector<2x128xf32>
    %264 = arith.mulf %263, %258 : vector<2x128xf32>
    %cst_68 = arith.constant 5.000000e-01 : f32
    %265 = vector.broadcast %cst_68 : f32 to vector<2x128xf32>
    %266 = arith.mulf %265, %262 : vector<2x128xf32>
    %267 = arith.subf %264, %266 : vector<2x128xf32>
    %268 = arith.truncf %267 : vector<2x128xf32> to vector<2x128xbf16>
    %cst_69 = arith.constant dense<0.000000e+00> : vector<2x1024xf32>
    %269 = tpu.matmul %268, %4, %cst_69 {dimension_numbers = #tpu.dot_dimension_numbers<[1], [0], [0], [1], [0, 0, 1, 1], [], []>} : vector<2x128xbf16>, vector<128x1024xbf16>, vector<2x1024xf32> -> vector<2x1024xf32>
    %270 = arith.index_cast %249 : i32 to index
    %271 = memref.load %arg2[%270] : memref<8xf32, #tpu.memory_space<smem>>
    %272 = vector.broadcast %271 : f32 to vector<2x1024xf32>
    %273 = arith.mulf %272, %247 : vector<2x1024xf32>
    %274 = arith.index_cast %249 : i32 to index
    %275 = memref.load %arg3[%274] : memref<8xf32, #tpu.memory_space<smem>>
    %276 = vector.broadcast %275 : f32 to vector<2x1024xf32>
    %277 = arith.mulf %276, %269 : vector<2x1024xf32>
    %278 = arith.subf %273, %277 : vector<2x1024xf32>
    %279 = arith.index_cast %c6_i32 : i32 to index
    %c0_70 = arith.constant 0 : index
    %c0_71 = arith.constant 0 : index
    %280 = vector.load %arg11[%279, %c0_70, %c0_71] : memref<8x2x1024xbf16, #tpu.memory_space<vmem>>, vector<1x2x1024xbf16>
    %281 = vector.shape_cast %280 : vector<1x2x1024xbf16> to vector<2x1024xbf16>
    %282 = arith.extf %281 : vector<2x1024xbf16> to vector<2x1024xf32>
    %283 = arith.index_cast %249 : i32 to index
    %284 = memref.load %arg4[%283] : memref<8xf32, #tpu.memory_space<smem>>
    %285 = vector.broadcast %284 : f32 to vector<2x1024xf32>
    %286 = arith.mulf %285, %282 : vector<2x1024xf32>
    %287 = arith.addf %278, %286 : vector<2x1024xf32>
    %c7_i32 = arith.constant 7 : i32
    %c8_i32_72 = arith.constant 8 : i32
    %288 = arith.muli %arg1, %c8_i32_72 : i32
    %289 = arith.addi %288, %c7_i32 : i32
    %290 = arith.truncf %287 : vector<2x1024xf32> to vector<2x1024xbf16>
    %cst_73 = arith.constant dense<0.000000e+00> : vector<2x128xf32>
    %291 = tpu.matmul %290, %3, %cst_73 {dimension_numbers = #tpu.dot_dimension_numbers<[1], [0], [0], [1], [0, 0, 1, 1], [], []>} : vector<2x1024xbf16>, vector<1024x128xbf16>, vector<2x128xf32> -> vector<2x128xf32>
    %292 = arith.index_cast %c7_i32 : i32 to index
    %c0_74 = arith.constant 0 : index
    %c0_75 = arith.constant 0 : index
    %293 = vector.load %arg10[%292, %c0_74, %c0_75] : memref<8x1x128xf32, #tpu.memory_space<vmem>>, vector<1x1x128xf32>
    %294 = vector.shape_cast %293 : vector<1x1x128xf32> to vector<1x128xf32>
    %295 = vector.broadcast %294 : vector<1x128xf32> to vector<2x128xf32>
    %296 = arith.addf %291, %295 : vector<2x128xf32>
    %297 = arith.addf %296, %5 : vector<2x128xf32>
    %298 = math.tanh %297 : vector<2x128xf32>
    %299 = vector.broadcast %294 : vector<1x128xf32> to vector<2x128xf32>
    %300 = arith.addf %291, %299 : vector<2x128xf32>
    %301 = arith.addf %300, %6 : vector<2x128xf32>
    %302 = math.tanh %301 : vector<2x128xf32>
    %cst_76 = arith.constant 1.500000e+00 : f32
    %303 = vector.broadcast %cst_76 : f32 to vector<2x128xf32>
    %304 = arith.mulf %303, %298 : vector<2x128xf32>
    %cst_77 = arith.constant 5.000000e-01 : f32
    %305 = vector.broadcast %cst_77 : f32 to vector<2x128xf32>
    %306 = arith.mulf %305, %302 : vector<2x128xf32>
    %307 = arith.subf %304, %306 : vector<2x128xf32>
    %308 = arith.truncf %307 : vector<2x128xf32> to vector<2x128xbf16>
    %cst_78 = arith.constant dense<0.000000e+00> : vector<2x1024xf32>
    %309 = tpu.matmul %308, %4, %cst_78 {dimension_numbers = #tpu.dot_dimension_numbers<[1], [0], [0], [1], [0, 0, 1, 1], [], []>} : vector<2x128xbf16>, vector<128x1024xbf16>, vector<2x1024xf32> -> vector<2x1024xf32>
    %310 = arith.index_cast %289 : i32 to index
    %311 = memref.load %arg2[%310] : memref<8xf32, #tpu.memory_space<smem>>
    %312 = vector.broadcast %311 : f32 to vector<2x1024xf32>
    %313 = arith.mulf %312, %287 : vector<2x1024xf32>
    %314 = arith.index_cast %289 : i32 to index
    %315 = memref.load %arg3[%314] : memref<8xf32, #tpu.memory_space<smem>>
    %316 = vector.broadcast %315 : f32 to vector<2x1024xf32>
    %317 = arith.mulf %316, %309 : vector<2x1024xf32>
    %318 = arith.subf %313, %317 : vector<2x1024xf32>
    %319 = arith.index_cast %c7_i32 : i32 to index
    %c0_79 = arith.constant 0 : index
    %c0_80 = arith.constant 0 : index
    %320 = vector.load %arg11[%319, %c0_79, %c0_80] : memref<8x2x1024xbf16, #tpu.memory_space<vmem>>, vector<1x2x1024xbf16>
    %321 = vector.shape_cast %320 : vector<1x2x1024xbf16> to vector<2x1024xbf16>
    %322 = arith.extf %321 : vector<2x1024xbf16> to vector<2x1024xf32>
    %323 = arith.index_cast %289 : i32 to index
    %324 = memref.load %arg4[%323] : memref<8xf32, #tpu.memory_space<smem>>
    %325 = vector.broadcast %324 : f32 to vector<2x1024xf32>
    %326 = arith.mulf %325, %322 : vector<2x1024xf32>
    %327 = arith.addf %318, %326 : vector<2x1024xf32>
    %c8_i32_81 = arith.constant 8 : i32
    %c0_82 = arith.constant 0 : index
    %c0_83 = arith.constant 0 : index
    %328 = vector.load %arg13[%c0_82, %c0_83] : memref<2x1024xf32, #tpu.memory_space<vmem>>, vector<2x1024xf32>
    tpu.vector_store %arg13[%c0_82, %c0_83], %327 {strides = array<i32>} : memref<2x1024xf32, #tpu.memory_space<vmem>>, vector<2x1024xf32>,
    %c0_i32_84 = arith.constant 0 : i32
    %329 = arith.cmpi eq, %arg1, %c0_i32_84 : i32
    %330 = arith.extui %329 : i1 to i32
    %c0_i32_85 = arith.constant 0 : i32
    %331 = arith.cmpi ne, %330, %c0_i32_85 : i32
    scf.if %331 {
      %cst_86 = arith.constant -1.000000e+00 : f32
      %cst_87 = arith.constant 1.000000e+00 : f32
      %332 = vector.broadcast %cst_86 : f32 to vector<2x1024xf32>
      %333 = arith.maximumf %332, %327 : vector<2x1024xf32>
      %334 = vector.broadcast %cst_87 : f32 to vector<2x1024xf32>
      %335 = arith.minimumf %334, %333 : vector<2x1024xf32>
      %c0_88 = arith.constant 0 : index
      %c0_89 = arith.constant 0 : index
      %336 = vector.load %arg12[%c0_88, %c0_89] : memref<2x1024xf32, #tpu.memory_space<vmem>>, vector<2x1024xf32>
      tpu.vector_store %arg12[%c0_88, %c0_89], %335 {strides = array<i32>} : memref<2x1024xf32, #tpu.memory_space<vmem>>, vector<2x1024xf32>,
    } else {
    }
    return
  }
  func.func @transform_0(%arg0: i32, %arg1: i32) -> i32 {
    %c0_i32 = arith.constant 0 : i32
    %c0_i32_0 = arith.constant 0 : i32
    return %c0_i32 : i32
  }
  func.func @transform_1(%arg0: i32, %arg1: i32) -> i32 {
    %c0_i32 = arith.constant 0 : i32
    %c0_i32_0 = arith.constant 0 : i32
    return %c0_i32 : i32
  }
  func.func @transform_2(%arg0: i32, %arg1: i32) -> i32 {
    %c0_i32 = arith.constant 0 : i32
    %c0_i32_0 = arith.constant 0 : i32
    return %c0_i32 : i32
  }
  func.func @transform_3(%arg0: i32, %arg1: i32) -> (i32, i32) {
    %c0_i32 = arith.constant 0 : i32
    %c0_i32_0 = arith.constant 0 : i32
    return %arg0, %c0_i32 : i32, i32
  }
  func.func @transform_4(%arg0: i32, %arg1: i32) -> (i32, i32) {
    %c0_i32 = arith.constant 0 : i32
    %c0_i32_0 = arith.constant 0 : i32
    %c0_i32_1 = arith.constant 0 : i32
    return %c0_i32, %c0_i32_0 : i32, i32
  }
  func.func @transform_5(%arg0: i32, %arg1: i32) -> (i32, i32) {
    %c0_i32 = arith.constant 0 : i32
    %c0_i32_0 = arith.constant 0 : i32
    %c0_i32_1 = arith.constant 0 : i32
    return %c0_i32, %c0_i32_0 : i32, i32
  }
  func.func @transform_6(%arg0: i32, %arg1: i32) -> (i32, i32) {
    %c0_i32 = arith.constant 0 : i32
    %c0_i32_0 = arith.constant 0 : i32
    return %arg0, %c0_i32 : i32, i32
  }
  func.func @transform_7(%arg0: i32, %arg1: i32) -> (i32, i32) {
    %c0_i32 = arith.constant 0 : i32
    %c0_i32_0 = arith.constant 0 : i32
    return %arg0, %c0_i32 : i32, i32
  }
  func.func @transform_8(%arg0: i32, %arg1: i32) -> (i32, i32, i32) {
    %c0_i32 = arith.constant 0 : i32
    %c0_i32_0 = arith.constant 0 : i32
    %c0_i32_1 = arith.constant 0 : i32
    return %arg1, %c0_i32, %c0_i32_0 : i32, i32, i32
  }
  func.func @transform_9(%arg0: i32, %arg1: i32) -> (i32, i32, i32) {
    %c0_i32 = arith.constant 0 : i32
    %c0_i32_0 = arith.constant 0 : i32
    return %arg1, %arg0, %c0_i32 : i32, i32, i32
  }
  func.func @transform_10(%arg0: i32, %arg1: i32) -> (i32, i32) {
    %c0_i32 = arith.constant 0 : i32
    %c0_i32_0 = arith.constant 0 : i32
    return %arg0, %c0_i32 : i32, i32
  }
}

</mosaic_0001>

<llo_original>
// kernel: sample.1
$region0: #{sample.1}
  #allocation0 [shape = 'u32[]', space=smem, size = 0x4, offset = 0x4, fixed_abs, tag = 'smem constant byte address 0x4 - core index']
  #allocation1 [shape = 'u32[144,128]{1,0:T(1,128)}', space=vmem, size = 0x12000, scoped, tag = 'internal scratch']
  #allocation2 [shape = 'f32[2,1024]{1,0:T(2,128)}', space=vmem, size = 0x2000, scoped, tag = 'scratch operand']
  %s0 = inlined_call_operand.hbm [shape: f32[8], index: 0, kind: input, shape index: {}]
  %s1 = inlined_call_operand.hbm [shape: f32[8], index: 1, kind: input, shape index: {}]
  %s2 = inlined_call_operand.hbm [shape: f32[8], index: 2, kind: input, shape index: {}]
  %s3 = inlined_call_operand.hbm [shape: f32[2,1024], index: 3, kind: input, shape index: {}]
  %s4 = inlined_call_operand.hbm [shape: bf16[1024,128], index: 4, kind: input, shape index: {}]
  %s5 = inlined_call_operand.hbm [shape: bf16[128,1024], index: 5, kind: input, shape index: {}]
  %s6 = inlined_call_operand.hbm [shape: f32[2,128], index: 6, kind: input, shape index: {}]
  %s7 = inlined_call_operand.hbm [shape: f32[2,128], index: 7, kind: input, shape index: {}]
  %s8 = inlined_call_operand.hbm [shape: f32[8,1,128], index: 8, kind: input, shape index: {}]
  %s9 = inlined_call_operand.hbm [shape: bf16[8,2,1024], index: 9, kind: input, shape index: {}]
  %s10 = inlined_call_operand.hbm [shape: f32[2,1024], index: 10, kind: output, shape index: {}]
  %s11 = sld [smem:[#allocation0]]
  $region98: #{sample.1} parent=0
    _
  %s13 = ssub.s32 1, %s11
  %s14 = scalar_select 0, %s13, %s11
  $region1: #{sample.1} parent=0
    #allocation3 [shape = 'u8[512]{0}', space=smem, size = 0x200, scoped, tag = 'input window, operand 0, single buffered']
    #allocation4 [shape = 's32[1]{0}', space=sflag, size = 0x4, scoped, tag = 'scoped memory for sample.1']
    #allocation5 [shape = 's32[1]{0}', space=sflag, size = 0x4, scoped, tag = 'scoped memory for sample.1']
    #allocation6 [shape = 's32[1]{0}', space=sflag, size = 0x4, scoped, tag = 'scoped memory for sample.1']
    #allocation7 [shape = 'u8[512]{0}', space=smem, size = 0x200, scoped, tag = 'input window, operand 1, single buffered']
    #allocation8 [shape = 's32[1]{0}', space=sflag, size = 0x4, scoped, tag = 'scoped memory for sample.1']
    #allocation9 [shape = 'u8[512]{0}', space=smem, size = 0x200, scoped, tag = 'input window, operand 2, single buffered']
    #allocation10 [shape = 'u8[8192]{0}', space=vmem, size = 0x2000, scoped, tag = 'input window, operand 3, single buffered']
    #allocation11 [shape = 'u8[262144]{0}', space=vmem, size = 0x40000, scoped, tag = 'input window, operand 4, single buffered']
    #allocation12 [shape = 's32[1]{0}', space=sflag, size = 0x4, scoped, tag = 'scoped memory for sample.1']
    #allocation13 [shape = 'u8[262144]{0}', space=vmem, size = 0x40000, scoped, tag = 'input window, operand 5, single buffered']
    #allocation14 [shape = 'u8[1024]{0}', space=vmem, size = 0x400, scoped, tag = 'input window, operand 6, single buffered']
    #allocation15 [shape = 's32[1]{0}', space=sflag, size = 0x4, scoped, tag = 'scoped memory for sample.1']
    #allocation16 [shape = 'u8[1024]{0}', space=vmem, size = 0x400, scoped, tag = 'input window, operand 7, single buffered']
    #allocation17 [shape = 'u8[4096]{0}', space=vmem, size = 0x1000, scoped, tag = 'input window, operand 8, single buffered']
    #allocation18 [shape = 's32[1]{0}', space=sflag, size = 0x4, scoped, tag = 'scoped memory for sample.1']
    #allocation19 [shape = 'u8[32768]{0}', space=vmem, size = 0x8000, scoped, tag = 'input window, operand 9, single buffered']
    #allocation20 [shape = 'u8[8192]{0}', space=vmem, size = 0x2000, scoped, tag = 'output window, operand 0, single buffered']
    %15 = vsyncpa [#allocation6], 0
    %16 = vsyncpa [#allocation8], 0
    %17 = vsyncpa [#allocation4], 0
    %18 = vsyncpa [#allocation12], 0
    %19 = vsyncpa [#allocation15], 0
    %20 = vsyncpa [#allocation18], 0
    %21 = vsyncpa [#allocation5], 0
    // Predicated region
    $region2: #{sample.1} parent=1 // pred_check
      _
    $region3: #{sample.1} parent=1 // pred_check_branch
      %23 = sbr.rel (0) target = $region5
    $region4: #{sample.1} parent=1 // pred_region
      %s25 = ssub.s32 16, 16
      %26 = vsyncadd [#allocation6], %s25
      %29 = dma.hbm_to_smem %s0, 16, [#allocation3], [#allocation6]
    $region5: #{sample.1} parent=1 // pred_fallthru
      _
    // Predicated region
    $region6: #{sample.1} parent=1 // pred_check
      _
    $region7: #{sample.1} parent=1 // pred_check_branch
      %31 = sbr.rel (0) target = $region9
    $region8: #{sample.1} parent=1 // pred_region
      %s33 = ssub.s32 16, 16
      %34 = vsyncadd [#allocation8], %s33
      %37 = dma.hbm_to_smem %s1, 16, [#allocation7], [#allocation8]
    $region9: #{sample.1} parent=1 // pred_fallthru
      _
    // Predicated region
    $region10: #{sample.1} parent=1 // pred_check
      _
    $region11: #{sample.1} parent=1 // pred_check_branch
      %39 = sbr.rel (0) target = $region13
    $region12: #{sample.1} parent=1 // pred_region
      %s41 = ssub.s32 16, 16
      %42 = vsyncadd [#allocation8], %s41
      %45 = dma.hbm_to_smem %s2, 16, [#allocation9], [#allocation8]
    $region13: #{sample.1} parent=1 // pred_fallthru
      _
    // Predicated region
    $region14: #{sample.1} parent=1 // pred_check
      _
    $region15: #{sample.1} parent=1 // pred_check_branch
      %47 = sbr.rel (0) target = $region17
    $region16: #{sample.1} parent=1 // pred_region
      %s49 = ssub.s32 256, 256
      %50 = vsyncadd [#allocation4], %s49
      %s52 = sshll.u32 [#allocation10], 4
      %s53 = int_to_ptr.vmem [resolvable:$true] %s52
      %55 = dma.hbm_to_vmem [thread:$0]  %s3, 256, %s53, [#allocation4]
    $region17: #{sample.1} parent=1 // pred_fallthru
      _
    // Predicated region
    $region18: #{sample.1} parent=1 // pred_check
      _
    $region19: #{sample.1} parent=1 // pred_check_branch
      %57 = sbr.rel (0) target = $region21
    $region20: #{sample.1} parent=1 // pred_region
      %s59 = ssub.s32 8192, 8192
      %60 = vsyncadd [#allocation12], %s59
      %s61 = sshll.u32 [#allocation11], 4
      %s62 = int_to_ptr.vmem [resolvable:$true] %s61
      %67 = dma.hbm_to_vmem [thread:$0]  %s4, 8192, %s62, [#allocation12], 64, 64, 4
    $region21: #{sample.1} parent=1 // pred_fallthru
      _
    // Predicated region
    $region22: #{sample.1} parent=1 // pred_check
      _
    $region23: #{sample.1} parent=1 // pred_check_branch
      %69 = sbr.rel (0) target = $region25
    $region24: #{sample.1} parent=1 // pred_region
      %s71 = ssub.s32 8192, 8192
      %72 = vsyncadd [#allocation12], %s71
      %s73 = sshll.u32 [#allocation13], 4
      %s74 = int_to_ptr.vmem [resolvable:$true] %s73
      %79 = dma.hbm_to_vmem [thread:$0]  %s5, 8192, %s74, [#allocation12], 512, 512, 32
    $region25: #{sample.1} parent=1 // pred_fallthru
      _
    // Predicated region
    $region26: #{sample.1} parent=1 // pred_check
      _
    $region27: #{sample.1} parent=1 // pred_check_branch
      %81 = sbr.rel (0) target = $region29
    $region28: #{sample.1} parent=1 // pred_region
      %s83 = ssub.s32 32, 32
      %84 = vsyncadd [#allocation15], %s83
      %s86 = sshll.u32 [#allocation14], 4
      %s87 = int_to_ptr.vmem [resolvable:$true] %s86
      %89 = dma.hbm_to_vmem [thread:$0]  %s6, 32, %s87, [#allocation15]
    $region29: #{sample.1} parent=1 // pred_fallthru
      _
    // Predicated region
    $region30: #{sample.1} parent=1 // pred_check
      _
    $region31: #{sample.1} parent=1 // pred_check_branch
      %91 = sbr.rel (0) target = $region33
    $region32: #{sample.1} parent=1 // pred_region
      %s93 = ssub.s32 32, 32
      %94 = vsyncadd [#allocation15], %s93
      %s96 = sshll.u32 [#allocation16], 4
      %s97 = int_to_ptr.vmem [resolvable:$true] %s96
      %99 = dma.hbm_to_vmem [thread:$0]  %s7, 32, %s97, [#allocation15]
    $region33: #{sample.1} parent=1 // pred_fallthru
      _
    // Predicated region
    $region34: #{sample.1} parent=1 // pred_check
      _
    $region35: #{sample.1} parent=1 // pred_check_branch
      %101 = sbr.rel (0) target = $region37
    $region36: #{sample.1} parent=1 // pred_region
      %s103 = ssub.s32 128, 128
      %104 = vsyncadd [#allocation18], %s103
      %s105 = sshll.u32 [#allocation17], 4
      %s106 = int_to_ptr.vmem [resolvable:$true] %s105
      %111 = dma.hbm_to_vmem [thread:$0]  %s8, 128, %s106, [#allocation18], 16, 16, 1
    $region37: #{sample.1} parent=1 // pred_fallthru
      _
    // Predicated region
    $region38: #{sample.1} parent=1 // pred_check
      _
    $region39: #{sample.1} parent=1 // pred_check_branch
      %113 = sbr.rel (0) target = $region41
    $region40: #{sample.1} parent=1 // pred_region
      %s115 = ssub.s32 1024, 1024
      %116 = vsyncadd [#allocation18], %s115
      %s117 = sshll.u32 [#allocation19], 4
      %s118 = int_to_ptr.vmem [resolvable:$true] %s117
      %123 = dma.hbm_to_vmem [thread:$0]  %s9, 1024, %s118, [#allocation18], 128, 128, 8
    $region41: #{sample.1} parent=1 // pred_fallthru
      _
    // Predicated region
    $region42: #{sample.1} parent=1 // pred_check
      _
    $region43: #{sample.1} parent=1 // pred_check_branch
      %125 = sbr.rel (0) target = $region45
    $region44: #{sample.1} parent=1 // pred_region
      %126 = dma.done [#allocation6], 16
    $region45: #{sample.1} parent=1 // pred_fallthru
      _
    // Predicated region
    $region46: #{sample.1} parent=1 // pred_check
      _
    $region47: #{sample.1} parent=1 // pred_check_branch
      %128 = sbr.rel (0) target = $region49
    $region48: #{sample.1} parent=1 // pred_region
      %129 = dma.done [#allocation8], 16
    $region49: #{sample.1} parent=1 // pred_fallthru
      _
    // Predicated region
    $region50: #{sample.1} parent=1 // pred_check
      _
    $region51: #{sample.1} parent=1 // pred_check_branch
      %131 = sbr.rel (0) target = $region53
    $region52: #{sample.1} parent=1 // pred_region
      %132 = dma.done [#allocation8], 16
    $region53: #{sample.1} parent=1 // pred_fallthru
      _
    // Predicated region
    $region54: #{sample.1} parent=1 // pred_check
      _
    $region55: #{sample.1} parent=1 // pred_check_branch
      %134 = sbr.rel (0) target = $region57
    $region56: #{sample.1} parent=1 // pred_region
      %135 = dma.done [#allocation4], 256
    $region57: #{sample.1} parent=1 // pred_fallthru
      _
    // Predicated region
    $region58: #{sample.1} parent=1 // pred_check
      _
    $region59: #{sample.1} parent=1 // pred_check_branch
      %137 = sbr.rel (0) target = $region61
    $region60: #{sample.1} parent=1 // pred_region
      %138 = dma.done [#allocation12], 8192
    $region61: #{sample.1} parent=1 // pred_fallthru
      _
    // Predicated region
    $region62: #{sample.1} parent=1 // pred_check
      _
    $region63: #{sample.1} parent=1 // pred_check_branch
      %140 = sbr.rel (0) target = $region65
    $region64: #{sample.1} parent=1 // pred_region
      %141 = dma.done [#allocation12], 8192
    $region65: #{sample.1} parent=1 // pred_fallthru
      _
    // Predicated region
    $region66: #{sample.1} parent=1 // pred_check
      _
    $region67: #{sample.1} parent=1 // pred_check_branch
      %143 = sbr.rel (0) target = $region69
    $region68: #{sample.1} parent=1 // pred_region
      %144 = dma.done [#allocation15], 32
    $region69: #{sample.1} parent=1 // pred_fallthru
      _
    // Predicated region
    $region70: #{sample.1} parent=1 // pred_check
      _
    $region71: #{sample.1} parent=1 // pred_check_branch
      %146 = sbr.rel (0) target = $region73
    $region72: #{sample.1} parent=1 // pred_region
      %147 = dma.done [#allocation15], 32
    $region73: #{sample.1} parent=1 // pred_fallthru
      _
    // Predicated region
    $region74: #{sample.1} parent=1 // pred_check
      _
    $region75: #{sample.1} parent=1 // pred_check_branch
      %149 = sbr.rel (0) target = $region77
    $region76: #{sample.1} parent=1 // pred_region
      %150 = dma.done [#allocation18], 128
    $region77: #{sample.1} parent=1 // pred_fallthru
      _
    // Predicated region
    $region78: #{sample.1} parent=1 // pred_check
      _
    $region79: #{sample.1} parent=1 // pred_check_branch
      %152 = sbr.rel (0) target = $region81
    $region80: #{sample.1} parent=1 // pred_region
      %153 = dma.done [#allocation18], 1024
    $region81: #{sample.1} parent=1 // pred_fallthru
      _
    %154 = sfence
    %p156 = scmp.eq.s32.totalorder 0, 0
    // Predicated region
    $region82: #{sample.1} parent=1 // pred_check
      %p157 = pneg %p156
    $region83: #{sample.1} parent=1 // pred_check_branch
      %159 = sbr.rel (%p157) target = $region85
    $region84: #{sample.1} parent=1 // pred_region
      %v160 = vld [vmem:[#allocation10] sm:$0xff]
      %v161 = vld [vmem:[#allocation10 + $0x8] sm:$0xff]
      %162 = vst [vmem:[#allocation2] sm:$0xff] %v160
      %163 = vst [vmem:[#allocation2 + $0x8] sm:$0xff] %v161
    $region85: #{sample.1} parent=1 // pred_fallthru
      _
    %v164 = vld [vmem:[#allocation11] sm:$0xf]
    %v165 = vld [vmem:[#allocation11 + $0x4] sm:$0xf]
    %v166 = vld [vmem:[#allocation11 + $0x8] sm:$0xf]
    %v167 = vld [vmem:[#allocation11 + $0xc] sm:$0xf]
    %v168 = vld [vmem:[#allocation11 + $0x10] sm:$0xf]
    %v169 = vld [vmem:[#allocation11 + $0x14] sm:$0xf]
    %v170 = vld [vmem:[#allocation11 + $0x18] sm:$0xf]
    %v171 = vld [vmem:[#allocation11 + $0x1c] sm:$0xf]
    %v172 = vld [vmem:[#allocation11 + $0x20] sm:$0xf]
    %v173 = vld [vmem:[#allocation11 + $0x24] sm:$0xf]
    %v174 = vld [vmem:[#allocation11 + $0x28] sm:$0xf]
    %v175 = vld [vmem:[#allocation11 + $0x2c] sm:$0xf]
    %v176 = vld [vmem:[#allocation11 + $0x30] sm:$0xf]
    %v177 = vld [vmem:[#allocation11 + $0x34] sm:$0xf]
    %v178 = vld [vmem:[#allocation11 + $0x38] sm:$0xf]
    %v179 = vld [vmem:[#allocation11 + $0x3c] sm:$0xf]
    %v180 = vld [vmem:[#allocation11 + $0x40] sm:$0xf]
    %v181 = vld [vmem:[#allocation11 + $0x44] sm:$0xf]
    %v182 = vld [vmem:[#allocation11 + $0x48] sm:$0xf]
    %v183 = vld [vmem:[#allocation11 + $0x4c] sm:$0xf]
    %v184 = vld [vmem:[#allocation11 + $0x50] sm:$0xf]
    %v185 = vld [vmem:[#allocation11 + $0x54] sm:$0xf]
    %v186 = vld [vmem:[#allocation11 + $0x58] sm:$0xf]
    %v187 = vld [vmem:[#allocation11 + $0x5c] sm:$0xf]
    %v188 = vld [vmem:[#allocation11 + $0x60] sm:$0xf]
    %v189 = vld [vmem:[#allocation11 + $0x64] sm:$0xf]
    %v190 = vld [vmem:[#allocation11 + $0x68] sm:$0xf]
    %v191 = vld [vmem:[#allocation11 + $0x6c] sm:$0xf]
    %v192 = vld [vmem:[#allocation11 + $0x70] sm:$0xf]
    %v193 = vld [vmem:[#allocation11 + $0x74] sm:$0xf]
    %v194 = vld [vmem:[#allocation11 + $0x78] sm:$0xf]
    %v195 = vld [vmem:[#allocation11 + $0x7c] sm:$0xf]
    %v196 = vld [vmem:[#allocation11 + $0x80] sm:$0xf]
    %v197 = vld [vmem:[#allocation11 + $0x84] sm:$0xf]
    %v198 = vld [vmem:[#allocation11 + $0x88] sm:$0xf]
    %v199 = vld [vmem:[#allocation11 + $0x8c] sm:$0xf]
    %v200 = vld [vmem:[#allocation11 + $0x90] sm:$0xf]
    %v201 = vld [vmem:[#allocation11 + $0x94] sm:$0xf]
    %v202 = vld [vmem:[#allocation11 + $0x98] sm:$0xf]
    %v203 = vld [vmem:[#allocation11 + $0x9c] sm:$0xf]
    %v204 = vld [vmem:[#allocation11 + $0xa0] sm:$0xf]
    %v205 = vld [vmem:[#allocation11 + $0xa4] sm:$0xf]
    %v206 = vld [vmem:[#allocation11 + $0xa8] sm:$0xf]
    %v207 = vld [vmem:[#allocation11 + $0xac] sm:$0xf]
    %v208 = vld [vmem:[#allocation11 + $0xb0] sm:$0xf]
    %v209 = vld [vmem:[#allocation11 + $0xb4] sm:$0xf]
    %v210 = vld [vmem:[#allocation11 + $0xb8] sm:$0xf]
    %v211 = vld [vmem:[#allocation11 + $0xbc] sm:$0xf]
    %v212 = vld [vmem:[#allocation11 + $0xc0] sm:$0xf]
    %v213 = vld [vmem:[#allocation11 + $0xc4] sm:$0xf]
    %v214 = vld [vmem:[#allocation11 + $0xc8] sm:$0xf]
    %v215 = vld [vmem:[#allocation11 + $0xcc] sm:$0xf]
    %v216 = vld [vmem:[#allocation11 + $0xd0] sm:$0xf]
    %v217 = vld [vmem:[#allocation11 + $0xd4] sm:$0xf]
    %v218 = vld [vmem:[#allocation11 + $0xd8] sm:$0xf]
    %v219 = vld [vmem:[#allocation11 + $0xdc] sm:$0xf]
    %v220 = vld [vmem:[#allocation11 + $0xe0] sm:$0xf]
    %v221 = vld [vmem:[#allocation11 + $0xe4] sm:$0xf]
    %v222 = vld [vmem:[#allocation11 + $0xe8] sm:$0xf]
    %v223 = vld [vmem:[#allocation11 + $0xec] sm:$0xf]
    %v224 = vld [vmem:[#allocation11 + $0xf0] sm:$0xf]
    %v225 = vld [vmem:[#allocation11 + $0xf4] sm:$0xf]
    %v226 = vld [vmem:[#allocation11 + $0xf8] sm:$0xf]
    %v227 = vld [vmem:[#allocation11 + $0xfc] sm:$0xf]
    %v228 = vld [vmem:[#allocation11 + $0x100] sm:$0xf]
    %v229 = vld [vmem:[#allocation11 + $0x104] sm:$0xf]
    %v230 = vld [vmem:[#allocation11 + $0x108] sm:$0xf]
    %v231 = vld [vmem:[#allocation11 + $0x10c] sm:$0xf]
    %v232 = vld [vmem:[#allocation11 + $0x110] sm:$0xf]
    %v233 = vld [vmem:[#allocation11 + $0x114] sm:$0xf]
    %v234 = vld [vmem:[#allocation11 + $0x118] sm:$0xf]
    %v235 = vld [vmem:[#allocation11 + $0x11c] sm:$0xf]
    %v236 = vld [vmem:[#allocation11 + $0x120] sm:$0xf]
    %v237 = vld [vmem:[#allocation11 + $0x124] sm:$0xf]
    %v238 = vld [vmem:[#allocation11 + $0x128] sm:$0xf]
    %v239 = vld [vmem:[#allocation11 + $0x12c] sm:$0xf]
    %v240 = vld [vmem:[#allocation11 + $0x130] sm:$0xf]
    %v241 = vld [vmem:[#allocation11 + $0x134] sm:$0xf]
    %v242 = vld [vmem:[#allocation11 + $0x138] sm:$0xf]
    %v243 = vld [vmem:[#allocation11 + $0x13c] sm:$0xf]
    %v244 = vld [vmem:[#allocation11 + $0x140] sm:$0xf]
    %v245 = vld [vmem:[#allocation11 + $0x144] sm:$0xf]
    %v246 = vld [vmem:[#allocation11 + $0x148] sm:$0xf]
    %v247 = vld [vmem:[#allocation11 + $0x14c] sm:$0xf]
    %v248 = vld [vmem:[#allocation11 + $0x150] sm:$0xf]
    %v249 = vld [vmem:[#allocation11 + $0x154] sm:$0xf]
    %v250 = vld [vmem:[#allocation11 + $0x158] sm:$0xf]
    %v251 = vld [vmem:[#allocation11 + $0x15c] sm:$0xf]
    %v252 = vld [vmem:[#allocation11 + $0x160] sm:$0xf]
    %v253 = vld [vmem:[#allocation11 + $0x164] sm:$0xf]
    %v254 = vld [vmem:[#allocation11 + $0x168] sm:$0xf]
    %v255 = vld [vmem:[#allocation11 + $0x16c] sm:$0xf]
    %v256 = vld [vmem:[#allocation11 + $0x170] sm:$0xf]
    %v257 = vld [vmem:[#allocation11 + $0x174] sm:$0xf]
    %v258 = vld [vmem:[#allocation11 + $0x178] sm:$0xf]
    %v259 = vld [vmem:[#allocation11 + $0x17c] sm:$0xf]
    %v260 = vld [vmem:[#allocation11 + $0x180] sm:$0xf]
    %v261 = vld [vmem:[#allocation11 + $0x184] sm:$0xf]
    %v262 = vld [vmem:[#allocation11 + $0x188] sm:$0xf]
    %v263 = vld [vmem:[#allocation11 + $0x18c] sm:$0xf]
    %v264 = vld [vmem:[#allocation11 + $0x190] sm:$0xf]
    %v265 = vld [vmem:[#allocation11 + $0x194] sm:$0xf]
    %v266 = vld [vmem:[#allocation11 + $0x198] sm:$0xf]
    %v267 = vld [vmem:[#allocation11 + $0x19c] sm:$0xf]
    %v268 = vld [vmem:[#allocation11 + $0x1a0] sm:$0xf]
    %v269 = vld [vmem:[#allocation11 + $0x1a4] sm:$0xf]
    %v270 = vld [vmem:[#allocation11 + $0x1a8] sm:$0xf]
    %v271 = vld [vmem:[#allocation11 + $0x1ac] sm:$0xf]
    %v272 = vld [vmem:[#allocation11 + $0x1b0] sm:$0xf]
    %v273 = vld [vmem:[#allocation11 + $0x1b4] sm:$0xf]
    %v274 = vld [vmem:[#allocation11 + $0x1b8] sm:$0xf]
    %v275 = vld [vmem:[#allocation11 + $0x1bc] sm:$0xf]
    %v276 = vld [vmem:[#allocation11 + $0x1c0] sm:$0xf]
    %v277 = vld [vmem:[#allocation11 + $0x1c4] sm:$0xf]
    %v278 = vld [vmem:[#allocation11 + $0x1c8] sm:$0xf]
    %v279 = vld [vmem:[#allocation11 + $0x1cc] sm:$0xf]
    %v280 = vld [vmem:[#allocation11 + $0x1d0] sm:$0xf]
    %v281 = vld [vmem:[#allocation11 + $0x1d4] sm:$0xf]
    %v282 = vld [vmem:[#allocation11 + $0x1d8] sm:$0xf]
    %v283 = vld [vmem:[#allocation11 + $0x1dc] sm:$0xf]
    %v284 = vld [vmem:[#allocation11 + $0x1e0] sm:$0xf]
    %v285 = vld [vmem:[#allocation11 + $0x1e4] sm:$0xf]
    %v286 = vld [vmem:[#allocation11 + $0x1e8] sm:$0xf]
    %v287 = vld [vmem:[#allocation11 + $0x1ec] sm:$0xf]
    %v288 = vld [vmem:[#allocation11 + $0x1f0] sm:$0xf]
    %v289 = vld [vmem:[#allocation11 + $0x1f4] sm:$0xf]
    %v290 = vld [vmem:[#allocation11 + $0x1f8] sm:$0xf]
    %v291 = vld [vmem:[#allocation11 + $0x1fc] sm:$0xf]
    %v292 = vld [vmem:[#allocation13] sm:$0xff]
    %v293 = vld [vmem:[#allocation13 + $0x8] sm:$0xff]
    %v294 = vld [vmem:[#allocation13 + $0x10] sm:$0xff]
    %v295 = vld [vmem:[#allocation13 + $0x18] sm:$0xff]
    %v296 = vld [vmem:[#allocation13 + $0x20] sm:$0xff]
    %v297 = vld [vmem:[#allocation13 + $0x28] sm:$0xff]
    %v298 = vld [vmem:[#allocation13 + $0x30] sm:$0xff]
    %v299 = vld [vmem:[#allocation13 + $0x38] sm:$0xff]
    %v300 = vld [vmem:[#allocation13 + $0x40] sm:$0xff]
    %v301 = vld [vmem:[#allocation13 + $0x48] sm:$0xff]
    %v302 = vld [vmem:[#allocation13 + $0x50] sm:$0xff]
    %v303 = vld [vmem:[#allocation13 + $0x58] sm:$0xff]
    %v304 = vld [vmem:[#allocation13 + $0x60] sm:$0xff]
    %v305 = vld [vmem:[#allocation13 + $0x68] sm:$0xff]
    %v306 = vld [vmem:[#allocation13 + $0x70] sm:$0xff]
    %v307 = vld [vmem:[#allocation13 + $0x78] sm:$0xff]
    %v308 = vld [vmem:[#allocation13 + $0x80] sm:$0xff]
    %v309 = vld [vmem:[#allocation13 + $0x88] sm:$0xff]
    %v310 = vld [vmem:[#allocation13 + $0x90] sm:$0xff]
    %v311 = vld [vmem:[#allocation13 + $0x98] sm:$0xff]
    %v312 = vld [vmem:[#allocation13 + $0xa0] sm:$0xff]
    %v313 = vld [vmem:[#allocation13 + $0xa8] sm:$0xff]
    %v314 = vld [vmem:[#allocation13 + $0xb0] sm:$0xff]
    %v315 = vld [vmem:[#allocation13 + $0xb8] sm:$0xff]
    %v316 = vld [vmem:[#allocation13 + $0xc0] sm:$0xff]
    %v317 = vld [vmem:[#allocation13 + $0xc8] sm:$0xff]
    %v318 = vld [vmem:[#allocation13 + $0xd0] sm:$0xff]
    %v319 = vld [vmem:[#allocation13 + $0xd8] sm:$0xff]
    %v320 = vld [vmem:[#allocation13 + $0xe0] sm:$0xff]
    %v321 = vld [vmem:[#allocation13 + $0xe8] sm:$0xff]
    %v322 = vld [vmem:[#allocation13 + $0xf0] sm:$0xff]
    %v323 = vld [vmem:[#allocation13 + $0xf8] sm:$0xff]
    %v324 = vld [vmem:[#allocation13 + $0x100] sm:$0xff]
    %v325 = vld [vmem:[#allocation13 + $0x108] sm:$0xff]
    %v326 = vld [vmem:[#allocation13 + $0x110] sm:$0xff]
    %v327 = vld [vmem:[#allocation13 + $0x118] sm:$0xff]
    %v328 = vld [vmem:[#allocation13 + $0x120] sm:$0xff]
    %v329 = vld [vmem:[#allocation13 + $0x128] sm:$0xff]
    %v330 = vld [vmem:[#allocation13 + $0x130] sm:$0xff]
    %v331 = vld [vmem:[#allocation13 + $0x138] sm:$0xff]
    %v332 = vld [vmem:[#allocation13 + $0x140] sm:$0xff]
    %v333 = vld [vmem:[#allocation13 + $0x148] sm:$0xff]
    %v334 = vld [vmem:[#allocation13 + $0x150] sm:$0xff]
    %v335 = vld [vmem:[#allocation13 + $0x158] sm:$0xff]
    %v336 = vld [vmem:[#allocation13 + $0x160] sm:$0xff]
    %v337 = vld [vmem:[#allocation13 + $0x168] sm:$0xff]
    %v338 = vld [vmem:[#allocation13 + $0x170] sm:$0xff]
    %v339 = vld [vmem:[#allocation13 + $0x178] sm:$0xff]
    %v340 = vld [vmem:[#allocation13 + $0x180] sm:$0xff]
    %v341 = vld [vmem:[#allocation13 + $0x188] sm:$0xff]
    %v342 = vld [vmem:[#allocation13 + $0x190] sm:$0xff]
    %v343 = vld [vmem:[#allocation13 + $0x198] sm:$0xff]
    %v344 = vld [vmem:[#allocation13 + $0x1a0] sm:$0xff]
    %v345 = vld [vmem:[#allocation13 + $0x1a8] sm:$0xff]
    %v346 = vld [vmem:[#allocation13 + $0x1b0] sm:$0xff]
    %v347 = vld [vmem:[#allocation13 + $0x1b8] sm:$0xff]
    %v348 = vld [vmem:[#allocation13 + $0x1c0] sm:$0xff]
    %v349 = vld [vmem:[#allocation13 + $0x1c8] sm:$0xff]
    %v350 = vld [vmem:[#allocation13 + $0x1d0] sm:$0xff]
    %v351 = vld [vmem:[#allocation13 + $0x1d8] sm:$0xff]
    %v352 = vld [vmem:[#allocation13 + $0x1e0] sm:$0xff]
    %v353 = vld [vmem:[#allocation13 + $0x1e8] sm:$0xff]
    %v354 = vld [vmem:[#allocation13 + $0x1f0] sm:$0xff]
    %v355 = vld [vmem:[#allocation13 + $0x1f8] sm:$0xff]
    %v356 = vld [vmem:[#allocation14] sm:$0x3]
    %v357 = vld [vmem:[#allocation16] sm:$0x3]
    %v358 = vld [vmem:[#allocation2] sm:$0xff]
    %v359 = vld [vmem:[#allocation2 + $0x8] sm:$0xff]
    %s360 = smul.u32 0, 8
    %v363 = vcombine.high %v358, %v358
    %v365 = vunpack.c.l.s4 1983009808
    %v366 = vunpack.c.0.s8 %v365
    %v367 = vlaneseq
    %v368 = vshrl.u32 %v367, 7
    %v369 = vsub.s32 %v366, %v368
    %v370 = vrot.slane %v358, %v369
    %v372 = vunpack.c.l.s4 1983009808
    %v373 = vunpack.c.0.s8 %v372
    %v374 = vlaneseq
    %v375 = vshrl.u32 %v374, 7
    %v376 = vsub.s32 %v373, %v375
    %v377 = vrot.slane %v363, %v376
    %v378 = vcombine.high %v370, %v370
    %v379 = vcombine.high %v377, %v377
    %v380 = vcombine.high %v359, %v359
    %v382 = vunpack.c.l.s4 1983009808
    %v383 = vunpack.c.0.s8 %v382
    %v384 = vlaneseq
    %v385 = vshrl.u32 %v384, 7
    %v386 = vsub.s32 %v383, %v385
    %v387 = vrot.slane %v359, %v386
    %v389 = vunpack.c.l.s4 1983009808
    %v390 = vunpack.c.0.s8 %v389
    %v391 = vlaneseq
    %v392 = vshrl.u32 %v391, 7
    %v393 = vsub.s32 %v390, %v392
    %v394 = vrot.slane %v380, %v393
    %v395 = vcombine.high %v387, %v387
    %v396 = vcombine.high %v394, %v394
    %v405 = vpack.c.bf16 %v370, %v370
    %v406 = vpack.c.bf16 %v378, %v378
    %v407 = vpack.c.bf16 %v377, %v377
    %v408 = vpack.c.bf16 %v379, %v379
    %v409 = vpack.c.bf16 %v387, %v387
    %v410 = vpack.c.bf16 %v395, %v395
    %v411 = vpack.c.bf16 %v394, %v394
    %v412 = vpack.c.bf16 %v396, %v396
    %v413 = vld [vmem:[#allocation17] sm:$0x1]
    %v415 = vlaneseq
    %v416 = vshrl.u32 %v415, 7
    %v417 = vsub.s32 0, %v416
    %v418 = vrot.slane %v413, %v417
    %v548 = vunpack.c.l.b16 %v164
    %v549 = vunpack.c.l.b16 %v165
    %v550 = vunpack.c.l.b16 %v166
    %v551 = vunpack.c.l.b16 %v167
    %v552 = vunpack.c.l.b16 %v168
    %v553 = vunpack.c.l.b16 %v169
    %v554 = vunpack.c.l.b16 %v170
    %v555 = vunpack.c.l.b16 %v171
    %v556 = vunpack.c.l.b16 %v172
    %v557 = vunpack.c.l.b16 %v173
    %v558 = vunpack.c.l.b16 %v174
    %v559 = vunpack.c.l.b16 %v175
    %v560 = vunpack.c.l.b16 %v176
    %v561 = vunpack.c.l.b16 %v177
    %v562 = vunpack.c.l.b16 %v178
    %v563 = vunpack.c.l.b16 %v179
    %v564 = vunpack.c.l.b16 %v180
    %v565 = vunpack.c.l.b16 %v181
    %v566 = vunpack.c.l.b16 %v182
    %v567 = vunpack.c.l.b16 %v183
    %v568 = vunpack.c.l.b16 %v184
    %v569 = vunpack.c.l.b16 %v185
    %v570 = vunpack.c.l.b16 %v186
    %v571 = vunpack.c.l.b16 %v187
    %v572 = vunpack.c.l.b16 %v188
    %v573 = vunpack.c.l.b16 %v189
    %v574 = vunpack.c.l.b16 %v190
    %v575 = vunpack.c.l.b16 %v191
    %v576 = vunpack.c.l.b16 %v192
    %v577 = vunpack.c.l.b16 %v193
    %v578 = vunpack.c.l.b16 %v194
    %v579 = vunpack.c.l.b16 %v195
    %v580 = vunpack.c.l.b16 %v196
    %v581 = vunpack.c.l.b16 %v197
    %v582 = vunpack.c.l.b16 %v198
    %v583 = vunpack.c.l.b16 %v199
    %v584 = vunpack.c.l.b16 %v200
    %v585 = vunpack.c.l.b16 %v201
    %v586 = vunpack.c.l.b16 %v202
    %v587 = vunpack.c.l.b16 %v203
    %v588 = vunpack.c.l.b16 %v204
    %v589 = vunpack.c.l.b16 %v205
    %v590 = vunpack.c.l.b16 %v206
    %v591 = vunpack.c.l.b16 %v207
    %v592 = vunpack.c.l.b16 %v208
    %v593 = vunpack.c.l.b16 %v209
    %v594 = vunpack.c.l.b16 %v210
    %v595 = vunpack.c.l.b16 %v211
    %v596 = vunpack.c.l.b16 %v212
    %v597 = vunpack.c.l.b16 %v213
    %v598 = vunpack.c.l.b16 %v214
    %v599 = vunpack.c.l.b16 %v215
    %v600 = vunpack.c.l.b16 %v216
    %v601 = vunpack.c.l.b16 %v217
    %v602 = vunpack.c.l.b16 %v218
    %v603 = vunpack.c.l.b16 %v219
    %v604 = vunpack.c.l.b16 %v220
    %v605 = vunpack.c.l.b16 %v221
    %v606 = vunpack.c.l.b16 %v222
    %v607 = vunpack.c.l.b16 %v223
    %v608 = vunpack.c.l.b16 %v224
    %v609 = vunpack.c.l.b16 %v225
    %v610 = vunpack.c.l.b16 %v226
    %v611 = vunpack.c.l.b16 %v227
    %v612 = vunpack.c.l.b16 %v228
    %v613 = vunpack.c.l.b16 %v229
    %v614 = vunpack.c.l.b16 %v230
    %v615 = vunpack.c.l.b16 %v231
    %v616 = vunpack.c.l.b16 %v232
    %v617 = vunpack.c.l.b16 %v233
    %v618 = vunpack.c.l.b16 %v234
    %v619 = vunpack.c.l.b16 %v235
    %v620 = vunpack.c.l.b16 %v236
    %v621 = vunpack.c.l.b16 %v237
    %v622 = vunpack.c.l.b16 %v238
    %v623 = vunpack.c.l.b16 %v239
    %v624 = vunpack.c.l.b16 %v240
    %v625 = vunpack.c.l.b16 %v241
    %v626 = vunpack.c.l.b16 %v242
    %v627 = vunpack.c.l.b16 %v243
    %v628 = vunpack.c.l.b16 %v244
    %v629 = vunpack.c.l.b16 %v245
    %v630 = vunpack.c.l.b16 %v246
    %v631 = vunpack.c.l.b16 %v247
    %v632 = vunpack.c.l.b16 %v248
    %v633 = vunpack.c.l.b16 %v249
    %v634 = vunpack.c.l.b16 %v250
    %v635 = vunpack.c.l.b16 %v251
    %v636 = vunpack.c.l.b16 %v252
    %v637 = vunpack.c.l.b16 %v253
    %v638 = vunpack.c.l.b16 %v254
    %v639 = vunpack.c.l.b16 %v255
    %v640 = vunpack.c.l.b16 %v256
    %v641 = vunpack.c.l.b16 %v257
    %v642 = vunpack.c.l.b16 %v258
    %v643 = vunpack.c.l.b16 %v259
    %v644 = vunpack.c.l.b16 %v260
    %v645 = vunpack.c.l.b16 %v261
    %v646 = vunpack.c.l.b16 %v262
    %v647 = vunpack.c.l.b16 %v263
    %v648 = vunpack.c.l.b16 %v264
    %v649 = vunpack.c.l.b16 %v265
    %v650 = vunpack.c.l.b16 %v266
    %v651 = vunpack.c.l.b16 %v267
    %v652 = vunpack.c.l.b16 %v268
    %v653 = vunpack.c.l.b16 %v269
    %v654 = vunpack.c.l.b16 %v270
    %v655 = vunpack.c.l.b16 %v271
    %v656 = vunpack.c.l.b16 %v272
    %v657 = vunpack.c.l.b16 %v273
    %v658 = vunpack.c.l.b16 %v274
    %v659 = vunpack.c.l.b16 %v275
    %v660 = vunpack.c.l.b16 %v276
    %v661 = vunpack.c.l.b16 %v277
    %v662 = vunpack.c.l.b16 %v278
    %v663 = vunpack.c.l.b16 %v279
    %v664 = vunpack.c.l.b16 %v280
    %v665 = vunpack.c.l.b16 %v281
    %v666 = vunpack.c.l.b16 %v282
    %v667 = vunpack.c.l.b16 %v283
    %v668 = vunpack.c.l.b16 %v284
    %v669 = vunpack.c.l.b16 %v285
    %v670 = vunpack.c.l.b16 %v286
    %v671 = vunpack.c.l.b16 %v287
    %v672 = vunpack.c.l.b16 %v288
    %v673 = vunpack.c.l.b16 %v289
    %v674 = vunpack.c.l.b16 %v290
    %v675 = vunpack.c.l.b16 %v291
    %v676 = vpack.c.b16 %v549, %v548
    %v677 = vpack.c.b16 %v551, %v550
    %v678 = vpack.c.b16 %v553, %v552
    %v679 = vpack.c.b16 %v555, %v554
    %v680 = vpack.c.b16 %v557, %v556
    %v681 = vpack.c.b16 %v559, %v558
    %v682 = vpack.c.b16 %v561, %v560
    %v683 = vpack.c.b16 %v563, %v562
    %v684 = vpack.c.b16 %v565, %v564
    %v685 = vpack.c.b16 %v567, %v566
    %v686 = vpack.c.b16 %v569, %v568
    %v687 = vpack.c.b16 %v571, %v570
    %v688 = vpack.c.b16 %v573, %v572
    %v689 = vpack.c.b16 %v575, %v574
    %v690 = vpack.c.b16 %v577, %v576
    %v691 = vpack.c.b16 %v579, %v578
    %v692 = vpack.c.b16 %v581, %v580
    %v693 = vpack.c.b16 %v583, %v582
    %v694 = vpack.c.b16 %v585, %v584
    %v695 = vpack.c.b16 %v587, %v586
    %v696 = vpack.c.b16 %v589, %v588
    %v697 = vpack.c.b16 %v591, %v590
    %v698 = vpack.c.b16 %v593, %v592
    %v699 = vpack.c.b16 %v595, %v594
    %v700 = vpack.c.b16 %v597, %v596
    %v701 = vpack.c.b16 %v599, %v598
    %v702 = vpack.c.b16 %v601, %v600
    %v703 = vpack.c.b16 %v603, %v602
    %v704 = vpack.c.b16 %v605, %v604
    %v705 = vpack.c.b16 %v607, %v606
    %v706 = vpack.c.b16 %v609, %v608
    %v707 = vpack.c.b16 %v611, %v610
    %v708 = vpack.c.b16 %v613, %v612
    %v709 = vpack.c.b16 %v615, %v614
    %v710 = vpack.c.b16 %v617, %v616
    %v711 = vpack.c.b16 %v619, %v618
    %v712 = vpack.c.b16 %v621, %v620
    %v713 = vpack.c.b16 %v623, %v622
    %v714 = vpack.c.b16 %v625, %v624
    %v715 = vpack.c.b16 %v627, %v626
    %v716 = vpack.c.b16 %v629, %v628
    %v717 = vpack.c.b16 %v631, %v630
    %v718 = vpack.c.b16 %v633, %v632
    %v719 = vpack.c.b16 %v635, %v634
    %v720 = vpack.c.b16 %v637, %v636
    %v721 = vpack.c.b16 %v639, %v638
    %v722 = vpack.c.b16 %v641, %v640
    %v723 = vpack.c.b16 %v643, %v642
    %v724 = vpack.c.b16 %v645, %v644
    %v725 = vpack.c.b16 %v647, %v646
    %v726 = vpack.c.b16 %v649, %v648
    %v727 = vpack.c.b16 %v651, %v650
    %v728 = vpack.c.b16 %v653, %v652
    %v729 = vpack.c.b16 %v655, %v654
    %v730 = vpack.c.b16 %v657, %v656
    %v731 = vpack.c.b16 %v659, %v658
    %v732 = vpack.c.b16 %v661, %v660
    %v733 = vpack.c.b16 %v663, %v662
    %v734 = vpack.c.b16 %v665, %v664
    %v735 = vpack.c.b16 %v667, %v666
    %v736 = vpack.c.b16 %v669, %v668
    %v737 = vpack.c.b16 %v671, %v670
    %v738 = vpack.c.b16 %v673, %v672
    %v739 = vpack.c.b16 %v675, %v674
    %804 = vmatprep.subr.bf16.mxu0 0
    %805 = vmatpush1.bf16.msra.mxu0 %v676
    %806 = vmatprep.subr.bf16.mxu0 0
    %807 = vmatpush1.bf16.msra.mxu0 %v677
    %808 = vmatprep.subr.bf16.mxu0 0
    %809 = vmatpush1.bf16.msra.mxu0 %v678
    %810 = vmatprep.subr.bf16.mxu0 0
    %811 = vmatpush1.bf16.msra.mxu0 %v679
    %812 = vmatprep.subr.bf16.mxu0 0
    %813 = vmatpush1.bf16.msra.mxu0 %v680
    %814 = vmatprep.subr.bf16.mxu0 0
    %815 = vmatpush1.bf16.msra.mxu0 %v681
    %816 = vmatprep.subr.bf16.mxu0 0
    %817 = vmatpush1.bf16.msra.mxu0 %v682
    %818 = vmatprep.subr.bf16.mxu0 0
    %819 = vmatpush1.bf16.msra.mxu0 %v683
    %820 = vmatprep.subr.bf16.mxu0 0
    %821 = vmatpush1.bf16.msra.mxu0 %v684
    %822 = vmatprep.subr.bf16.mxu0 0
    %823 = vmatpush1.bf16.msra.mxu0 %v685
    %824 = vmatprep.subr.bf16.mxu0 0
    %825 = vmatpush1.bf16.msra.mxu0 %v686
    %826 = vmatprep.subr.bf16.mxu0 0
    %827 = vmatpush1.bf16.msra.mxu0 %v687
    %828 = vmatprep.subr.bf16.mxu0 0
    %829 = vmatpush1.bf16.msra.mxu0 %v688
    %830 = vmatprep.subr.bf16.mxu0 0
    %831 = vmatpush1.bf16.msra.mxu0 %v689
    %832 = vmatprep.subr.bf16.mxu0 0
    %833 = vmatpush1.bf16.msra.mxu0 %v690
    %834 = vmatprep.subr.bf16.mxu0 0
    %835 = vmatpush1.bf16.msra.mxu0 %v691
    %836 = vmatprep.mubr.bf16.mxu0 %v406
    %837 = vmatmul.mubr.bf16.gmra.mrb[0].mxu0 %v405
    %v838 = vpop.f32.mrb[0].mxu0
    %v839 = vadd.f32 %v418, %v838
    %v840 = vpop.f32.mrb[0].mxu0
    %v841 = vpop.f32.mrb[0].mxu0
    %v842 = vpop.f32.mrb[0].mxu0
    %843 = vdwg.mxu0
    %844 = vmatprep.subr.bf16.mxu0 0
    %845 = vmatpush1.bf16.msra.mxu0 %v692
    %846 = vmatprep.subr.bf16.mxu0 0
    %847 = vmatpush1.bf16.msra.mxu0 %v693
    %848 = vmatprep.subr.bf16.mxu0 0
    %849 = vmatpush1.bf16.msra.mxu0 %v694
    %850 = vmatprep.subr.bf16.mxu0 0
    %851 = vmatpush1.bf16.msra.mxu0 %v695
    %852 = vmatprep.subr.bf16.mxu0 0
    %853 = vmatpush1.bf16.msra.mxu0 %v696
    %854 = vmatprep.subr.bf16.mxu0 0
    %855 = vmatpush1.bf16.msra.mxu0 %v697
    %856 = vmatprep.subr.bf16.mxu0 0
    %857 = vmatpush1.bf16.msra.mxu0 %v698
    %858 = vmatprep.subr.bf16.mxu0 0
    %859 = vmatpush1.bf16.msra.mxu0 %v699
    %860 = vmatprep.subr.bf16.mxu0 0
    %861 = vmatpush1.bf16.msra.mxu0 %v700
    %862 = vmatprep.subr.bf16.mxu0 0
    %863 = vmatpush1.bf16.msra.mxu0 %v701
    %864 = vmatprep.subr.bf16.mxu0 0
    %865 = vmatpush1.bf16.msra.mxu0 %v702
    %866 = vmatprep.subr.bf16.mxu0 0
    %867 = vmatpush1.bf16.msra.mxu0 %v703
    %868 = vmatprep.subr.bf16.mxu0 0
    %869 = vmatpush1.bf16.msra.mxu0 %v704
    %870 = vmatprep.subr.bf16.mxu0 0
    %871 = vmatpush1.bf16.msra.mxu0 %v705
    %872 = vmatprep.subr.bf16.mxu0 0
    %873 = vmatpush1.bf16.msra.mxu0 %v706
    %874 = vmatprep.subr.bf16.mxu0 0
    %875 = vmatpush1.bf16.msra.mxu0 %v707
    %876 = vmatprep.mubr.bf16.mxu0 %v408
    %877 = vmatmul.mubr.bf16.gmra.mrb[0].mxu0 %v407
    %v878 = vpop.f32.mrb[0].mxu0
    %v879 = vadd.f32 %v839, %v878
    %v880 = vpop.f32.mrb[0].mxu0
    %v881 = vpop.f32.mrb[0].mxu0
    %v882 = vpop.f32.mrb[0].mxu0
    %883 = vdwg.mxu0
    %884 = vmatprep.subr.bf16.mxu0 0
    %885 = vmatpush1.bf16.msra.mxu0 %v708
    %886 = vmatprep.subr.bf16.mxu0 0
    %887 = vmatpush1.bf16.msra.mxu0 %v709
    %888 = vmatprep.subr.bf16.mxu0 0
    %889 = vmatpush1.bf16.msra.mxu0 %v710
    %890 = vmatprep.subr.bf16.mxu0 0
    %891 = vmatpush1.bf16.msra.mxu0 %v711
    %892 = vmatprep.subr.bf16.mxu0 0
    %893 = vmatpush1.bf16.msra.mxu0 %v712
    %894 = vmatprep.subr.bf16.mxu0 0
    %895 = vmatpush1.bf16.msra.mxu0 %v713
    %896 = vmatprep.subr.bf16.mxu0 0
    %897 = vmatpush1.bf16.msra.mxu0 %v714
    %898 = vmatprep.subr.bf16.mxu0 0
    %899 = vmatpush1.bf16.msra.mxu0 %v715
    %900 = vmatprep.subr.bf16.mxu0 0
    %901 = vmatpush1.bf16.msra.mxu0 %v716
    %902 = vmatprep.subr.bf16.mxu0 0
    %903 = vmatpush1.bf16.msra.mxu0 %v717
    %904 = vmatprep.subr.bf16.mxu0 0
    %905 = vmatpush1.bf16.msra.mxu0 %v718
    %906 = vmatprep.subr.bf16.mxu0 0
    %907 = vmatpush1.bf16.msra.mxu0 %v719
    %908 = vmatprep.subr.bf16.mxu0 0
    %909 = vmatpush1.bf16.msra.mxu0 %v720
    %910 = vmatprep.subr.bf16.mxu0 0
    %911 = vmatpush1.bf16.msra.mxu0 %v721
    %912 = vmatprep.subr.bf16.mxu0 0
    %913 = vmatpush1.bf16.msra.mxu0 %v722
    %914 = vmatprep.subr.bf16.mxu0 0
    %915 = vmatpush1.bf16.msra.mxu0 %v723
    %916 = vmatprep.mubr.bf16.mxu0 %v410
    %917 = vmatmul.mubr.bf16.gmra.mrb[0].mxu0 %v409
    %v918 = vpop.f32.mrb[0].mxu0
    %v919 = vadd.f32 %v879, %v918
    %v920 = vpop.f32.mrb[0].mxu0
    %v921 = vpop.f32.mrb[0].mxu0
    %v922 = vpop.f32.mrb[0].mxu0
    %923 = vdwg.mxu0
    %924 = vmatprep.subr.bf16.mxu0 0
    %925 = vmatpush1.bf16.msra.mxu0 %v724
    %926 = vmatprep.subr.bf16.mxu0 0
    %927 = vmatpush1.bf16.msra.mxu0 %v725
    %928 = vmatprep.subr.bf16.mxu0 0
    %929 = vmatpush1.bf16.msra.mxu0 %v726
    %930 = vmatprep.subr.bf16.mxu0 0
    %931 = vmatpush1.bf16.msra.mxu0 %v727
    %932 = vmatprep.subr.bf16.mxu0 0
    %933 = vmatpush1.bf16.msra.mxu0 %v728
    %934 = vmatprep.subr.bf16.mxu0 0
    %935 = vmatpush1.bf16.msra.mxu0 %v729
    %936 = vmatprep.subr.bf16.mxu0 0
    %937 = vmatpush1.bf16.msra.mxu0 %v730
    %938 = vmatprep.subr.bf16.mxu0 0
    %939 = vmatpush1.bf16.msra.mxu0 %v731
    %940 = vmatprep.subr.bf16.mxu0 0
    %941 = vmatpush1.bf16.msra.mxu0 %v732
    %942 = vmatprep.subr.bf16.mxu0 0
    %943 = vmatpush1.bf16.msra.mxu0 %v733
    %944 = vmatprep.subr.bf16.mxu0 0
    %945 = vmatpush1.bf16.msra.mxu0 %v734
    %946 = vmatprep.subr.bf16.mxu0 0
    %947 = vmatpush1.bf16.msra.mxu0 %v735
    %948 = vmatprep.subr.bf16.mxu0 0
    %949 = vmatpush1.bf16.msra.mxu0 %v736
    %950 = vmatprep.subr.bf16.mxu0 0
    %951 = vmatpush1.bf16.msra.mxu0 %v737
    %952 = vmatprep.subr.bf16.mxu0 0
    %953 = vmatpush1.bf16.msra.mxu0 %v738
    %954 = vmatprep.subr.bf16.mxu0 0
    %955 = vmatpush1.bf16.msra.mxu0 %v739
    %956 = vmatprep.mubr.bf16.mxu0 %v412
    %957 = vmatmul.mubr.bf16.gmra.mrb[0].mxu0 %v411
    %v958 = vpop.f32.mrb[0].mxu0
    %v959 = vadd.f32 %v919, %v958
    %v960 = vpop.f32.mrb[0].mxu0
    %v961 = vpop.f32.mrb[0].mxu0
    %v962 = vpop.f32.mrb[0].mxu0
    %963 = vdwg.mxu0
    %v964 = vadd.f32 %v959, %v356
    %v965 = vtanh.pop %v964
    %v966 = vadd.f32 %v959, %v357
    %v967 = vtanh.pop %v966
    %v968 = vmul.f32 %v965, 1.5
    %v969 = vmul.f32 %v967, 0.5
    %v970 = vsub.f32 %v968, %v969
    %v971 = vpack.c.bf16 %v970, %v970
    %v1036 = vunpack.c.l.b16 %v292
    %v1037 = vunpack.c.h.b16 %v292
    %v1038 = vunpack.c.l.b16 %v293
    %v1039 = vunpack.c.h.b16 %v293
    %v1040 = vunpack.c.l.b16 %v294
    %v1041 = vunpack.c.h.b16 %v294
    %v1042 = vunpack.c.l.b16 %v295
    %v1043 = vunpack.c.h.b16 %v295
    %v1044 = vunpack.c.l.b16 %v296
    %v1045 = vunpack.c.h.b16 %v296
    %v1046 = vunpack.c.l.b16 %v297
    %v1047 = vunpack.c.h.b16 %v297
    %v1048 = vunpack.c.l.b16 %v298
    %v1049 = vunpack.c.h.b16 %v298
    %v1050 = vunpack.c.l.b16 %v299
    %v1051 = vunpack.c.h.b16 %v299
    %v1052 = vunpack.c.l.b16 %v300
    %v1053 = vunpack.c.h.b16 %v300
    %v1054 = vunpack.c.l.b16 %v301
    %v1055 = vunpack.c.h.b16 %v301
    %v1056 = vunpack.c.l.b16 %v302
    %v1057 = vunpack.c.h.b16 %v302
    %v1058 = vunpack.c.l.b16 %v303
    %v1059 = vunpack.c.h.b16 %v303
    %v1060 = vunpack.c.l.b16 %v304
    %v1061 = vunpack.c.h.b16 %v304
    %v1062 = vunpack.c.l.b16 %v305
    %v1063 = vunpack.c.h.b16 %v305
    %v1064 = vunpack.c.l.b16 %v306
    %v1065 = vunpack.c.h.b16 %v306
    %v1066 = vunpack.c.l.b16 %v307
    %v1067 = vunpack.c.h.b16 %v307
    %v1068 = vunpack.c.l.b16 %v308
    %v1069 = vunpack.c.h.b16 %v308
    %v1070 = vunpack.c.l.b16 %v309
    %v1071 = vunpack.c.h.b16 %v309
    %v1072 = vunpack.c.l.b16 %v310
    %v1073 = vunpack.c.h.b16 %v310
    %v1074 = vunpack.c.l.b16 %v311
    %v1075 = vunpack.c.h.b16 %v311
    %v1076 = vunpack.c.l.b16 %v312
    %v1077 = vunpack.c.h.b16 %v312
    %v1078 = vunpack.c.l.b16 %v313
    %v1079 = vunpack.c.h.b16 %v313
    %v1080 = vunpack.c.l.b16 %v314
    %v1081 = vunpack.c.h.b16 %v314
    %v1082 = vunpack.c.l.b16 %v315
    %v1083 = vunpack.c.h.b16 %v315
    %v1084 = vunpack.c.l.b16 %v316
    %v1085 = vunpack.c.h.b16 %v316
    %v1086 = vunpack.c.l.b16 %v317
    %v1087 = vunpack.c.h.b16 %v317
    %v1088 = vunpack.c.l.b16 %v318
    %v1089 = vunpack.c.h.b16 %v318
    %v1090 = vunpack.c.l.b16 %v319
    %v1091 = vunpack.c.h.b16 %v319
    %v1092 = vunpack.c.l.b16 %v320
    %v1093 = vunpack.c.h.b16 %v320
    %v1094 = vunpack.c.l.b16 %v321
    %v1095 = vunpack.c.h.b16 %v321
    %v1096 = vunpack.c.l.b16 %v322
    %v1097 = vunpack.c.h.b16 %v322
    %v1098 = vunpack.c.l.b16 %v323
    %v1099 = vunpack.c.h.b16 %v323
    %v1100 = vunpack.c.l.b16 %v324
    %v1101 = vunpack.c.h.b16 %v324
    %v1102 = vunpack.c.l.b16 %v325
    %v1103 = vunpack.c.h.b16 %v325
    %v1104 = vunpack.c.l.b16 %v326
    %v1105 = vunpack.c.h.b16 %v326
    %v1106 = vunpack.c.l.b16 %v327
    %v1107 = vunpack.c.h.b16 %v327
    %v1108 = vunpack.c.l.b16 %v328
    %v1109 = vunpack.c.h.b16 %v328
    %v1110 = vunpack.c.l.b16 %v329
    %v1111 = vunpack.c.h.b16 %v329
    %v1112 = vunpack.c.l.b16 %v330
    %v1113 = vunpack.c.h.b16 %v330
    %v1114 = vunpack.c.l.b16 %v331
    %v1115 = vunpack.c.h.b16 %v331
    %v1116 = vunpack.c.l.b16 %v332
    %v1117 = vunpack.c.h.b16 %v332
    %v1118 = vunpack.c.l.b16 %v333
    %v1119 = vunpack.c.h.b16 %v333
    %v1120 = vunpack.c.l.b16 %v334
    %v1121 = vunpack.c.h.b16 %v334
    %v1122 = vunpack.c.l.b16 %v335
    %v1123 = vunpack.c.h.b16 %v335
    %v1124 = vunpack.c.l.b16 %v336
    %v1125 = vunpack.c.h.b16 %v336
    %v1126 = vunpack.c.l.b16 %v337
    %v1127 = vunpack.c.h.b16 %v337
    %v1128 = vunpack.c.l.b16 %v338
    %v1129 = vunpack.c.h.b16 %v338
    %v1130 = vunpack.c.l.b16 %v339
    %v1131 = vunpack.c.h.b16 %v339
    %v1132 = vunpack.c.l.b16 %v340
    %v1133 = vunpack.c.h.b16 %v340
    %v1134 = vunpack.c.l.b16 %v341
    %v1135 = vunpack.c.h.b16 %v341
    %v1136 = vunpack.c.l.b16 %v342
    %v1137 = vunpack.c.h.b16 %v342
    %v1138 = vunpack.c.l.b16 %v343
    %v1139 = vunpack.c.h.b16 %v343
    %v1140 = vunpack.c.l.b16 %v344
    %v1141 = vunpack.c.h.b16 %v344
    %v1142 = vunpack.c.l.b16 %v345
    %v1143 = vunpack.c.h.b16 %v345
    %v1144 = vunpack.c.l.b16 %v346
    %v1145 = vunpack.c.h.b16 %v346
    %v1146 = vunpack.c.l.b16 %v347
    %v1147 = vunpack.c.h.b16 %v347
    %v1148 = vunpack.c.l.b16 %v348
    %v1149 = vunpack.c.h.b16 %v348
    %v1150 = vunpack.c.l.b16 %v349
    %v1151 = vunpack.c.h.b16 %v349
    %v1152 = vunpack.c.l.b16 %v350
    %v1153 = vunpack.c.h.b16 %v350
    %v1154 = vunpack.c.l.b16 %v351
    %v1155 = vunpack.c.h.b16 %v351
    %v1156 = vunpack.c.l.b16 %v352
    %v1157 = vunpack.c.h.b16 %v352
    %v1158 = vunpack.c.l.b16 %v353
    %v1159 = vunpack.c.h.b16 %v353
    %v1160 = vunpack.c.l.b16 %v354
    %v1161 = vunpack.c.h.b16 %v354
    %v1162 = vunpack.c.l.b16 %v355
    %v1163 = vunpack.c.h.b16 %v355
    %v1164 = vpack.c.b16 %v1044, %v1036
    %v1165 = vpack.c.b16 %v1045, %v1037
    %v1166 = vpack.c.b16 %v1046, %v1038
    %v1167 = vpack.c.b16 %v1047, %v1039
    %v1168 = vpack.c.b16 %v1048, %v1040
    %v1169 = vpack.c.b16 %v1049, %v1041
    %v1170 = vpack.c.b16 %v1050, %v1042
    %v1171 = vpack.c.b16 %v1051, %v1043
    %v1172 = vpack.c.b16 %v1060, %v1052
    %v1173 = vpack.c.b16 %v1061, %v1053
    %v1174 = vpack.c.b16 %v1062, %v1054
    %v1175 = vpack.c.b16 %v1063, %v1055
    %v1176 = vpack.c.b16 %v1064, %v1056
    %v1177 = vpack.c.b16 %v1065, %v1057
    %v1178 = vpack.c.b16 %v1066, %v1058
    %v1179 = vpack.c.b16 %v1067, %v1059
    %v1180 = vpack.c.b16 %v1076, %v1068
    %v1181 = vpack.c.b16 %v1077, %v1069
    %v1182 = vpack.c.b16 %v1078, %v1070
    %v1183 = vpack.c.b16 %v1079, %v1071
    %v1184 = vpack.c.b16 %v1080, %v1072
    %v1185 = vpack.c.b16 %v1081, %v1073
    %v1186 = vpack.c.b16 %v1082, %v1074
    %v1187 = vpack.c.b16 %v1083, %v1075
    %v1188 = vpack.c.b16 %v1092, %v1084
    %v1189 = vpack.c.b16 %v1093, %v1085
    %v1190 = vpack.c.b16 %v1094, %v1086
    %v1191 = vpack.c.b16 %v1095, %v1087
    %v1192 = vpack.c.b16 %v1096, %v1088
    %v1193 = vpack.c.b16 %v1097, %v1089
    %v1194 = vpack.c.b16 %v1098, %v1090
    %v1195 = vpack.c.b16 %v1099, %v1091
    %v1196 = vpack.c.b16 %v1108, %v1100
    %v1197 = vpack.c.b16 %v1109, %v1101
    %v1198 = vpack.c.b16 %v1110, %v1102
    %v1199 = vpack.c.b16 %v1111, %v1103
    %v1200 = vpack.c.b16 %v1112, %v1104
    %v1201 = vpack.c.b16 %v1113, %v1105
    %v1202 = vpack.c.b16 %v1114, %v1106
    %v1203 = vpack.c.b16 %v1115, %v1107
    %v1204 = vpack.c.b16 %v1124, %v1116
    %v1205 = vpack.c.b16 %v1125, %v1117
    %v1206 = vpack.c.b16 %v1126, %v1118
    %v1207 = vpack.c.b16 %v1127, %v1119
    %v1208 = vpack.c.b16 %v1128, %v1120
    %v1209 = vpack.c.b16 %v1129, %v1121
    %v1210 = vpack.c.b16 %v1130, %v1122
    %v1211 = vpack.c.b16 %v1131, %v1123
    %v1212 = vpack.c.b16 %v1140, %v1132
    %v1213 = vpack.c.b16 %v1141, %v1133
    %v1214 = vpack.c.b16 %v1142, %v1134
    %v1215 = vpack.c.b16 %v1143, %v1135
    %v1216 = vpack.c.b16 %v1144, %v1136
    %v1217 = vpack.c.b16 %v1145, %v1137
    %v1218 = vpack.c.b16 %v1146, %v1138
    %v1219 = vpack.c.b16 %v1147, %v1139
    %v1220 = vpack.c.b16 %v1156, %v1148
    %v1221 = vpack.c.b16 %v1157, %v1149
    %v1222 = vpack.c.b16 %v1158, %v1150
    %v1223 = vpack.c.b16 %v1159, %v1151
    %v1224 = vpack.c.b16 %v1160, %v1152
    %v1225 = vpack.c.b16 %v1161, %v1153
    %v1226 = vpack.c.b16 %v1162, %v1154
    %v1227 = vpack.c.b16 %v1163, %v1155
    %1292 = vmatprep.subr.bf16.mxu0 %v1165
    %1293 = vmatpush1.bf16.msra.mxu0 %v1164
    %1294 = vmatprep.subr.bf16.mxu0 %v1173
    %1295 = vmatpush1.bf16.msra.mxu0 %v1172
    %1296 = vmatprep.subr.bf16.mxu0 %v1181
    %1297 = vmatpush1.bf16.msra.mxu0 %v1180
    %1298 = vmatprep.subr.bf16.mxu0 %v1189
    %1299 = vmatpush1.bf16.msra.mxu0 %v1188
    %1300 = vmatprep.subr.bf16.mxu0 %v1197
    %1301 = vmatpush1.bf16.msra.mxu0 %v1196
    %1302 = vmatprep.subr.bf16.mxu0 %v1205
    %1303 = vmatpush1.bf16.msra.mxu0 %v1204
    %1304 = vmatprep.subr.bf16.mxu0 %v1213
    %1305 = vmatpush1.bf16.msra.mxu0 %v1212
    %1306 = vmatprep.subr.bf16.mxu0 %v1221
    %1307 = vmatpush1.bf16.msra.mxu0 %v1220
    %1308 = vmatprep.subr.bf16.mxu0 0
    %1309 = vmatpush1.bf16.msra.mxu0 0
    %1310 = vmatprep.subr.bf16.mxu0 0
    %1311 = vmatpush1.bf16.msra.mxu0 0
    %1312 = vmatprep.subr.bf16.mxu0 0
    %1313 = vmatpush1.bf16.msra.mxu0 0
    %1314 = vmatprep.subr.bf16.mxu0 0
    %1315 = vmatpush1.bf16.msra.mxu0 0
    %1316 = vmatprep.subr.bf16.mxu0 0
    %1317 = vmatpush1.bf16.msra.mxu0 0
    %1318 = vmatprep.subr.bf16.mxu0 0
    %1319 = vmatpush1.bf16.msra.mxu0 0
    %1320 = vmatprep.subr.bf16.mxu0 0
    %1321 = vmatpush1.bf16.msra.mxu0 0
    %1322 = vmatprep.subr.bf16.mxu0 0
    %1323 = vmatpush1.bf16.msra.mxu0 0
    %1324 = vmatprep.mubr.bf16.mxu0 0
    %1325 = vmatmul.mubr.bf16.gmra.mrb[0].mxu0 %v971
    %v1326 = vpop.f32.mrb[0].mxu0
    %v1327 = vadd.f32 0.0, %v1326
    %v1328 = vpop.f32.mrb[0].mxu0
    %v1329 = vadd.f32 0.0, %v1328
    %v1330 = vpop.f32.mrb[0].mxu0
    %v1331 = vpop.f32.mrb[0].mxu0
    %1332 = vdwg.mxu0
    %1333 = vmatprep.subr.bf16.mxu0 %v1167
    %1334 = vmatpush1.bf16.msra.mxu0 %v1166
    %1335 = vmatprep.subr.bf16.mxu0 %v1175
    %1336 = vmatpush1.bf16.msra.mxu0 %v1174
    %1337 = vmatprep.subr.bf16.mxu0 %v1183
    %1338 = vmatpush1.bf16.msra.mxu0 %v1182
    %1339 = vmatprep.subr.bf16.mxu0 %v1191
    %1340 = vmatpush1.bf16.msra.mxu0 %v1190
    %1341 = vmatprep.subr.bf16.mxu0 %v1199
    %1342 = vmatpush1.bf16.msra.mxu0 %v1198
    %1343 = vmatprep.subr.bf16.mxu0 %v1207
    %1344 = vmatpush1.bf16.msra.mxu0 %v1206
    %1345 = vmatprep.subr.bf16.mxu0 %v1215
    %1346 = vmatpush1.bf16.msra.mxu0 %v1214
    %1347 = vmatprep.subr.bf16.mxu0 %v1223
    %1348 = vmatpush1.bf16.msra.mxu0 %v1222
    %1349 = vmatprep.subr.bf16.mxu0 0
    %1350 = vmatpush1.bf16.msra.mxu0 0
    %1351 = vmatprep.subr.bf16.mxu0 0
    %1352 = vmatpush1.bf16.msra.mxu0 0
    %1353 = vmatprep.subr.bf16.mxu0 0
    %1354 = vmatpush1.bf16.msra.mxu0 0
    %1355 = vmatprep.subr.bf16.mxu0 0
    %1356 = vmatpush1.bf16.msra.mxu0 0
    %1357 = vmatprep.subr.bf16.mxu0 0
    %1358 = vmatpush1.bf16.msra.mxu0 0
    %1359 = vmatprep.subr.bf16.mxu0 0
    %1360 = vmatpush1.bf16.msra.mxu0 0
    %1361 = vmatprep.subr.bf16.mxu0 0
    %1362 = vmatpush1.bf16.msra.mxu0 0
    %1363 = vmatprep.subr.bf16.mxu0 0
    %1364 = vmatpush1.bf16.msra.mxu0 0
    %1365 = vmatprep.mubr.bf16.mxu0 0
    %1366 = vmatmul.mubr.bf16.gmra.mrb[0].mxu0 %v971
    %v1367 = vpop.f32.mrb[0].mxu0
    %v1368 = vadd.f32 0.0, %v1367
    %v1369 = vpop.f32.mrb[0].mxu0
    %v1370 = vadd.f32 0.0, %v1369
    %v1371 = vpop.f32.mrb[0].mxu0
    %v1372 = vpop.f32.mrb[0].mxu0
    %1373 = vdwg.mxu0
    %1374 = vmatprep.subr.bf16.mxu0 %v1169
    %1375 = vmatpush1.bf16.msra.mxu0 %v1168
    %1376 = vmatprep.subr.bf16.mxu0 %v1177
    %1377 = vmatpush1.bf16.msra.mxu0 %v1176
    %1378 = vmatprep.subr.bf16.mxu0 %v1185
    %1379 = vmatpush1.bf16.msra.mxu0 %v1184
    %1380 = vmatprep.subr.bf16.mxu0 %v1193
    %1381 = vmatpush1.bf16.msra.mxu0 %v1192
    %1382 = vmatprep.subr.bf16.mxu0 %v1201
    %1383 = vmatpush1.bf16.msra.mxu0 %v1200
    %1384 = vmatprep.subr.bf16.mxu0 %v1209
    %1385 = vmatpush1.bf16.msra.mxu0 %v1208
    %1386 = vmatprep.subr.bf16.mxu0 %v1217
    %1387 = vmatpush1.bf16.msra.mxu0 %v1216
    %1388 = vmatprep.subr.bf16.mxu0 %v1225
    %1389 = vmatpush1.bf16.msra.mxu0 %v1224
    %1390 = vmatprep.subr.bf16.mxu0 0
    %1391 = vmatpush1.bf16.msra.mxu0 0
    %1392 = vmatprep.subr.bf16.mxu0 0
    %1393 = vmatpush1.bf16.msra.mxu0 0
    %1394 = vmatprep.subr.bf16.mxu0 0
    %1395 = vmatpush1.bf16.msra.mxu0 0
    %1396 = vmatprep.subr.bf16.mxu0 0
    %1397 = vmatpush1.bf16.msra.mxu0 0
    %1398 = vmatprep.subr.bf16.mxu0 0
    %1399 = vmatpush1.bf16.msra.mxu0 0
    %1400 = vmatprep.subr.bf16.mxu0 0
    %1401 = vmatpush1.bf16.msra.mxu0 0
    %1402 = vmatprep.subr.bf16.mxu0 0
    %1403 = vmatpush1.bf16.msra.mxu0 0
    %1404 = vmatprep.subr.bf16.mxu0 0
    %1405 = vmatpush1.bf16.msra.mxu0 0
    %1406 = vmatprep.mubr.bf16.mxu0 0
    %1407 = vmatmul.mubr.bf16.gmra.mrb[0].mxu0 %v971
    %v1408 = vpop.f32.mrb[0].mxu0
    %v1409 = vadd.f32 0.0, %v1408
    %v1410 = vpop.f32.mrb[0].mxu0
    %v1411 = vadd.f32 0.0, %v1410
    %v1412 = vpop.f32.mrb[0].mxu0
    %v1413 = vpop.f32.mrb[0].mxu0
    %1414 = vdwg.mxu0
    %1415 = vmatprep.subr.bf16.mxu0 %v1171
    %1416 = vmatpush1.bf16.msra.mxu0 %v1170
    %1417 = vmatprep.subr.bf16.mxu0 %v1179
    %1418 = vmatpush1.bf16.msra.mxu0 %v1178
    %1419 = vmatprep.subr.bf16.mxu0 %v1187
    %1420 = vmatpush1.bf16.msra.mxu0 %v1186
    %1421 = vmatprep.subr.bf16.mxu0 %v1195
    %1422 = vmatpush1.bf16.msra.mxu0 %v1194
    %1423 = vmatprep.subr.bf16.mxu0 %v1203
    %1424 = vmatpush1.bf16.msra.mxu0 %v1202
    %1425 = vmatprep.subr.bf16.mxu0 %v1211
    %1426 = vmatpush1.bf16.msra.mxu0 %v1210
    %1427 = vmatprep.subr.bf16.mxu0 %v1219
    %1428 = vmatpush1.bf16.msra.mxu0 %v1218
    %1429 = vmatprep.subr.bf16.mxu0 %v1227
    %1430 = vmatpush1.bf16.msra.mxu0 %v1226
    %1431 = vmatprep.subr.bf16.mxu0 0
    %1432 = vmatpush1.bf16.msra.mxu0 0
    %1433 = vmatprep.subr.bf16.mxu0 0
    %1434 = vmatpush1.bf16.msra.mxu0 0
    %1435 = vmatprep.subr.bf16.mxu0 0
    %1436 = vmatpush1.bf16.msra.mxu0 0
    %1437 = vmatprep.subr.bf16.mxu0 0
    %1438 = vmatpush1.bf16.msra.mxu0 0
    %1439 = vmatprep.subr.bf16.mxu0 0
    %1440 = vmatpush1.bf16.msra.mxu0 0
    %1441 = vmatprep.subr.bf16.mxu0 0
    %1442 = vmatpush1.bf16.msra.mxu0 0
    %1443 = vmatprep.subr.bf16.mxu0 0
    %1444 = vmatpush1.bf16.msra.mxu0 0
    %1445 = vmatprep.subr.bf16.mxu0 0
    %1446 = vmatpush1.bf16.msra.mxu0 0
    %1447 = vmatprep.mubr.bf16.mxu0 0
    %1448 = vmatmul.mubr.bf16.gmra.mrb[0].mxu0 %v971
    %v1449 = vpop.f32.mrb[0].mxu0
    %v1450 = vadd.f32 0.0, %v1449
    %v1451 = vpop.f32.mrb[0].mxu0
    %v1452 = vadd.f32 0.0, %v1451
    %v1453 = vpop.f32.mrb[0].mxu0
    %v1454 = vpop.f32.mrb[0].mxu0
    %1455 = vdwg.mxu0
    %s1456 = sld [smem:[#allocation3 + %s360]]
    %v1457 = vstv %s1456
    %v1458 = vmul.f32 %v1457, %v358
    %v1459 = vmul.f32 %v1457, %v359
    %s1460 = sld [smem:[#allocation7 + %s360]]
    %v1461 = vstv %s1460
    %v1462 = vmul.f32 %v1461, %v1327
    %v1463 = vmul.f32 %v1461, %v1329
    %v1464 = vmul.f32 %v1461, %v1368
    %v1465 = vmul.f32 %v1461, %v1370
    %v1466 = vmul.f32 %v1461, %v1409
    %v1467 = vmul.f32 %v1461, %v1411
    %v1468 = vmul.f32 %v1461, %v1450
    %v1469 = vmul.f32 %v1461, %v1452
    %v1478 = vcombine.low %v1462, %v1463
    %v1479 = vcombine.low %v1464, %v1465
    %v1481 = vunpack.c.l.s4 1983009808
    %v1482 = vunpack.c.0.s8 %v1481
    %v1483 = vlaneseq
    %v1484 = vshrl.u32 %v1483, 7
    %v1485 = vsub.s32 %v1482, %v1484
    %v1486 = vrot.slane %v1478, %v1485
    %v1488 = vunpack.c.l.s4 1983009808
    %v1489 = vunpack.c.0.s8 %v1488
    %v1490 = vlaneseq
    %v1491 = vshrl.u32 %v1490, 7
    %v1492 = vsub.s32 %v1489, %v1491
    %v1493 = vrot.slane %v1479, %v1492
    %v1494 = vcombine.low %v1486, %v1493
    %v1495 = vcombine.low %v1466, %v1467
    %v1496 = vcombine.low %v1468, %v1469
    %v1498 = vunpack.c.l.s4 1983009808
    %v1499 = vunpack.c.0.s8 %v1498
    %v1500 = vlaneseq
    %v1501 = vshrl.u32 %v1500, 7
    %v1502 = vsub.s32 %v1499, %v1501
    %v1503 = vrot.slane %v1495, %v1502
    %v1505 = vunpack.c.l.s4 1983009808
    %v1506 = vunpack.c.0.s8 %v1505
    %v1507 = vlaneseq
    %v1508 = vshrl.u32 %v1507, 7
    %v1509 = vsub.s32 %v1506, %v1508
    %v1510 = vrot.slane %v1496, %v1509
    %v1511 = vcombine.low %v1503, %v1510
    %v1514 = vsub.f32 %v1458, %v1494
    %v1515 = vsub.f32 %v1459, %v1511
    %v1516 = vld [vmem:[#allocation19] sm:$0xff]
    %v1517 = vunpack.c.l.bf16 %v1516
    %v1518 = vunpack.c.h.bf16 %v1516
    %s1519 = sld [smem:[#allocation9 + %s360]]
    %v1520 = vstv %s1519
    %v1521 = vmul.f32 %v1520, %v1517
    %v1522 = vmul.f32 %v1520, %v1518
    %v1523 = vadd.f32 %v1514, %v1521
    %v1524 = vadd.f32 %v1515, %v1522
    %s1525 = sadd.s32 %s360, 1
    %v1528 = vcombine.high %v1523, %v1523
    %v1530 = vunpack.c.l.s4 1983009808
    %v1531 = vunpack.c.0.s8 %v1530
    %v1532 = vlaneseq
    %v1533 = vshrl.u32 %v1532, 7
    %v1534 = vsub.s32 %v1531, %v1533
    %v1535 = vrot.slane %v1523, %v1534
    %v1537 = vunpack.c.l.s4 1983009808
    %v1538 = vunpack.c.0.s8 %v1537
    %v1539 = vlaneseq
    %v1540 = vshrl.u32 %v1539, 7
    %v1541 = vsub.s32 %v1538, %v1540
    %v1542 = vrot.slane %v1528, %v1541
    %v1543 = vcombine.high %v1535, %v1535
    %v1544 = vcombine.high %v1542, %v1542
    %v1545 = vcombine.high %v1524, %v1524
    %v1547 = vunpack.c.l.s4 1983009808
    %v1548 = vunpack.c.0.s8 %v1547
    %v1549 = vlaneseq
    %v1550 = vshrl.u32 %v1549, 7
    %v1551 = vsub.s32 %v1548, %v1550
    %v1552 = vrot.slane %v1524, %v1551
    %v1554 = vunpack.c.l.s4 1983009808
    %v1555 = vunpack.c.0.s8 %v1554
    %v1556 = vlaneseq
    %v1557 = vshrl.u32 %v1556, 7
    %v1558 = vsub.s32 %v1555, %v1557
    %v1559 = vrot.slane %v1545, %v1558
    %v1560 = vcombine.high %v1552, %v1552
    %v1561 = vcombine.high %v1559, %v1559
    %v1570 = vpack.c.bf16 %v1535, %v1535
    %v1571 = vpack.c.bf16 %v1543, %v1543
    %v1572 = vpack.c.bf16 %v1542, %v1542
    %v1573 = vpack.c.bf16 %v1544, %v1544
    %v1574 = vpack.c.bf16 %v1552, %v1552
    %v1575 = vpack.c.bf16 %v1560, %v1560
    %v1576 = vpack.c.bf16 %v1559, %v1559
    %v1577 = vpack.c.bf16 %v1561, %v1561
    %s1578 = scalar_lea.vmem [#allocation17], 1
    %v1579 = vld [vmem:[%s1578] sm:$0x1]
    %v1581 = vlaneseq
    %v1582 = vshrl.u32 %v1581, 7
    %v1583 = vsub.s32 0, %v1582
    %v1584 = vrot.slane %v1579, %v1583
    %1586 = vmatprep.subr.bf16.mxu0 0
    %1587 = vmatpush1.bf16.msra.mxu0 %v676
    %1588 = vmatprep.subr.bf16.mxu0 0
    %1589 = vmatpush1.bf16.msra.mxu0 %v677
    %1590 = vmatprep.subr.bf16.mxu0 0
    %1591 = vmatpush1.bf16.msra.mxu0 %v678
    %1592 = vmatprep.subr.bf16.mxu0 0
    %1593 = vmatpush1.bf16.msra.mxu0 %v679
    %1594 = vmatprep.subr.bf16.mxu0 0
    %1595 = vmatpush1.bf16.msra.mxu0 %v680
    %1596 = vmatprep.subr.bf16.mxu0 0
    %1597 = vmatpush1.bf16.msra.mxu0 %v681
    %1598 = vmatprep.subr.bf16.mxu0 0
    %1599 = vmatpush1.bf16.msra.mxu0 %v682
    %1600 = vmatprep.subr.bf16.mxu0 0
    %1601 = vmatpush1.bf16.msra.mxu0 %v683
    %1602 = vmatprep.subr.bf16.mxu0 0
    %1603 = vmatpush1.bf16.msra.mxu0 %v684
    %1604 = vmatprep.subr.bf16.mxu0 0
    %1605 = vmatpush1.bf16.msra.mxu0 %v685
    %1606 = vmatprep.subr.bf16.mxu0 0
    %1607 = vmatpush1.bf16.msra.mxu0 %v686
    %1608 = vmatprep.subr.bf16.mxu0 0
    %1609 = vmatpush1.bf16.msra.mxu0 %v687
    %1610 = vmatprep.subr.bf16.mxu0 0
    %1611 = vmatpush1.bf16.msra.mxu0 %v688
    %1612 = vmatprep.subr.bf16.mxu0 0
    %1613 = vmatpush1.bf16.msra.mxu0 %v689
    %1614 = vmatprep.subr.bf16.mxu0 0
    %1615 = vmatpush1.bf16.msra.mxu0 %v690
    %1616 = vmatprep.subr.bf16.mxu0 0
    %1617 = vmatpush1.bf16.msra.mxu0 %v691
    %1618 = vmatprep.mubr.bf16.mxu0 %v1571
    %1619 = vmatmul.mubr.bf16.gmra.mrb[0].mxu0 %v1570
    %v1620 = vpop.f32.mrb[0].mxu0
    %v1621 = vadd.f32 %v1584, %v1620
    %v1622 = vpop.f32.mrb[0].mxu0
    %v1623 = vpop.f32.mrb[0].mxu0
    %v1624 = vpop.f32.mrb[0].mxu0
    %1625 = vdwg.mxu0
    %1626 = vmatprep.subr.bf16.mxu0 0
    %1627 = vmatpush1.bf16.msra.mxu0 %v692
    %1628 = vmatprep.subr.bf16.mxu0 0
    %1629 = vmatpush1.bf16.msra.mxu0 %v693
    %1630 = vmatprep.subr.bf16.mxu0 0
    %1631 = vmatpush1.bf16.msra.mxu0 %v694
    %1632 = vmatprep.subr.bf16.mxu0 0
    %1633 = vmatpush1.bf16.msra.mxu0 %v695
    %1634 = vmatprep.subr.bf16.mxu0 0
    %1635 = vmatpush1.bf16.msra.mxu0 %v696
    %1636 = vmatprep.subr.bf16.mxu0 0
    %1637 = vmatpush1.bf16.msra.mxu0 %v697
    %1638 = vmatprep.subr.bf16.mxu0 0
    %1639 = vmatpush1.bf16.msra.mxu0 %v698
    %1640 = vmatprep.subr.bf16.mxu0 0
    %1641 = vmatpush1.bf16.msra.mxu0 %v699
    %1642 = vmatprep.subr.bf16.mxu0 0
    %1643 = vmatpush1.bf16.msra.mxu0 %v700
    %1644 = vmatprep.subr.bf16.mxu0 0
    %1645 = vmatpush1.bf16.msra.mxu0 %v701
    %1646 = vmatprep.subr.bf16.mxu0 0
    %1647 = vmatpush1.bf16.msra.mxu0 %v702
    %1648 = vmatprep.subr.bf16.mxu0 0
    %1649 = vmatpush1.bf16.msra.mxu0 %v703
    %1650 = vmatprep.subr.bf16.mxu0 0
    %1651 = vmatpush1.bf16.msra.mxu0 %v704
    %1652 = vmatprep.subr.bf16.mxu0 0
    %1653 = vmatpush1.bf16.msra.mxu0 %v705
    %1654 = vmatprep.subr.bf16.mxu0 0
    %1655 = vmatpush1.bf16.msra.mxu0 %v706
    %1656 = vmatprep.subr.bf16.mxu0 0
    %1657 = vmatpush1.bf16.msra.mxu0 %v707
    %1658 = vmatprep.mubr.bf16.mxu0 %v1573
    %1659 = vmatmul.mubr.bf16.gmra.mrb[0].mxu0 %v1572
    %v1660 = vpop.f32.mrb[0].mxu0
    %v1661 = vadd.f32 %v1621, %v1660
    %v1662 = vpop.f32.mrb[0].mxu0
    %v1663 = vpop.f32.mrb[0].mxu0
    %v1664 = vpop.f32.mrb[0].mxu0
    %1665 = vdwg.mxu0
    %1666 = vmatprep.subr.bf16.mxu0 0
    %1667 = vmatpush1.bf16.msra.mxu0 %v708
    %1668 = vmatprep.subr.bf16.mxu0 0
    %1669 = vmatpush1.bf16.msra.mxu0 %v709
    %1670 = vmatprep.subr.bf16.mxu0 0
    %1671 = vmatpush1.bf16.msra.mxu0 %v710
    %1672 = vmatprep.subr.bf16.mxu0 0
    %1673 = vmatpush1.bf16.msra.mxu0 %v711
    %1674 = vmatprep.subr.bf16.mxu0 0
    %1675 = vmatpush1.bf16.msra.mxu0 %v712
    %1676 = vmatprep.subr.bf16.mxu0 0
    %1677 = vmatpush1.bf16.msra.mxu0 %v713
    %1678 = vmatprep.subr.bf16.mxu0 0
    %1679 = vmatpush1.bf16.msra.mxu0 %v714
    %1680 = vmatprep.subr.bf16.mxu0 0
    %1681 = vmatpush1.bf16.msra.mxu0 %v715
    %1682 = vmatprep.subr.bf16.mxu0 0
    %1683 = vmatpush1.bf16.msra.mxu0 %v716
    %1684 = vmatprep.subr.bf16.mxu0 0
    %1685 = vmatpush1.bf16.msra.mxu0 %v717
    %1686 = vmatprep.subr.bf16.mxu0 0
    %1687 = vmatpush1.bf16.msra.mxu0 %v718
    %1688 = vmatprep.subr.bf16.mxu0 0
    %1689 = vmatpush1.bf16.msra.mxu0 %v719
    %1690 = vmatprep.subr.bf16.mxu0 0
    %1691 = vmatpush1.bf16.msra.mxu0 %v720
    %1692 = vmatprep.subr.bf16.mxu0 0
    %1693 = vmatpush1.bf16.msra.mxu0 %v721
    %1694 = vmatprep.subr.bf16.mxu0 0
    %1695 = vmatpush1.bf16.msra.mxu0 %v722
    %1696 = vmatprep.subr.bf16.mxu0 0
    %1697 = vmatpush1.bf16.msra.mxu0 %v723
    %1698 = vmatprep.mubr.bf16.mxu0 %v1575
    %1699 = vmatmul.mubr.bf16.gmra.mrb[0].mxu0 %v1574
    %v1700 = vpop.f32.mrb[0].mxu0
    %v1701 = vadd.f32 %v1661, %v1700
    %v1702 = vpop.f32.mrb[0].mxu0
    %v1703 = vpop.f32.mrb[0].mxu0
    %v1704 = vpop.f32.mrb[0].mxu0
    %1705 = vdwg.mxu0
    %1706 = vmatprep.subr.bf16.mxu0 0
    %1707 = vmatpush1.bf16.msra.mxu0 %v724
    %1708 = vmatprep.subr.bf16.mxu0 0
    %1709 = vmatpush1.bf16.msra.mxu0 %v725
    %1710 = vmatprep.subr.bf16.mxu0 0
    %1711 = vmatpush1.bf16.msra.mxu0 %v726
    %1712 = vmatprep.subr.bf16.mxu0 0
    %1713 = vmatpush1.bf16.msra.mxu0 %v727
    %1714 = vmatprep.subr.bf16.mxu0 0
    %1715 = vmatpush1.bf16.msra.mxu0 %v728
    %1716 = vmatprep.subr.bf16.mxu0 0
    %1717 = vmatpush1.bf16.msra.mxu0 %v729
    %1718 = vmatprep.subr.bf16.mxu0 0
    %1719 = vmatpush1.bf16.msra.mxu0 %v730
    %1720 = vmatprep.subr.bf16.mxu0 0
    %1721 = vmatpush1.bf16.msra.mxu0 %v731
    %1722 = vmatprep.subr.bf16.mxu0 0
    %1723 = vmatpush1.bf16.msra.mxu0 %v732
    %1724 = vmatprep.subr.bf16.mxu0 0
    %1725 = vmatpush1.bf16.msra.mxu0 %v733
    %1726 = vmatprep.subr.bf16.mxu0 0
    %1727 = vmatpush1.bf16.msra.mxu0 %v734
    %1728 = vmatprep.subr.bf16.mxu0 0
    %1729 = vmatpush1.bf16.msra.mxu0 %v735
    %1730 = vmatprep.subr.bf16.mxu0 0
    %1731 = vmatpush1.bf16.msra.mxu0 %v736
    %1732 = vmatprep.subr.bf16.mxu0 0
    %1733 = vmatpush1.bf16.msra.mxu0 %v737
    %1734 = vmatprep.subr.bf16.mxu0 0
    %1735 = vmatpush1.bf16.msra.mxu0 %v738
    %1736 = vmatprep.subr.bf16.mxu0 0
    %1737 = vmatpush1.bf16.msra.mxu0 %v739
    %1738 = vmatprep.mubr.bf16.mxu0 %v1577
    %1739 = vmatmul.mubr.bf16.gmra.mrb[0].mxu0 %v1576
    %v1740 = vpop.f32.mrb[0].mxu0
    %v1741 = vadd.f32 %v1701, %v1740
    %v1742 = vpop.f32.mrb[0].mxu0
    %v1743 = vpop.f32.mrb[0].mxu0
    %v1744 = vpop.f32.mrb[0].mxu0
    %1745 = vdwg.mxu0
    %v1746 = vadd.f32 %v1741, %v356
    %v1747 = vtanh.pop %v1746
    %v1748 = vadd.f32 %v1741, %v357
    %v1749 = vtanh.pop %v1748
    %v1750 = vmul.f32 %v1747, 1.5
    %v1751 = vmul.f32 %v1749, 0.5
    %v1752 = vsub.f32 %v1750, %v1751
    %v1753 = vpack.c.bf16 %v1752, %v1752
    %1754 = vmatprep.subr.bf16.mxu0 %v1165
    %1755 = vmatpush1.bf16.msra.mxu0 %v1164
    %1756 = vmatprep.subr.bf16.mxu0 %v1173
    %1757 = vmatpush1.bf16.msra.mxu0 %v1172
    %1758 = vmatprep.subr.bf16.mxu0 %v1181
    %1759 = vmatpush1.bf16.msra.mxu0 %v1180
    %1760 = vmatprep.subr.bf16.mxu0 %v1189
    %1761 = vmatpush1.bf16.msra.mxu0 %v1188
    %1762 = vmatprep.subr.bf16.mxu0 %v1197
    %1763 = vmatpush1.bf16.msra.mxu0 %v1196
    %1764 = vmatprep.subr.bf16.mxu0 %v1205
    %1765 = vmatpush1.bf16.msra.mxu0 %v1204
    %1766 = vmatprep.subr.bf16.mxu0 %v1213
    %1767 = vmatpush1.bf16.msra.mxu0 %v1212
    %1768 = vmatprep.subr.bf16.mxu0 %v1221
    %1769 = vmatpush1.bf16.msra.mxu0 %v1220
    %1770 = vmatprep.subr.bf16.mxu0 0
    %1771 = vmatpush1.bf16.msra.mxu0 0
    %1772 = vmatprep.subr.bf16.mxu0 0
    %1773 = vmatpush1.bf16.msra.mxu0 0
    %1774 = vmatprep.subr.bf16.mxu0 0
    %1775 = vmatpush1.bf16.msra.mxu0 0
    %1776 = vmatprep.subr.bf16.mxu0 0
    %1777 = vmatpush1.bf16.msra.mxu0 0
    %1778 = vmatprep.subr.bf16.mxu0 0
    %1779 = vmatpush1.bf16.msra.mxu0 0
    %1780 = vmatprep.subr.bf16.mxu0 0
    %1781 = vmatpush1.bf16.msra.mxu0 0
    %1782 = vmatprep.subr.bf16.mxu0 0
    %1783 = vmatpush1.bf16.msra.mxu0 0
    %1784 = vmatprep.subr.bf16.mxu0 0
    %1785 = vmatpush1.bf16.msra.mxu0 0
    %1786 = vmatprep.mubr.bf16.mxu0 0
    %1787 = vmatmul.mubr.bf16.gmra.mrb[0].mxu0 %v1753
    %v1788 = vpop.f32.mrb[0].mxu0
    %v1789 = vadd.f32 0.0, %v1788
    %v1790 = vpop.f32.mrb[0].mxu0
    %v1791 = vadd.f32 0.0, %v1790
    %v1792 = vpop.f32.mrb[0].mxu0
    %v1793 = vpop.f32.mrb[0].mxu0
    %1794 = vdwg.mxu0
    %1795 = vmatprep.subr.bf16.mxu0 %v1167
    %1796 = vmatpush1.bf16.msra.mxu0 %v1166
    %1797 = vmatprep.subr.bf16.mxu0 %v1175
    %1798 = vmatpush1.bf16.msra.mxu0 %v1174
    %1799 = vmatprep.subr.bf16.mxu0 %v1183
    %1800 = vmatpush1.bf16.msra.mxu0 %v1182
    %1801 = vmatprep.subr.bf16.mxu0 %v1191
    %1802 = vmatpush1.bf16.msra.mxu0 %v1190
    %1803 = vmatprep.subr.bf16.mxu0 %v1199
    %1804 = vmatpush1.bf16.msra.mxu0 %v1198
    %1805 = vmatprep.subr.bf16.mxu0 %v1207
    %1806 = vmatpush1.bf16.msra.mxu0 %v1206
    %1807 = vmatprep.subr.bf16.mxu0 %v1215
    %1808 = vmatpush1.bf16.msra.mxu0 %v1214
    %1809 = vmatprep.subr.bf16.mxu0 %v1223
    %1810 = vmatpush1.bf16.msra.mxu0 %v1222
    %1811 = vmatprep.subr.bf16.mxu0 0
    %1812 = vmatpush1.bf16.msra.mxu0 0
    %1813 = vmatprep.subr.bf16.mxu0 0
    %1814 = vmatpush1.bf16.msra.mxu0 0
    %1815 = vmatprep.subr.bf16.mxu0 0
    %1816 = vmatpush1.bf16.msra.mxu0 0
    %1817 = vmatprep.subr.bf16.mxu0 0
    %1818 = vmatpush1.bf16.msra.mxu0 0
    %1819 = vmatprep.subr.bf16.mxu0 0
    %1820 = vmatpush1.bf16.msra.mxu0 0
    %1821 = vmatprep.subr.bf16.mxu0 0
    %1822 = vmatpush1.bf16.msra.mxu0 0
    %1823 = vmatprep.subr.bf16.mxu0 0
    %1824 = vmatpush1.bf16.msra.mxu0 0
    %1825 = vmatprep.subr.bf16.mxu0 0
    %1826 = vmatpush1.bf16.msra.mxu0 0
    %1827 = vmatprep.mubr.bf16.mxu0 0
    %1828 = vmatmul.mubr.bf16.gmra.mrb[0].mxu0 %v1753
    %v1829 = vpop.f32.mrb[0].mxu0
    %v1830 = vadd.f32 0.0, %v1829
    %v1831 = vpop.f32.mrb[0].mxu0
    %v1832 = vadd.f32 0.0, %v1831
    %v1833 = vpop.f32.mrb[0].mxu0
    %v1834 = vpop.f32.mrb[0].mxu0
    %1835 = vdwg.mxu0
    %1836 = vmatprep.subr.bf16.mxu0 %v1169
    %1837 = vmatpush1.bf16.msra.mxu0 %v1168
    %1838 = vmatprep.subr.bf16.mxu0 %v1177
    %1839 = vmatpush1.bf16.msra.mxu0 %v1176
    %1840 = vmatprep.subr.bf16.mxu0 %v1185
    %1841 = vmatpush1.bf16.msra.mxu0 %v1184
    %1842 = vmatprep.subr.bf16.mxu0 %v1193
    %1843 = vmatpush1.bf16.msra.mxu0 %v1192
    %1844 = vmatprep.subr.bf16.mxu0 %v1201
    %1845 = vmatpush1.bf16.msra.mxu0 %v1200
    %1846 = vmatprep.subr.bf16.mxu0 %v1209
    %1847 = vmatpush1.bf16.msra.mxu0 %v1208
    %1848 = vmatprep.subr.bf16.mxu0 %v1217
    %1849 = vmatpush1.bf16.msra.mxu0 %v1216
    %1850 = vmatprep.subr.bf16.mxu0 %v1225
    %1851 = vmatpush1.bf16.msra.mxu0 %v1224
    %1852 = vmatprep.subr.bf16.mxu0 0
    %1853 = vmatpush1.bf16.msra.mxu0 0
    %1854 = vmatprep.subr.bf16.mxu0 0
    %1855 = vmatpush1.bf16.msra.mxu0 0
    %1856 = vmatprep.subr.bf16.mxu0 0
    %1857 = vmatpush1.bf16.msra.mxu0 0
    %1858 = vmatprep.subr.bf16.mxu0 0
    %1859 = vmatpush1.bf16.msra.mxu0 0
    %1860 = vmatprep.subr.bf16.mxu0 0
    %1861 = vmatpush1.bf16.msra.mxu0 0
    %1862 = vmatprep.subr.bf16.mxu0 0
    %1863 = vmatpush1.bf16.msra.mxu0 0
    %1864 = vmatprep.subr.bf16.mxu0 0
    %1865 = vmatpush1.bf16.msra.mxu0 0
    %1866 = vmatprep.subr.bf16.mxu0 0
    %1867 = vmatpush1.bf16.msra.mxu0 0
    %1868 = vmatprep.mubr.bf16.mxu0 0
    %1869 = vmatmul.mubr.bf16.gmra.mrb[0].mxu0 %v1753
    %v1870 = vpop.f32.mrb[0].mxu0
    %v1871 = vadd.f32 0.0, %v1870
    %v1872 = vpop.f32.mrb[0].mxu0
    %v1873 = vadd.f32 0.0, %v1872
    %v1874 = vpop.f32.mrb[0].mxu0
    %v1875 = vpop.f32.mrb[0].mxu0
    %1876 = vdwg.mxu0
    %1877 = vmatprep.subr.bf16.mxu0 %v1171
    %1878 = vmatpush1.bf16.msra.mxu0 %v1170
    %1879 = vmatprep.subr.bf16.mxu0 %v1179
    %1880 = vmatpush1.bf16.msra.mxu0 %v1178
    %1881 = vmatprep.subr.bf16.mxu0 %v1187
    %1882 = vmatpush1.bf16.msra.mxu0 %v1186
    %1883 = vmatprep.subr.bf16.mxu0 %v1195
    %1884 = vmatpush1.bf16.msra.mxu0 %v1194
    %1885 = vmatprep.subr.bf16.mxu0 %v1203
    %1886 = vmatpush1.bf16.msra.mxu0 %v1202
    %1887 = vmatprep.subr.bf16.mxu0 %v1211
    %1888 = vmatpush1.bf16.msra.mxu0 %v1210
    %1889 = vmatprep.subr.bf16.mxu0 %v1219
    %1890 = vmatpush1.bf16.msra.mxu0 %v1218
    %1891 = vmatprep.subr.bf16.mxu0 %v1227
    %1892 = vmatpush1.bf16.msra.mxu0 %v1226
    %1893 = vmatprep.subr.bf16.mxu0 0
    %1894 = vmatpush1.bf16.msra.mxu0 0
    %1895 = vmatprep.subr.bf16.mxu0 0
    %1896 = vmatpush1.bf16.msra.mxu0 0
    %1897 = vmatprep.subr.bf16.mxu0 0
    %1898 = vmatpush1.bf16.msra.mxu0 0
    %1899 = vmatprep.subr.bf16.mxu0 0
    %1900 = vmatpush1.bf16.msra.mxu0 0
    %1901 = vmatprep.subr.bf16.mxu0 0
    %1902 = vmatpush1.bf16.msra.mxu0 0
    %1903 = vmatprep.subr.bf16.mxu0 0
    %1904 = vmatpush1.bf16.msra.mxu0 0
    %1905 = vmatprep.subr.bf16.mxu0 0
    %1906 = vmatpush1.bf16.msra.mxu0 0
    %1907 = vmatprep.subr.bf16.mxu0 0
    %1908 = vmatpush1.bf16.msra.mxu0 0
    %1909 = vmatprep.mubr.bf16.mxu0 0
    %1910 = vmatmul.mubr.bf16.gmra.mrb[0].mxu0 %v1753
    %v1911 = vpop.f32.mrb[0].mxu0
    %v1912 = vadd.f32 0.0, %v1911
    %v1913 = vpop.f32.mrb[0].mxu0
    %v1914 = vadd.f32 0.0, %v1913
    %v1915 = vpop.f32.mrb[0].mxu0
    %v1916 = vpop.f32.mrb[0].mxu0
    %1917 = vdwg.mxu0
    %s1918 = sld [smem:[#allocation3 + %s1525]]
    %v1919 = vstv %s1918
    %v1920 = vmul.f32 %v1919, %v1523
    %v1921 = vmul.f32 %v1919, %v1524
    %s1922 = sld [smem:[#allocation7 + %s1525]]
    %v1923 = vstv %s1922
    %v1924 = vmul.f32 %v1923, %v1789
    %v1925 = vmul.f32 %v1923, %v1791
    %v1926 = vmul.f32 %v1923, %v1830
    %v1927 = vmul.f32 %v1923, %v1832
    %v1928 = vmul.f32 %v1923, %v1871
    %v1929 = vmul.f32 %v1923, %v1873
    %v1930 = vmul.f32 %v1923, %v1912
    %v1931 = vmul.f32 %v1923, %v1914
    %v1940 = vcombine.low %v1924, %v1925
    %v1941 = vcombine.low %v1926, %v1927
    %v1943 = vunpack.c.l.s4 1983009808
    %v1944 = vunpack.c.0.s8 %v1943
    %v1945 = vlaneseq
    %v1946 = vshrl.u32 %v1945, 7
    %v1947 = vsub.s32 %v1944, %v1946
    %v1948 = vrot.slane %v1940, %v1947
    %v1950 = vunpack.c.l.s4 1983009808
    %v1951 = vunpack.c.0.s8 %v1950
    %v1952 = vlaneseq
    %v1953 = vshrl.u32 %v1952, 7
    %v1954 = vsub.s32 %v1951, %v1953
    %v1955 = vrot.slane %v1941, %v1954
    %v1956 = vcombine.low %v1948, %v1955
    %v1957 = vcombine.low %v1928, %v1929
    %v1958 = vcombine.low %v1930, %v1931
    %v1960 = vunpack.c.l.s4 1983009808
    %v1961 = vunpack.c.0.s8 %v1960
    %v1962 = vlaneseq
    %v1963 = vshrl.u32 %v1962, 7
    %v1964 = vsub.s32 %v1961, %v1963
    %v1965 = vrot.slane %v1957, %v1964
    %v1967 = vunpack.c.l.s4 1983009808
    %v1968 = vunpack.c.0.s8 %v1967
    %v1969 = vlaneseq
    %v1970 = vshrl.u32 %v1969, 7
    %v1971 = vsub.s32 %v1968, %v1970
    %v1972 = vrot.slane %v1958, %v1971
    %v1973 = vcombine.low %v1965, %v1972
    %v1976 = vsub.f32 %v1920, %v1956
    %v1977 = vsub.f32 %v1921, %v1973
    %s1978 = scalar_lea.vmem [#allocation19], 8
    %v1979 = vld [vmem:[%s1978] sm:$0xff]
    %v1980 = vunpack.c.l.bf16 %v1979
    %v1981 = vunpack.c.h.bf16 %v1979
    %s1982 = sld [smem:[#allocation9 + %s1525]]
    %v1983 = vstv %s1982
    %v1984 = vmul.f32 %v1983, %v1980
    %v1985 = vmul.f32 %v1983, %v1981
    %v1986 = vadd.f32 %v1976, %v1984
    %v1987 = vadd.f32 %v1977, %v1985
    %s1988 = sadd.s32 %s360, 2
    %v1991 = vcombine.high %v1986, %v1986
    %v1993 = vunpack.c.l.s4 1983009808
    %v1994 = vunpack.c.0.s8 %v1993
    %v1995 = vlaneseq
    %v1996 = vshrl.u32 %v1995, 7
    %v1997 = vsub.s32 %v1994, %v1996
    %v1998 = vrot.slane %v1986, %v1997
    %v2000 = vunpack.c.l.s4 1983009808
    %v2001 = vunpack.c.0.s8 %v2000
    %v2002 = vlaneseq
    %v2003 = vshrl.u32 %v2002, 7
    %v2004 = vsub.s32 %v2001, %v2003
    %v2005 = vrot.slane %v1991, %v2004
    %v2006 = vcombine.high %v1998, %v1998
    %v2007 = vcombine.high %v2005, %v2005
    %v2008 = vcombine.high %v1987, %v1987
    %v2010 = vunpack.c.l.s4 1983009808
    %v2011 = vunpack.c.0.s8 %v2010
    %v2012 = vlaneseq
    %v2013 = vshrl.u32 %v2012, 7
    %v2014 = vsub.s32 %v2011, %v2013
    %v2015 = vrot.slane %v1987, %v2014
    %v2017 = vunpack.c.l.s4 1983009808
    %v2018 = vunpack.c.0.s8 %v2017
    %v2019 = vlaneseq
    %v2020 = vshrl.u32 %v2019, 7
    %v2021 = vsub.s32 %v2018, %v2020
    %v2022 = vrot.slane %v2008, %v2021
    %v2023 = vcombine.high %v2015, %v2015
    %v2024 = vcombine.high %v2022, %v2022
    %v2033 = vpack.c.bf16 %v1998, %v1998
    %v2034 = vpack.c.bf16 %v2006, %v2006
    %v2035 = vpack.c.bf16 %v2005, %v2005
    %v2036 = vpack.c.bf16 %v2007, %v2007
    %v2037 = vpack.c.bf16 %v2015, %v2015
    %v2038 = vpack.c.bf16 %v2023, %v2023
    %v2039 = vpack.c.bf16 %v2022, %v2022
    %v2040 = vpack.c.bf16 %v2024, %v2024
    %s2041 = scalar_lea.vmem [#allocation17], 2
    %v2042 = vld [vmem:[%s2041] sm:$0x1]
    %v2044 = vlaneseq
    %v2045 = vshrl.u32 %v2044, 7
    %v2046 = vsub.s32 0, %v2045
    %v2047 = vrot.slane %v2042, %v2046
    %2049 = vmatprep.subr.bf16.mxu0 0
    %2050 = vmatpush1.bf16.msra.mxu0 %v676
    %2051 = vmatprep.subr.bf16.mxu0 0
    %2052 = vmatpush1.bf16.msra.mxu0 %v677
    %2053 = vmatprep.subr.bf16.mxu0 0
    %2054 = vmatpush1.bf16.msra.mxu0 %v678
    %2055 = vmatprep.subr.bf16.mxu0 0
    %2056 = vmatpush1.bf16.msra.mxu0 %v679
    %2057 = vmatprep.subr.bf16.mxu0 0
    %2058 = vmatpush1.bf16.msra.mxu0 %v680
    %2059 = vmatprep.subr.bf16.mxu0 0
    %2060 = vmatpush1.bf16.msra.mxu0 %v681
    %2061 = vmatprep.subr.bf16.mxu0 0
    %2062 = vmatpush1.bf16.msra.mxu0 %v682
    %2063 = vmatprep.subr.bf16.mxu0 0
    %2064 = vmatpush1.bf16.msra.mxu0 %v683
    %2065 = vmatprep.subr.bf16.mxu0 0
    %2066 = vmatpush1.bf16.msra.mxu0 %v684
    %2067 = vmatprep.subr.bf16.mxu0 0
    %2068 = vmatpush1.bf16.msra.mxu0 %v685
    %2069 = vmatprep.subr.bf16.mxu0 0
    %2070 = vmatpush1.bf16.msra.mxu0 %v686
    %2071 = vmatprep.subr.bf16.mxu0 0
    %2072 = vmatpush1.bf16.msra.mxu0 %v687
    %2073 = vmatprep.subr.bf16.mxu0 0
    %2074 = vmatpush1.bf16.msra.mxu0 %v688
    %2075 = vmatprep.subr.bf16.mxu0 0
    %2076 = vmatpush1.bf16.msra.mxu0 %v689
    %2077 = vmatprep.subr.bf16.mxu0 0
    %2078 = vmatpush1.bf16.msra.mxu0 %v690
    %2079 = vmatprep.subr.bf16.mxu0 0
    %2080 = vmatpush1.bf16.msra.mxu0 %v691
    %2081 = vmatprep.mubr.bf16.mxu0 %v2034
    %2082 = vmatmul.mubr.bf16.gmra.mrb[0].mxu0 %v2033
    %v2083 = vpop.f32.mrb[0].mxu0
    %v2084 = vadd.f32 %v2047, %v2083
    %v2085 = vpop.f32.mrb[0].mxu0
    %v2086 = vpop.f32.mrb[0].mxu0
    %v2087 = vpop.f32.mrb[0].mxu0
    %2088 = vdwg.mxu0
    %2089 = vmatprep.subr.bf16.mxu0 0
    %2090 = vmatpush1.bf16.msra.mxu0 %v692
    %2091 = vmatprep.subr.bf16.mxu0 0
    %2092 = vmatpush1.bf16.msra.mxu0 %v693
    %2093 = vmatprep.subr.bf16.mxu0 0
    %2094 = vmatpush1.bf16.msra.mxu0 %v694
    %2095 = vmatprep.subr.bf16.mxu0 0
    %2096 = vmatpush1.bf16.msra.mxu0 %v695
    %2097 = vmatprep.subr.bf16.mxu0 0
    %2098 = vmatpush1.bf16.msra.mxu0 %v696
    %2099 = vmatprep.subr.bf16.mxu0 0
    %2100 = vmatpush1.bf16.msra.mxu0 %v697
    %2101 = vmatprep.subr.bf16.mxu0 0
    %2102 = vmatpush1.bf16.msra.mxu0 %v698
    %2103 = vmatprep.subr.bf16.mxu0 0
    %2104 = vmatpush1.bf16.msra.mxu0 %v699
    %2105 = vmatprep.subr.bf16.mxu0 0
    %2106 = vmatpush1.bf16.msra.mxu0 %v700
    %2107 = vmatprep.subr.bf16.mxu0 0
    %2108 = vmatpush1.bf16.msra.mxu0 %v701
    %2109 = vmatprep.subr.bf16.mxu0 0
    %2110 = vmatpush1.bf16.msra.mxu0 %v702
    %2111 = vmatprep.subr.bf16.mxu0 0
    %2112 = vmatpush1.bf16.msra.mxu0 %v703
    %2113 = vmatprep.subr.bf16.mxu0 0
    %2114 = vmatpush1.bf16.msra.mxu0 %v704
    %2115 = vmatprep.subr.bf16.mxu0 0
    %2116 = vmatpush1.bf16.msra.mxu0 %v705
    %2117 = vmatprep.subr.bf16.mxu0 0
    %2118 = vmatpush1.bf16.msra.mxu0 %v706
    %2119 = vmatprep.subr.bf16.mxu0 0
    %2120 = vmatpush1.bf16.msra.mxu0 %v707
    %2121 = vmatprep.mubr.bf16.mxu0 %v2036
    %2122 = vmatmul.mubr.bf16.gmra.mrb[0].mxu0 %v2035
    %v2123 = vpop.f32.mrb[0].mxu0
    %v2124 = vadd.f32 %v2084, %v2123
    %v2125 = vpop.f32.mrb[0].mxu0
    %v2126 = vpop.f32.mrb[0].mxu0
    %v2127 = vpop.f32.mrb[0].mxu0
    %2128 = vdwg.mxu0
    %2129 = vmatprep.subr.bf16.mxu0 0
    %2130 = vmatpush1.bf16.msra.mxu0 %v708
    %2131 = vmatprep.subr.bf16.mxu0 0
    %2132 = vmatpush1.bf16.msra.mxu0 %v709
    %2133 = vmatprep.subr.bf16.mxu0 0
    %2134 = vmatpush1.bf16.msra.mxu0 %v710
    %2135 = vmatprep.subr.bf16.mxu0 0
    %2136 = vmatpush1.bf16.msra.mxu0 %v711
    %2137 = vmatprep.subr.bf16.mxu0 0
    %2138 = vmatpush1.bf16.msra.mxu0 %v712
    %2139 = vmatprep.subr.bf16.mxu0 0
    %2140 = vmatpush1.bf16.msra.mxu0 %v713
    %2141 = vmatprep.subr.bf16.mxu0 0
    %2142 = vmatpush1.bf16.msra.mxu0 %v714
    %2143 = vmatprep.subr.bf16.mxu0 0
    %2144 = vmatpush1.bf16.msra.mxu0 %v715
    %2145 = vmatprep.subr.bf16.mxu0 0
    %2146 = vmatpush1.bf16.msra.mxu0 %v716
    %2147 = vmatprep.subr.bf16.mxu0 0
    %2148 = vmatpush1.bf16.msra.mxu0 %v717
    %2149 = vmatprep.subr.bf16.mxu0 0
    %2150 = vmatpush1.bf16.msra.mxu0 %v718
    %2151 = vmatprep.subr.bf16.mxu0 0
    %2152 = vmatpush1.bf16.msra.mxu0 %v719
    %2153 = vmatprep.subr.bf16.mxu0 0
    %2154 = vmatpush1.bf16.msra.mxu0 %v720
    %2155 = vmatprep.subr.bf16.mxu0 0
    %2156 = vmatpush1.bf16.msra.mxu0 %v721
    %2157 = vmatprep.subr.bf16.mxu0 0
    %2158 = vmatpush1.bf16.msra.mxu0 %v722
    %2159 = vmatprep.subr.bf16.mxu0 0
    %2160 = vmatpush1.bf16.msra.mxu0 %v723
    %2161 = vmatprep.mubr.bf16.mxu0 %v2038
    %2162 = vmatmul.mubr.bf16.gmra.mrb[0].mxu0 %v2037
    %v2163 = vpop.f32.mrb[0].mxu0
    %v2164 = vadd.f32 %v2124, %v2163
    %v2165 = vpop.f32.mrb[0].mxu0
    %v2166 = vpop.f32.mrb[0].mxu0
    %v2167 = vpop.f32.mrb[0].mxu0
    %2168 = vdwg.mxu0
    %2169 = vmatprep.subr.bf16.mxu0 0
    %2170 = vmatpush1.bf16.msra.mxu0 %v724
    %2171 = vmatprep.subr.bf16.mxu0 0
    %2172 = vmatpush1.bf16.msra.mxu0 %v725
    %2173 = vmatprep.subr.bf16.mxu0 0
    %2174 = vmatpush1.bf16.msra.mxu0 %v726
    %2175 = vmatprep.subr.bf16.mxu0 0
    %2176 = vmatpush1.bf16.msra.mxu0 %v727
    %2177 = vmatprep.subr.bf16.mxu0 0
    %2178 = vmatpush1.bf16.msra.mxu0 %v728
    %2179 = vmatprep.subr.bf16.mxu0 0
    %2180 = vmatpush1.bf16.msra.mxu0 %v729
    %2181 = vmatprep.subr.bf16.mxu0 0
    %2182 = vmatpush1.bf16.msra.mxu0 %v730
    %2183 = vmatprep.subr.bf16.mxu0 0
    %2184 = vmatpush1.bf16.msra.mxu0 %v731
    %2185 = vmatprep.subr.bf16.mxu0 0
    %2186 = vmatpush1.bf16.msra.mxu0 %v732
    %2187 = vmatprep.subr.bf16.mxu0 0
    %2188 = vmatpush1.bf16.msra.mxu0 %v733
    %2189 = vmatprep.subr.bf16.mxu0 0
    %2190 = vmatpush1.bf16.msra.mxu0 %v734
    %2191 = vmatprep.subr.bf16.mxu0 0
    %2192 = vmatpush1.bf16.msra.mxu0 %v735
    %2193 = vmatprep.subr.bf16.mxu0 0
    %2194 = vmatpush1.bf16.msra.mxu0 %v736
    %2195 = vmatprep.subr.bf16.mxu0 0
    %2196 = vmatpush1.bf16.msra.mxu0 %v737
    %2197 = vmatprep.subr.bf16.mxu0 0
    %2198 = vmatpush1.bf16.msra.mxu0 %v738
    %2199 = vmatprep.subr.bf16.mxu0 0
    %2200 = vmatpush1.bf16.msra.mxu0 %v739
    %2201 = vmatprep.mubr.bf16.mxu0 %v2040
    %2202 = vmatmul.mubr.bf16.gmra.mrb[0].mxu0 %v2039
    %v2203 = vpop.f32.mrb[0].mxu0
    %v2204 = vadd.f32 %v2164, %v2203
    %v2205 = vpop.f32.mrb[0].mxu0
    %v2206 = vpop.f32.mrb[0].mxu0
    %v2207 = vpop.f32.mrb[0].mxu0
    %2208 = vdwg.mxu0
    %v2209 = vadd.f32 %v2204, %v356
    %v2210 = vtanh.pop %v2209
    %v2211 = vadd.f32 %v2204, %v357
    %v2212 = vtanh.pop %v2211
    %v2213 = vmul.f32 %v2210, 1.5
    %v2214 = vmul.f32 %v2212, 0.5
    %v2215 = vsub.f32 %v2213, %v2214
    %v2216 = vpack.c.bf16 %v2215, %v2215
    %2217 = vmatprep.subr.bf16.mxu0 %v1165
    %2218 = vmatpush1.bf16.msra.mxu0 %v1164
    %2219 = vmatprep.subr.bf16.mxu0 %v1173
    %2220 = vmatpush1.bf16.msra.mxu0 %v1172
    %2221 = vmatprep.subr.bf16.mxu0 %v1181
    %2222 = vmatpush1.bf16.msra.mxu0 %v1180
    %2223 = vmatprep.subr.bf16.mxu0 %v1189
    %2224 = vmatpush1.bf16.msra.mxu0 %v1188
    %2225 = vmatprep.subr.bf16.mxu0 %v1197
    %2226 = vmatpush1.bf16.msra.mxu0 %v1196
    %2227 = vmatprep.subr.bf16.mxu0 %v1205
    %2228 = vmatpush1.bf16.msra.mxu0 %v1204
    %2229 = vmatprep.subr.bf16.mxu0 %v1213
    %2230 = vmatpush1.bf16.msra.mxu0 %v1212
    %2231 = vmatprep.subr.bf16.mxu0 %v1221
    %2232 = vmatpush1.bf16.msra.mxu0 %v1220
    %2233 = vmatprep.subr.bf16.mxu0 0
    %2234 = vmatpush1.bf16.msra.mxu0 0
    %2235 = vmatprep.subr.bf16.mxu0 0
    %2236 = vmatpush1.bf16.msra.mxu0 0
    %2237 = vmatprep.subr.bf16.mxu0 0
    %2238 = vmatpush1.bf16.msra.mxu0 0
    %2239 = vmatprep.subr.bf16.mxu0 0
    %2240 = vmatpush1.bf16.msra.mxu0 0
    %2241 = vmatprep.subr.bf16.mxu0 0
    %2242 = vmatpush1.bf16.msra.mxu0 0
    %2243 = vmatprep.subr.bf16.mxu0 0
    %2244 = vmatpush1.bf16.msra.mxu0 0
    %2245 = vmatprep.subr.bf16.mxu0 0
    %2246 = vmatpush1.bf16.msra.mxu0 0
    %2247 = vmatprep.subr.bf16.mxu0 0
    %2248 = vmatpush1.bf16.msra.mxu0 0
    %2249 = vmatprep.mubr.bf16.mxu0 0
    %2250 = vmatmul.mubr.bf16.gmra.mrb[0].mxu0 %v2216
    %v2251 = vpop.f32.mrb[0].mxu0
    %v2252 = vadd.f32 0.0, %v2251
    %v2253 = vpop.f32.mrb[0].mxu0
    %v2254 = vadd.f32 0.0, %v2253
    %v2255 = vpop.f32.mrb[0].mxu0
    %v2256 = vpop.f32.mrb[0].mxu0
    %2257 = vdwg.mxu0
    %2258 = vmatprep.subr.bf16.mxu0 %v1167
    %2259 = vmatpush1.bf16.msra.mxu0 %v1166
    %2260 = vmatprep.subr.bf16.mxu0 %v1175
    %2261 = vmatpush1.bf16.msra.mxu0 %v1174
    %2262 = vmatprep.subr.bf16.mxu0 %v1183
    %2263 = vmatpush1.bf16.msra.mxu0 %v1182
    %2264 = vmatprep.subr.bf16.mxu0 %v1191
    %2265 = vmatpush1.bf16.msra.mxu0 %v1190
    %2266 = vmatprep.subr.bf16.mxu0 %v1199
    %2267 = vmatpush1.bf16.msra.mxu0 %v1198
    %2268 = vmatprep.subr.bf16.mxu0 %v1207
    %2269 = vmatpush1.bf16.msra.mxu0 %v1206
    %2270 = vmatprep.subr.bf16.mxu0 %v1215
    %2271 = vmatpush1.bf16.msra.mxu0 %v1214
    %2272 = vmatprep.subr.bf16.mxu0 %v1223
    %2273 = vmatpush1.bf16.msra.mxu0 %v1222
    %2274 = vmatprep.subr.bf16.mxu0 0
    %2275 = vmatpush1.bf16.msra.mxu0 0
    %2276 = vmatprep.subr.bf16.mxu0 0
    %2277 = vmatpush1.bf16.msra.mxu0 0
    %2278 = vmatprep.subr.bf16.mxu0 0
    %2279 = vmatpush1.bf16.msra.mxu0 0
    %2280 = vmatprep.subr.bf16.mxu0 0
    %2281 = vmatpush1.bf16.msra.mxu0 0
    %2282 = vmatprep.subr.bf16.mxu0 0
    %2283 = vmatpush1.bf16.msra.mxu0 0
    %2284 = vmatprep.subr.bf16.mxu0 0
    %2285 = vmatpush1.bf16.msra.mxu0 0
    %2286 = vmatprep.subr.bf16.mxu0 0
    %2287 = vmatpush1.bf16.msra.mxu0 0
    %2288 = vmatprep.subr.bf16.mxu0 0
    %2289 = vmatpush1.bf16.msra.mxu0 0
    %2290 = vmatprep.mubr.bf16.mxu0 0
    %2291 = vmatmul.mubr.bf16.gmra.mrb[0].mxu0 %v2216
    %v2292 = vpop.f32.mrb[0].mxu0
    %v2293 = vadd.f32 0.0, %v2292
    %v2294 = vpop.f32.mrb[0].mxu0
    %v2295 = vadd.f32 0.0, %v2294
    %v2296 = vpop.f32.mrb[0].mxu0
    %v2297 = vpop.f32.mrb[0].mxu0
    %2298 = vdwg.mxu0
    %2299 = vmatprep.subr.bf16.mxu0 %v1169
    %2300 = vmatpush1.bf16.msra.mxu0 %v1168
    %2301 = vmatprep.subr.bf16.mxu0 %v1177
    %2302 = vmatpush1.bf16.msra.mxu0 %v1176
    %2303 = vmatprep.subr.bf16.mxu0 %v1185
    %2304 = vmatpush1.bf16.msra.mxu0 %v1184
    %2305 = vmatprep.subr.bf16.mxu0 %v1193
    %2306 = vmatpush1.bf16.msra.mxu0 %v1192
    %2307 = vmatprep.subr.bf16.mxu0 %v1201
    %2308 = vmatpush1.bf16.msra.mxu0 %v1200
    %2309 = vmatprep.subr.bf16.mxu0 %v1209
    %2310 = vmatpush1.bf16.msra.mxu0 %v1208
    %2311 = vmatprep.subr.bf16.mxu0 %v1217
    %2312 = vmatpush1.bf16.msra.mxu0 %v1216
    %2313 = vmatprep.subr.bf16.mxu0 %v1225
    %2314 = vmatpush1.bf16.msra.mxu0 %v1224
    %2315 = vmatprep.subr.bf16.mxu0 0
    %2316 = vmatpush1.bf16.msra.mxu0 0
    %2317 = vmatprep.subr.bf16.mxu0 0
    %2318 = vmatpush1.bf16.msra.mxu0 0
    %2319 = vmatprep.subr.bf16.mxu0 0
    %2320 = vmatpush1.bf16.msra.mxu0 0
    %2321 = vmatprep.subr.bf16.mxu0 0
    %2322 = vmatpush1.bf16.msra.mxu0 0
    %2323 = vmatprep.subr.bf16.mxu0 0
    %2324 = vmatpush1.bf16.msra.mxu0 0
    %2325 = vmatprep.subr.bf16.mxu0 0
    %2326 = vmatpush1.bf16.msra.mxu0 0
    %2327 = vmatprep.subr.bf16.mxu0 0
    %2328 = vmatpush1.bf16.msra.mxu0 0
    %2329 = vmatprep.subr.bf16.mxu0 0
    %2330 = vmatpush1.bf16.msra.mxu0 0
    %2331 = vmatprep.mubr.bf16.mxu0 0
    %2332 = vmatmul.mubr.bf16.gmra.mrb[0].mxu0 %v2216
    %v2333 = vpop.f32.mrb[0].mxu0
    %v2334 = vadd.f32 0.0, %v2333
    %v2335 = vpop.f32.mrb[0].mxu0
    %v2336 = vadd.f32 0.0, %v2335
    %v2337 = vpop.f32.mrb[0].mxu0
    %v2338 = vpop.f32.mrb[0].mxu0
    %2339 = vdwg.mxu0
    %2340 = vmatprep.subr.bf16.mxu0 %v1171
    %2341 = vmatpush1.bf16.msra.mxu0 %v1170
    %2342 = vmatprep.subr.bf16.mxu0 %v1179
    %2343 = vmatpush1.bf16.msra.mxu0 %v1178
    %2344 = vmatprep.subr.bf16.mxu0 %v1187
    %2345 = vmatpush1.bf16.msra.mxu0 %v1186
    %2346 = vmatprep.subr.bf16.mxu0 %v1195
    %2347 = vmatpush1.bf16.msra.mxu0 %v1194
    %2348 = vmatprep.subr.bf16.mxu0 %v1203
    %2349 = vmatpush1.bf16.msra.mxu0 %v1202
    %2350 = vmatprep.subr.bf16.mxu0 %v1211
    %2351 = vmatpush1.bf16.msra.mxu0 %v1210
    %2352 = vmatprep.subr.bf16.mxu0 %v1219
    %2353 = vmatpush1.bf16.msra.mxu0 %v1218
    %2354 = vmatprep.subr.bf16.mxu0 %v1227
    %2355 = vmatpush1.bf16.msra.mxu0 %v1226
    %2356 = vmatprep.subr.bf16.mxu0 0
    %2357 = vmatpush1.bf16.msra.mxu0 0
    %2358 = vmatprep.subr.bf16.mxu0 0
    %2359 = vmatpush1.bf16.msra.mxu0 0
    %2360 = vmatprep.subr.bf16.mxu0 0
    %2361 = vmatpush1.bf16.msra.mxu0 0
    %2362 = vmatprep.subr.bf16.mxu0 0
    %2363 = vmatpush1.bf16.msra.mxu0 0
    %2364 = vmatprep.subr.bf16.mxu0 0
    %2365 = vmatpush1.bf16.msra.mxu0 0
    %2366 = vmatprep.subr.bf16.mxu0 0
    %2367 = vmatpush1.bf16.msra.mxu0 0
    %2368 = vmatprep.subr.bf16.mxu0 0
    %2369 = vmatpush1.bf16.msra.mxu0 0
    %2370 = vmatprep.subr.bf16.mxu0 0
    %2371 = vmatpush1.bf16.msra.mxu0 0
    %2372 = vmatprep.mubr.bf16.mxu0 0
    %2373 = vmatmul.mubr.bf16.gmra.mrb[0].mxu0 %v2216
    %v2374 = vpop.f32.mrb[0].mxu0
    %v2375 = vadd.f32 0.0, %v2374
    %v2376 = vpop.f32.mrb[0].mxu0
    %v2377 = vadd.f32 0.0, %v2376
    %v2378 = vpop.f32.mrb[0].mxu0
    %v2379 = vpop.f32.mrb[0].mxu0
    %2380 = vdwg.mxu0
    %s2381 = sld [smem:[#allocation3 + %s1988]]
    %v2382 = vstv %s2381
    %v2383 = vmul.f32 %v2382, %v1986
    %v2384 = vmul.f32 %v2382, %v1987
    %s2385 = sld [smem:[#allocation7 + %s1988]]
    %v2386 = vstv %s2385
    %v2387 = vmul.f32 %v2386, %v2252
    %v2388 = vmul.f32 %v2386, %v2254
    %v2389 = vmul.f32 %v2386, %v2293
    %v2390 = vmul.f32 %v2386, %v2295
    %v2391 = vmul.f32 %v2386, %v2334
    %v2392 = vmul.f32 %v2386, %v2336
    %v2393 = vmul.f32 %v2386, %v2375
    %v2394 = vmul.f32 %v2386, %v2377
    %v2403 = vcombine.low %v2387, %v2388
    %v2404 = vcombine.low %v2389, %v2390
    %v2406 = vunpack.c.l.s4 1983009808
    %v2407 = vunpack.c.0.s8 %v2406
    %v2408 = vlaneseq
    %v2409 = vshrl.u32 %v2408, 7
    %v2410 = vsub.s32 %v2407, %v2409
    %v2411 = vrot.slane %v2403, %v2410
    %v2413 = vunpack.c.l.s4 1983009808
    %v2414 = vunpack.c.0.s8 %v2413
    %v2415 = vlaneseq
    %v2416 = vshrl.u32 %v2415, 7
    %v2417 = vsub.s32 %v2414, %v2416
    %v2418 = vrot.slane %v2404, %v2417
    %v2419 = vcombine.low %v2411, %v2418
    %v2420 = vcombine.low %v2391, %v2392
    %v2421 = vcombine.low %v2393, %v2394
    %v2423 = vunpack.c.l.s4 1983009808
    %v2424 = vunpack.c.0.s8 %v2423
    %v2425 = vlaneseq
    %v2426 = vshrl.u32 %v2425, 7
    %v2427 = vsub.s32 %v2424, %v2426
    %v2428 = vrot.slane %v2420, %v2427
    %v2430 = vunpack.c.l.s4 1983009808
    %v2431 = vunpack.c.0.s8 %v2430
    %v2432 = vlaneseq
    %v2433 = vshrl.u32 %v2432, 7
    %v2434 = vsub.s32 %v2431, %v2433
    %v2435 = vrot.slane %v2421, %v2434
    %v2436 = vcombine.low %v2428, %v2435
    %v2439 = vsub.f32 %v2383, %v2419
    %v2440 = vsub.f32 %v2384, %v2436
    %s2441 = scalar_lea.vmem [#allocation19], 16
    %v2442 = vld [vmem:[%s2441] sm:$0xff]
    %v2443 = vunpack.c.l.bf16 %v2442
    %v2444 = vunpack.c.h.bf16 %v2442
    %s2445 = sld [smem:[#allocation9 + %s1988]]
    %v2446 = vstv %s2445
    %v2447 = vmul.f32 %v2446, %v2443
    %v2448 = vmul.f32 %v2446, %v2444
    %v2449 = vadd.f32 %v2439, %v2447
    %v2450 = vadd.f32 %v2440, %v2448
    %s2451 = sadd.s32 %s360, 3
    %v2454 = vcombine.high %v2449, %v2449
    %v2456 = vunpack.c.l.s4 1983009808
    %v2457 = vunpack.c.0.s8 %v2456
    %v2458 = vlaneseq
    %v2459 = vshrl.u32 %v2458, 7
    %v2460 = vsub.s32 %v2457, %v2459
    %v2461 = vrot.slane %v2449, %v2460
    %v2463 = vunpack.c.l.s4 1983009808
    %v2464 = vunpack.c.0.s8 %v2463
    %v2465 = vlaneseq
    %v2466 = vshrl.u32 %v2465, 7
    %v2467 = vsub.s32 %v2464, %v2466
    %v2468 = vrot.slane %v2454, %v2467
    %v2469 = vcombine.high %v2461, %v2461
    %v2470 = vcombine.high %v2468, %v2468
    %v2471 = vcombine.high %v2450, %v2450
    %v2473 = vunpack.c.l.s4 1983009808
    %v2474 = vunpack.c.0.s8 %v2473
    %v2475 = vlaneseq
    %v2476 = vshrl.u32 %v2475, 7
    %v2477 = vsub.s32 %v2474, %v2476
    %v2478 = vrot.slane %v2450, %v2477
    %v2480 = vunpack.c.l.s4 1983009808
    %v2481 = vunpack.c.0.s8 %v2480
    %v2482 = vlaneseq
    %v2483 = vshrl.u32 %v2482, 7
    %v2484 = vsub.s32 %v2481, %v2483
    %v2485 = vrot.slane %v2471, %v2484
    %v2486 = vcombine.high %v2478, %v2478
    %v2487 = vcombine.high %v2485, %v2485
    %v2496 = vpack.c.bf16 %v2461, %v2461
    %v2497 = vpack.c.bf16 %v2469, %v2469
    %v2498 = vpack.c.bf16 %v2468, %v2468
    %v2499 = vpack.c.bf16 %v2470, %v2470
    %v2500 = vpack.c.bf16 %v2478, %v2478
    %v2501 = vpack.c.bf16 %v2486, %v2486
    %v2502 = vpack.c.bf16 %v2485, %v2485
    %v2503 = vpack.c.bf16 %v2487, %v2487
    %s2504 = scalar_lea.vmem [#allocation17], 3
    %v2505 = vld [vmem:[%s2504] sm:$0x1]
    %v2507 = vlaneseq
    %v2508 = vshrl.u32 %v2507, 7
    %v2509 = vsub.s32 0, %v2508
    %v2510 = vrot.slane %v2505, %v2509
    %2512 = vmatprep.subr.bf16.mxu0 0
    %2513 = vmatpush1.bf16.msra.mxu0 %v676
    %2514 = vmatprep.subr.bf16.mxu0 0
    %2515 = vmatpush1.bf16.msra.mxu0 %v677
    %2516 = vmatprep.subr.bf16.mxu0 0
    %2517 = vmatpush1.bf16.msra.mxu0 %v678
    %2518 = vmatprep.subr.bf16.mxu0 0
    %2519 = vmatpush1.bf16.msra.mxu0 %v679
    %2520 = vmatprep.subr.bf16.mxu0 0
    %2521 = vmatpush1.bf16.msra.mxu0 %v680
    %2522 = vmatprep.subr.bf16.mxu0 0
    %2523 = vmatpush1.bf16.msra.mxu0 %v681
    %2524 = vmatprep.subr.bf16.mxu0 0
    %2525 = vmatpush1.bf16.msra.mxu0 %v682
    %2526 = vmatprep.subr.bf16.mxu0 0
    %2527 = vmatpush1.bf16.msra.mxu0 %v683
    %2528 = vmatprep.subr.bf16.mxu0 0
    %2529 = vmatpush1.bf16.msra.mxu0 %v684
    %2530 = vmatprep.subr.bf16.mxu0 0
    %2531 = vmatpush1.bf16.msra.mxu0 %v685
    %2532 = vmatprep.subr.bf16.mxu0 0
    %2533 = vmatpush1.bf16.msra.mxu0 %v686
    %2534 = vmatprep.subr.bf16.mxu0 0
    %2535 = vmatpush1.bf16.msra.mxu0 %v687
    %2536 = vmatprep.subr.bf16.mxu0 0
    %2537 = vmatpush1.bf16.msra.mxu0 %v688
    %2538 = vmatprep.subr.bf16.mxu0 0
    %2539 = vmatpush1.bf16.msra.mxu0 %v689
    %2540 = vmatprep.subr.bf16.mxu0 0
    %2541 = vmatpush1.bf16.msra.mxu0 %v690
    %2542 = vmatprep.subr.bf16.mxu0 0
    %2543 = vmatpush1.bf16.msra.mxu0 %v691
    %2544 = vmatprep.mubr.bf16.mxu0 %v2497
    %2545 = vmatmul.mubr.bf16.gmra.mrb[0].mxu0 %v2496
    %v2546 = vpop.f32.mrb[0].mxu0
    %v2547 = vadd.f32 %v2510, %v2546
    %v2548 = vpop.f32.mrb[0].mxu0
    %v2549 = vpop.f32.mrb[0].mxu0
    %v2550 = vpop.f32.mrb[0].mxu0
    %2551 = vdwg.mxu0
    %2552 = vmatprep.subr.bf16.mxu0 0
    %2553 = vmatpush1.bf16.msra.mxu0 %v692
    %2554 = vmatprep.subr.bf16.mxu0 0
    %2555 = vmatpush1.bf16.msra.mxu0 %v693
    %2556 = vmatprep.subr.bf16.mxu0 0
    %2557 = vmatpush1.bf16.msra.mxu0 %v694
    %2558 = vmatprep.subr.bf16.mxu0 0
    %2559 = vmatpush1.bf16.msra.mxu0 %v695
    %2560 = vmatprep.subr.bf16.mxu0 0
    %2561 = vmatpush1.bf16.msra.mxu0 %v696
    %2562 = vmatprep.subr.bf16.mxu0 0
    %2563 = vmatpush1.bf16.msra.mxu0 %v697
    %2564 = vmatprep.subr.bf16.mxu0 0
    %2565 = vmatpush1.bf16.msra.mxu0 %v698
    %2566 = vmatprep.subr.bf16.mxu0 0
    %2567 = vmatpush1.bf16.msra.mxu0 %v699
    %2568 = vmatprep.subr.bf16.mxu0 0
    %2569 = vmatpush1.bf16.msra.mxu0 %v700
    %2570 = vmatprep.subr.bf16.mxu0 0
    %2571 = vmatpush1.bf16.msra.mxu0 %v701
    %2572 = vmatprep.subr.bf16.mxu0 0
    %2573 = vmatpush1.bf16.msra.mxu0 %v702
    %2574 = vmatprep.subr.bf16.mxu0 0
    %2575 = vmatpush1.bf16.msra.mxu0 %v703
    %2576 = vmatprep.subr.bf16.mxu0 0
    %2577 = vmatpush1.bf16.msra.mxu0 %v704
    %2578 = vmatprep.subr.bf16.mxu0 0
    %2579 = vmatpush1.bf16.msra.mxu0 %v705
    %2580 = vmatprep.subr.bf16.mxu0 0
    %2581 = vmatpush1.bf16.msra.mxu0 %v706
    %2582 = vmatprep.subr.bf16.mxu0 0
    %2583 = vmatpush1.bf16.msra.mxu0 %v707
    %2584 = vmatprep.mubr.bf16.mxu0 %v2499
    %2585 = vmatmul.mubr.bf16.gmra.mrb[0].mxu0 %v2498
    %v2586 = vpop.f32.mrb[0].mxu0
    %v2587 = vadd.f32 %v2547, %v2586
    %v2588 = vpop.f32.mrb[0].mxu0
    %v2589 = vpop.f32.mrb[0].mxu0
    %v2590 = vpop.f32.mrb[0].mxu0
    %2591 = vdwg.mxu0
    %2592 = vmatprep.subr.bf16.mxu0 0
    %2593 = vmatpush1.bf16.msra.mxu0 %v708
    %2594 = vmatprep.subr.bf16.mxu0 0
    %2595 = vmatpush1.bf16.msra.mxu0 %v709
    %2596 = vmatprep.subr.bf16.mxu0 0
    %2597 = vmatpush1.bf16.msra.mxu0 %v710
    %2598 = vmatprep.subr.bf16.mxu0 0
    %2599 = vmatpush1.bf16.msra.mxu0 %v711
    %2600 = vmatprep.subr.bf16.mxu0 0
    %2601 = vmatpush1.bf16.msra.mxu0 %v712
    %2602 = vmatprep.subr.bf16.mxu0 0
    %2603 = vmatpush1.bf16.msra.mxu0 %v713
    %2604 = vmatprep.subr.bf16.mxu0 0
    %2605 = vmatpush1.bf16.msra.mxu0 %v714
    %2606 = vmatprep.subr.bf16.mxu0 0
    %2607 = vmatpush1.bf16.msra.mxu0 %v715
    %2608 = vmatprep.subr.bf16.mxu0 0
    %2609 = vmatpush1.bf16.msra.mxu0 %v716
    %2610 = vmatprep.subr.bf16.mxu0 0
    %2611 = vmatpush1.bf16.msra.mxu0 %v717
    %2612 = vmatprep.subr.bf16.mxu0 0
    %2613 = vmatpush1.bf16.msra.mxu0 %v718
    %2614 = vmatprep.subr.bf16.mxu0 0
    %2615 = vmatpush1.bf16.msra.mxu0 %v719
    %2616 = vmatprep.subr.bf16.mxu0 0
    %2617 = vmatpush1.bf16.msra.mxu0 %v720
    %2618 = vmatprep.subr.bf16.mxu0 0
    %2619 = vmatpush1.bf16.msra.mxu0 %v721
    %2620 = vmatprep.subr.bf16.mxu0 0
    %2621 = vmatpush1.bf16.msra.mxu0 %v722
    %2622 = vmatprep.subr.bf16.mxu0 0
    %2623 = vmatpush1.bf16.msra.mxu0 %v723
    %2624 = vmatprep.mubr.bf16.mxu0 %v2501
    %2625 = vmatmul.mubr.bf16.gmra.mrb[0].mxu0 %v2500
    %v2626 = vpop.f32.mrb[0].mxu0
    %v2627 = vadd.f32 %v2587, %v2626
    %v2628 = vpop.f32.mrb[0].mxu0
    %v2629 = vpop.f32.mrb[0].mxu0
    %v2630 = vpop.f32.mrb[0].mxu0
    %2631 = vdwg.mxu0
    %2632 = vmatprep.subr.bf16.mxu0 0
    %2633 = vmatpush1.bf16.msra.mxu0 %v724
    %2634 = vmatprep.subr.bf16.mxu0 0
    %2635 = vmatpush1.bf16.msra.mxu0 %v725
    %2636 = vmatprep.subr.bf16.mxu0 0
    %2637 = vmatpush1.bf16.msra.mxu0 %v726
    %2638 = vmatprep.subr.bf16.mxu0 0
    %2639 = vmatpush1.bf16.msra.mxu0 %v727
    %2640 = vmatprep.subr.bf16.mxu0 0
    %2641 = vmatpush1.bf16.msra.mxu0 %v728
    %2642 = vmatprep.subr.bf16.mxu0 0
    %2643 = vmatpush1.bf16.msra.mxu0 %v729
    %2644 = vmatprep.subr.bf16.mxu0 0
    %2645 = vmatpush1.bf16.msra.mxu0 %v730
    %2646 = vmatprep.subr.bf16.mxu0 0
    %2647 = vmatpush1.bf16.msra.mxu0 %v731
    %2648 = vmatprep.subr.bf16.mxu0 0
    %2649 = vmatpush1.bf16.msra.mxu0 %v732
    %2650 = vmatprep.subr.bf16.mxu0 0
    %2651 = vmatpush1.bf16.msra.mxu0 %v733
    %2652 = vmatprep.subr.bf16.mxu0 0
    %2653 = vmatpush1.bf16.msra.mxu0 %v734
    %2654 = vmatprep.subr.bf16.mxu0 0
    %2655 = vmatpush1.bf16.msra.mxu0 %v735
    %2656 = vmatprep.subr.bf16.mxu0 0
    %2657 = vmatpush1.bf16.msra.mxu0 %v736
    %2658 = vmatprep.subr.bf16.mxu0 0
    %2659 = vmatpush1.bf16.msra.mxu0 %v737
    %2660 = vmatprep.subr.bf16.mxu0 0
    %2661 = vmatpush1.bf16.msra.mxu0 %v738
    %2662 = vmatprep.subr.bf16.mxu0 0
    %2663 = vmatpush1.bf16.msra.mxu0 %v739
    %2664 = vmatprep.mubr.bf16.mxu0 %v2503
    %2665 = vmatmul.mubr.bf16.gmra.mrb[0].mxu0 %v2502
    %v2666 = vpop.f32.mrb[0].mxu0
    %v2667 = vadd.f32 %v2627, %v2666
    %v2668 = vpop.f32.mrb[0].mxu0
    %v2669 = vpop.f32.mrb[0].mxu0
    %v2670 = vpop.f32.mrb[0].mxu0
    %2671 = vdwg.mxu0
    %v2672 = vadd.f32 %v2667, %v356
    %v2673 = vtanh.pop %v2672
    %v2674 = vadd.f32 %v2667, %v357
    %v2675 = vtanh.pop %v2674
    %v2676 = vmul.f32 %v2673, 1.5
    %v2677 = vmul.f32 %v2675, 0.5
    %v2678 = vsub.f32 %v2676, %v2677
    %v2679 = vpack.c.bf16 %v2678, %v2678
    %2680 = vmatprep.subr.bf16.mxu0 %v1165
    %2681 = vmatpush1.bf16.msra.mxu0 %v1164
    %2682 = vmatprep.subr.bf16.mxu0 %v1173
    %2683 = vmatpush1.bf16.msra.mxu0 %v1172
    %2684 = vmatprep.subr.bf16.mxu0 %v1181
    %2685 = vmatpush1.bf16.msra.mxu0 %v1180
    %2686 = vmatprep.subr.bf16.mxu0 %v1189
    %2687 = vmatpush1.bf16.msra.mxu0 %v1188
    %2688 = vmatprep.subr.bf16.mxu0 %v1197
    %2689 = vmatpush1.bf16.msra.mxu0 %v1196
    %2690 = vmatprep.subr.bf16.mxu0 %v1205
    %2691 = vmatpush1.bf16.msra.mxu0 %v1204
    %2692 = vmatprep.subr.bf16.mxu0 %v1213
    %2693 = vmatpush1.bf16.msra.mxu0 %v1212
    %2694 = vmatprep.subr.bf16.mxu0 %v1221
    %2695 = vmatpush1.bf16.msra.mxu0 %v1220
    %2696 = vmatprep.subr.bf16.mxu0 0
    %2697 = vmatpush1.bf16.msra.mxu0 0
    %2698 = vmatprep.subr.bf16.mxu0 0
    %2699 = vmatpush1.bf16.msra.mxu0 0
    %2700 = vmatprep.subr.bf16.mxu0 0
    %2701 = vmatpush1.bf16.msra.mxu0 0
    %2702 = vmatprep.subr.bf16.mxu0 0
    %2703 = vmatpush1.bf16.msra.mxu0 0
    %2704 = vmatprep.subr.bf16.mxu0 0
    %2705 = vmatpush1.bf16.msra.mxu0 0
    %2706 = vmatprep.subr.bf16.mxu0 0
    %2707 = vmatpush1.bf16.msra.mxu0 0
    %2708 = vmatprep.subr.bf16.mxu0 0
    %2709 = vmatpush1.bf16.msra.mxu0 0
    %2710 = vmatprep.subr.bf16.mxu0 0
    %2711 = vmatpush1.bf16.msra.mxu0 0
    %2712 = vmatprep.mubr.bf16.mxu0 0
    %2713 = vmatmul.mubr.bf16.gmra.mrb[0].mxu0 %v2679
    %v2714 = vpop.f32.mrb[0].mxu0
    %v2715 = vadd.f32 0.0, %v2714
    %v2716 = vpop.f32.mrb[0].mxu0
    %v2717 = vadd.f32 0.0, %v2716
    %v2718 = vpop.f32.mrb[0].mxu0
    %v2719 = vpop.f32.mrb[0].mxu0
    %2720 = vdwg.mxu0
    %2721 = vmatprep.subr.bf16.mxu0 %v1167
    %2722 = vmatpush1.bf16.msra.mxu0 %v1166
    %2723 = vmatprep.subr.bf16.mxu0 %v1175
    %2724 = vmatpush1.bf16.msra.mxu0 %v1174
    %2725 = vmatprep.subr.bf16.mxu0 %v1183
    %2726 = vmatpush1.bf16.msra.mxu0 %v1182
    %2727 = vmatprep.subr.bf16.mxu0 %v1191
    %2728 = vmatpush1.bf16.msra.mxu0 %v1190
    %2729 = vmatprep.subr.bf16.mxu0 %v1199
    %2730 = vmatpush1.bf16.msra.mxu0 %v1198
    %2731 = vmatprep.subr.bf16.mxu0 %v1207
    %2732 = vmatpush1.bf16.msra.mxu0 %v1206
    %2733 = vmatprep.subr.bf16.mxu0 %v1215
    %2734 = vmatpush1.bf16.msra.mxu0 %v1214
    %2735 = vmatprep.subr.bf16.mxu0 %v1223
    %2736 = vmatpush1.bf16.msra.mxu0 %v1222
    %2737 = vmatprep.subr.bf16.mxu0 0
    %2738 = vmatpush1.bf16.msra.mxu0 0
    %2739 = vmatprep.subr.bf16.mxu0 0
    %2740 = vmatpush1.bf16.msra.mxu0 0
    %2741 = vmatprep.subr.bf16.mxu0 0
    %2742 = vmatpush1.bf16.msra.mxu0 0
    %2743 = vmatprep.subr.bf16.mxu0 0
    %2744 = vmatpush1.bf16.msra.mxu0 0
    %2745 = vmatprep.subr.bf16.mxu0 0
    %2746 = vmatpush1.bf16.msra.mxu0 0
    %2747 = vmatprep.subr.bf16.mxu0 0
    %2748 = vmatpush1.bf16.msra.mxu0 0
    %2749 = vmatprep.subr.bf16.mxu0 0
    %2750 = vmatpush1.bf16.msra.mxu0 0
    %2751 = vmatprep.subr.bf16.mxu0 0
    %2752 = vmatpush1.bf16.msra.mxu0 0
    %2753 = vmatprep.mubr.bf16.mxu0 0
    %2754 = vmatmul.mubr.bf16.gmra.mrb[0].mxu0 %v2679
    %v2755 = vpop.f32.mrb[0].mxu0
    %v2756 = vadd.f32 0.0, %v2755
    %v2757 = vpop.f32.mrb[0].mxu0
    %v2758 = vadd.f32 0.0, %v2757
    %v2759 = vpop.f32.mrb[0].mxu0
    %v2760 = vpop.f32.mrb[0].mxu0
    %2761 = vdwg.mxu0
    %2762 = vmatprep.subr.bf16.mxu0 %v1169
    %2763 = vmatpush1.bf16.msra.mxu0 %v1168
    %2764 = vmatprep.subr.bf16.mxu0 %v1177
    %2765 = vmatpush1.bf16.msra.mxu0 %v1176
    %2766 = vmatprep.subr.bf16.mxu0 %v1185
    %2767 = vmatpush1.bf16.msra.mxu0 %v1184
    %2768 = vmatprep.subr.bf16.mxu0 %v1193
    %2769 = vmatpush1.bf16.msra.mxu0 %v1192
    %2770 = vmatprep.subr.bf16.mxu0 %v1201
    %2771 = vmatpush1.bf16.msra.mxu0 %v1200
    %2772 = vmatprep.subr.bf16.mxu0 %v1209
    %2773 = vmatpush1.bf16.msra.mxu0 %v1208
    %2774 = vmatprep.subr.bf16.mxu0 %v1217
    %2775 = vmatpush1.bf16.msra.mxu0 %v1216
    %2776 = vmatprep.subr.bf16.mxu0 %v1225
    %2777 = vmatpush1.bf16.msra.mxu0 %v1224
    %2778 = vmatprep.subr.bf16.mxu0 0
    %2779 = vmatpush1.bf16.msra.mxu0 0
    %2780 = vmatprep.subr.bf16.mxu0 0
    %2781 = vmatpush1.bf16.msra.mxu0 0
    %2782 = vmatprep.subr.bf16.mxu0 0
    %2783 = vmatpush1.bf16.msra.mxu0 0
    %2784 = vmatprep.subr.bf16.mxu0 0
    %2785 = vmatpush1.bf16.msra.mxu0 0
    %2786 = vmatprep.subr.bf16.mxu0 0
    %2787 = vmatpush1.bf16.msra.mxu0 0
    %2788 = vmatprep.subr.bf16.mxu0 0
    %2789 = vmatpush1.bf16.msra.mxu0 0
    %2790 = vmatprep.subr.bf16.mxu0 0
    %2791 = vmatpush1.bf16.msra.mxu0 0
    %2792 = vmatprep.subr.bf16.mxu0 0
    %2793 = vmatpush1.bf16.msra.mxu0 0
    %2794 = vmatprep.mubr.bf16.mxu0 0
    %2795 = vmatmul.mubr.bf16.gmra.mrb[0].mxu0 %v2679
    %v2796 = vpop.f32.mrb[0].mxu0
    %v2797 = vadd.f32 0.0, %v2796
    %v2798 = vpop.f32.mrb[0].mxu0
    %v2799 = vadd.f32 0.0, %v2798
    %v2800 = vpop.f32.mrb[0].mxu0
    %v2801 = vpop.f32.mrb[0].mxu0
    %2802 = vdwg.mxu0
    %2803 = vmatprep.subr.bf16.mxu0 %v1171
    %2804 = vmatpush1.bf16.msra.mxu0 %v1170
    %2805 = vmatprep.subr.bf16.mxu0 %v1179
    %2806 = vmatpush1.bf16.msra.mxu0 %v1178
    %2807 = vmatprep.subr.bf16.mxu0 %v1187
    %2808 = vmatpush1.bf16.msra.mxu0 %v1186
    %2809 = vmatprep.subr.bf16.mxu0 %v1195
    %2810 = vmatpush1.bf16.msra.mxu0 %v1194
    %2811 = vmatprep.subr.bf16.mxu0 %v1203
    %2812 = vmatpush1.bf16.msra.mxu0 %v1202
    %2813 = vmatprep.subr.bf16.mxu0 %v1211
    %2814 = vmatpush1.bf16.msra.mxu0 %v1210
    %2815 = vmatprep.subr.bf16.mxu0 %v1219
    %2816 = vmatpush1.bf16.msra.mxu0 %v1218
    %2817 = vmatprep.subr.bf16.mxu0 %v1227
    %2818 = vmatpush1.bf16.msra.mxu0 %v1226
    %2819 = vmatprep.subr.bf16.mxu0 0
    %2820 = vmatpush1.bf16.msra.mxu0 0
    %2821 = vmatprep.subr.bf16.mxu0 0
    %2822 = vmatpush1.bf16.msra.mxu0 0
    %2823 = vmatprep.subr.bf16.mxu0 0
    %2824 = vmatpush1.bf16.msra.mxu0 0
    %2825 = vmatprep.subr.bf16.mxu0 0
    %2826 = vmatpush1.bf16.msra.mxu0 0
    %2827 = vmatprep.subr.bf16.mxu0 0
    %2828 = vmatpush1.bf16.msra.mxu0 0
    %2829 = vmatprep.subr.bf16.mxu0 0
    %2830 = vmatpush1.bf16.msra.mxu0 0
    %2831 = vmatprep.subr.bf16.mxu0 0
    %2832 = vmatpush1.bf16.msra.mxu0 0
    %2833 = vmatprep.subr.bf16.mxu0 0
    %2834 = vmatpush1.bf16.msra.mxu0 0
    %2835 = vmatprep.mubr.bf16.mxu0 0
    %2836 = vmatmul.mubr.bf16.gmra.mrb[0].mxu0 %v2679
    %v2837 = vpop.f32.mrb[0].mxu0
    %v2838 = vadd.f32 0.0, %v2837
    %v2839 = vpop.f32.mrb[0].mxu0
    %v2840 = vadd.f32 0.0, %v2839
    %v2841 = vpop.f32.mrb[0].mxu0
    %v2842 = vpop.f32.mrb[0].mxu0
    %2843 = vdwg.mxu0
    %s2844 = sld [smem:[#allocation3 + %s2451]]
    %v2845 = vstv %s2844
    %v2846 = vmul.f32 %v2845, %v2449
    %v2847 = vmul.f32 %v2845, %v2450
    %s2848 = sld [smem:[#allocation7 + %s2451]]
    %v2849 = vstv %s2848
    %v2850 = vmul.f32 %v2849, %v2715
    %v2851 = vmul.f32 %v2849, %v2717
    %v2852 = vmul.f32 %v2849, %v2756
    %v2853 = vmul.f32 %v2849, %v2758
    %v2854 = vmul.f32 %v2849, %v2797
    %v2855 = vmul.f32 %v2849, %v2799
    %v2856 = vmul.f32 %v2849, %v2838
    %v2857 = vmul.f32 %v2849, %v2840
    %v2866 = vcombine.low %v2850, %v2851
    %v2867 = vcombine.low %v2852, %v2853
    %v2869 = vunpack.c.l.s4 1983009808
    %v2870 = vunpack.c.0.s8 %v2869
    %v2871 = vlaneseq
    %v2872 = vshrl.u32 %v2871, 7
    %v2873 = vsub.s32 %v2870, %v2872
    %v2874 = vrot.slane %v2866, %v2873
    %v2876 = vunpack.c.l.s4 1983009808
    %v2877 = vunpack.c.0.s8 %v2876
    %v2878 = vlaneseq
    %v2879 = vshrl.u32 %v2878, 7
    %v2880 = vsub.s32 %v2877, %v2879
    %v2881 = vrot.slane %v2867, %v2880
    %v2882 = vcombine.low %v2874, %v2881
    %v2883 = vcombine.low %v2854, %v2855
    %v2884 = vcombine.low %v2856, %v2857
    %v2886 = vunpack.c.l.s4 1983009808
    %v2887 = vunpack.c.0.s8 %v2886
    %v2888 = vlaneseq
    %v2889 = vshrl.u32 %v2888, 7
    %v2890 = vsub.s32 %v2887, %v2889
    %v2891 = vrot.slane %v2883, %v2890
    %v2893 = vunpack.c.l.s4 1983009808
    %v2894 = vunpack.c.0.s8 %v2893
    %v2895 = vlaneseq
    %v2896 = vshrl.u32 %v2895, 7
    %v2897 = vsub.s32 %v2894, %v2896
    %v2898 = vrot.slane %v2884, %v2897
    %v2899 = vcombine.low %v2891, %v2898
    %v2902 = vsub.f32 %v2846, %v2882
    %v2903 = vsub.f32 %v2847, %v2899
    %s2904 = scalar_lea.vmem [#allocation19], 24
    %v2905 = vld [vmem:[%s2904] sm:$0xff]
    %v2906 = vunpack.c.l.bf16 %v2905
    %v2907 = vunpack.c.h.bf16 %v2905
    %s2908 = sld [smem:[#allocation9 + %s2451]]
    %v2909 = vstv %s2908
    %v2910 = vmul.f32 %v2909, %v2906
    %v2911 = vmul.f32 %v2909, %v2907
    %v2912 = vadd.f32 %v2902, %v2910
    %v2913 = vadd.f32 %v2903, %v2911
    %s2914 = sadd.s32 %s360, 4
    %v2917 = vcombine.high %v2912, %v2912
    %v2919 = vunpack.c.l.s4 1983009808
    %v2920 = vunpack.c.0.s8 %v2919
    %v2921 = vlaneseq
    %v2922 = vshrl.u32 %v2921, 7
    %v2923 = vsub.s32 %v2920, %v2922
    %v2924 = vrot.slane %v2912, %v2923
    %v2926 = vunpack.c.l.s4 1983009808
    %v2927 = vunpack.c.0.s8 %v2926
    %v2928 = vlaneseq
    %v2929 = vshrl.u32 %v2928, 7
    %v2930 = vsub.s32 %v2927, %v2929
    %v2931 = vrot.slane %v2917, %v2930
    %v2932 = vcombine.high %v2924, %v2924
    %v2933 = vcombine.high %v2931, %v2931
    %v2934 = vcombine.high %v2913, %v2913
    %v2936 = vunpack.c.l.s4 1983009808
    %v2937 = vunpack.c.0.s8 %v2936
    %v2938 = vlaneseq
    %v2939 = vshrl.u32 %v2938, 7
    %v2940 = vsub.s32 %v2937, %v2939
    %v2941 = vrot.slane %v2913, %v2940
    %v2943 = vunpack.c.l.s4 1983009808
    %v2944 = vunpack.c.0.s8 %v2943
    %v2945 = vlaneseq
    %v2946 = vshrl.u32 %v2945, 7
    %v2947 = vsub.s32 %v2944, %v2946
    %v2948 = vrot.slane %v2934, %v2947
    %v2949 = vcombine.high %v2941, %v2941
    %v2950 = vcombine.high %v2948, %v2948
    %v2959 = vpack.c.bf16 %v2924, %v2924
    %v2960 = vpack.c.bf16 %v2932, %v2932
    %v2961 = vpack.c.bf16 %v2931, %v2931
    %v2962 = vpack.c.bf16 %v2933, %v2933
    %v2963 = vpack.c.bf16 %v2941, %v2941
    %v2964 = vpack.c.bf16 %v2949, %v2949
    %v2965 = vpack.c.bf16 %v2948, %v2948
    %v2966 = vpack.c.bf16 %v2950, %v2950
    %s2967 = scalar_lea.vmem [#allocation17], 4
    %v2968 = vld [vmem:[%s2967] sm:$0x1]
    %v2970 = vlaneseq
    %v2971 = vshrl.u32 %v2970, 7
    %v2972 = vsub.s32 0, %v2971
    %v2973 = vrot.slane %v2968, %v2972
    %2975 = vmatprep.subr.bf16.mxu0 0
    %2976 = vmatpush1.bf16.msra.mxu0 %v676
    %2977 = vmatprep.subr.bf16.mxu0 0
    %2978 = vmatpush1.bf16.msra.mxu0 %v677
    %2979 = vmatprep.subr.bf16.mxu0 0
    %2980 = vmatpush1.bf16.msra.mxu0 %v678
    %2981 = vmatprep.subr.bf16.mxu0 0
    %2982 = vmatpush1.bf16.msra.mxu0 %v679
    %2983 = vmatprep.subr.bf16.mxu0 0
    %2984 = vmatpush1.bf16.msra.mxu0 %v680
    %2985 = vmatprep.subr.bf16.mxu0 0
    %2986 = vmatpush1.bf16.msra.mxu0 %v681
    %2987 = vmatprep.subr.bf16.mxu0 0
    %2988 = vmatpush1.bf16.msra.mxu0 %v682
    %2989 = vmatprep.subr.bf16.mxu0 0
    %2990 = vmatpush1.bf16.msra.mxu0 %v683
    %2991 = vmatprep.subr.bf16.mxu0 0
    %2992 = vmatpush1.bf16.msra.mxu0 %v684
    %2993 = vmatprep.subr.bf16.mxu0 0
    %2994 = vmatpush1.bf16.msra.mxu0 %v685
    %2995 = vmatprep.subr.bf16.mxu0 0
    %2996 = vmatpush1.bf16.msra.mxu0 %v686
    %2997 = vmatprep.subr.bf16.mxu0 0
    %2998 = vmatpush1.bf16.msra.mxu0 %v687
    %2999 = vmatprep.subr.bf16.mxu0 0
    %3000 = vmatpush1.bf16.msra.mxu0 %v688
    %3001 = vmatprep.subr.bf16.mxu0 0
    %3002 = vmatpush1.bf16.msra.mxu0 %v689
    %3003 = vmatprep.subr.bf16.mxu0 0
    %3004 = vmatpush1.bf16.msra.mxu0 %v690
    %3005 = vmatprep.subr.bf16.mxu0 0
    %3006 = vmatpush1.bf16.msra.mxu0 %v691
    %3007 = vmatprep.mubr.bf16.mxu0 %v2960
    %3008 = vmatmul.mubr.bf16.gmra.mrb[0].mxu0 %v2959
    %v3009 = vpop.f32.mrb[0].mxu0
    %v3010 = vadd.f32 %v2973, %v3009
    %v3011 = vpop.f32.mrb[0].mxu0
    %v3012 = vpop.f32.mrb[0].mxu0
    %v3013 = vpop.f32.mrb[0].mxu0
    %3014 = vdwg.mxu0
    %3015 = vmatprep.subr.bf16.mxu0 0
    %3016 = vmatpush1.bf16.msra.mxu0 %v692
    %3017 = vmatprep.subr.bf16.mxu0 0
    %3018 = vmatpush1.bf16.msra.mxu0 %v693
    %3019 = vmatprep.subr.bf16.mxu0 0
    %3020 = vmatpush1.bf16.msra.mxu0 %v694
    %3021 = vmatprep.subr.bf16.mxu0 0
    %3022 = vmatpush1.bf16.msra.mxu0 %v695
    %3023 = vmatprep.subr.bf16.mxu0 0
    %3024 = vmatpush1.bf16.msra.mxu0 %v696
    %3025 = vmatprep.subr.bf16.mxu0 0
    %3026 = vmatpush1.bf16.msra.mxu0 %v697
    %3027 = vmatprep.subr.bf16.mxu0 0
    %3028 = vmatpush1.bf16.msra.mxu0 %v698
    %3029 = vmatprep.subr.bf16.mxu0 0
    %3030 = vmatpush1.bf16.msra.mxu0 %v699
    %3031 = vmatprep.subr.bf16.mxu0 0
    %3032 = vmatpush1.bf16.msra.mxu0 %v700
    %3033 = vmatprep.subr.bf16.mxu0 0
    %3034 = vmatpush1.bf16.msra.mxu0 %v701
    %3035 = vmatprep.subr.bf16.mxu0 0
    %3036 = vmatpush1.bf16.msra.mxu0 %v702
    %3037 = vmatprep.subr.bf16.mxu0 0
    %3038 = vmatpush1.bf16.msra.mxu0 %v703
    %3039 = vmatprep.subr.bf16.mxu0 0
    %3040 = vmatpush1.bf16.msra.mxu0 %v704
    %3041 = vmatprep.subr.bf16.mxu0 0
    %3042 = vmatpush1.bf16.msra.mxu0 %v705
    %3043 = vmatprep.subr.bf16.mxu0 0
    %3044 = vmatpush1.bf16.msra.mxu0 %v706
    %3045 = vmatprep.subr.bf16.mxu0 0
    %3046 = vmatpush1.bf16.msra.mxu0 %v707
    %3047 = vmatprep.mubr.bf16.mxu0 %v2962
    %3048 = vmatmul.mubr.bf16.gmra.mrb[0].mxu0 %v2961
    %v3049 = vpop.f32.mrb[0].mxu0
    %v3050 = vadd.f32 %v3010, %v3049
    %v3051 = vpop.f32.mrb[0].mxu0
    %v3052 = vpop.f32.mrb[0].mxu0
    %v3053 = vpop.f32.mrb[0].mxu0
    %3054 = vdwg.mxu0
    %3055 = vmatprep.subr.bf16.mxu0 0
    %3056 = vmatpush1.bf16.msra.mxu0 %v708
    %3057 = vmatprep.subr.bf16.mxu0 0
    %3058 = vmatpush1.bf16.msra.mxu0 %v709
    %3059 = vmatprep.subr.bf16.mxu0 0
    %3060 = vmatpush1.bf16.msra.mxu0 %v710
    %3061 = vmatprep.subr.bf16.mxu0 0
    %3062 = vmatpush1.bf16.msra.mxu0 %v711
    %3063 = vmatprep.subr.bf16.mxu0 0
    %3064 = vmatpush1.bf16.msra.mxu0 %v712
    %3065 = vmatprep.subr.bf16.mxu0 0
    %3066 = vmatpush1.bf16.msra.mxu0 %v713
    %3067 = vmatprep.subr.bf16.mxu0 0
    %3068 = vmatpush1.bf16.msra.mxu0 %v714
    %3069 = vmatprep.subr.bf16.mxu0 0
    %3070 = vmatpush1.bf16.msra.mxu0 %v715
    %3071 = vmatprep.subr.bf16.mxu0 0
    %3072 = vmatpush1.bf16.msra.mxu0 %v716
    %3073 = vmatprep.subr.bf16.mxu0 0
    %3074 = vmatpush1.bf16.msra.mxu0 %v717
    %3075 = vmatprep.subr.bf16.mxu0 0
    %3076 = vmatpush1.bf16.msra.mxu0 %v718
    %3077 = vmatprep.subr.bf16.mxu0 0
    %3078 = vmatpush1.bf16.msra.mxu0 %v719
    %3079 = vmatprep.subr.bf16.mxu0 0
    %3080 = vmatpush1.bf16.msra.mxu0 %v720
    %3081 = vmatprep.subr.bf16.mxu0 0
    %3082 = vmatpush1.bf16.msra.mxu0 %v721
    %3083 = vmatprep.subr.bf16.mxu0 0
    %3084 = vmatpush1.bf16.msra.mxu0 %v722
    %3085 = vmatprep.subr.bf16.mxu0 0
    %3086 = vmatpush1.bf16.msra.mxu0 %v723
    %3087 = vmatprep.mubr.bf16.mxu0 %v2964
    %3088 = vmatmul.mubr.bf16.gmra.mrb[0].mxu0 %v2963
    %v3089 = vpop.f32.mrb[0].mxu0
    %v3090 = vadd.f32 %v3050, %v3089
    %v3091 = vpop.f32.mrb[0].mxu0
    %v3092 = vpop.f32.mrb[0].mxu0
    %v3093 = vpop.f32.mrb[0].mxu0
    %3094 = vdwg.mxu0
    %3095 = vmatprep.subr.bf16.mxu0 0
    %3096 = vmatpush1.bf16.msra.mxu0 %v724
    %3097 = vmatprep.subr.bf16.mxu0 0
    %3098 = vmatpush1.bf16.msra.mxu0 %v725
    %3099 = vmatprep.subr.bf16.mxu0 0
    %3100 = vmatpush1.bf16.msra.mxu0 %v726
    %3101 = vmatprep.subr.bf16.mxu0 0
    %3102 = vmatpush1.bf16.msra.mxu0 %v727
    %3103 = vmatprep.subr.bf16.mxu0 0
    %3104 = vmatpush1.bf16.msra.mxu0 %v728
    %3105 = vmatprep.subr.bf16.mxu0 0
    %3106 = vmatpush1.bf16.msra.mxu0 %v729
    %3107 = vmatprep.subr.bf16.mxu0 0
    %3108 = vmatpush1.bf16.msra.mxu0 %v730
    %3109 = vmatprep.subr.bf16.mxu0 0
    %3110 = vmatpush1.bf16.msra.mxu0 %v731
    %3111 = vmatprep.subr.bf16.mxu0 0
    %3112 = vmatpush1.bf16.msra.mxu0 %v732
    %3113 = vmatprep.subr.bf16.mxu0 0
    %3114 = vmatpush1.bf16.msra.mxu0 %v733
    %3115 = vmatprep.subr.bf16.mxu0 0
    %3116 = vmatpush1.bf16.msra.mxu0 %v734
    %3117 = vmatprep.subr.bf16.mxu0 0
    %3118 = vmatpush1.bf16.msra.mxu0 %v735
    %3119 = vmatprep.subr.bf16.mxu0 0
    %3120 = vmatpush1.bf16.msra.mxu0 %v736
    %3121 = vmatprep.subr.bf16.mxu0 0
    %3122 = vmatpush1.bf16.msra.mxu0 %v737
    %3123 = vmatprep.subr.bf16.mxu0 0
    %3124 = vmatpush1.bf16.msra.mxu0 %v738
    %3125 = vmatprep.subr.bf16.mxu0 0
    %3126 = vmatpush1.bf16.msra.mxu0 %v739
    %3127 = vmatprep.mubr.bf16.mxu0 %v2966
    %3128 = vmatmul.mubr.bf16.gmra.mrb[0].mxu0 %v2965
    %v3129 = vpop.f32.mrb[0].mxu0
    %v3130 = vadd.f32 %v3090, %v3129
    %v3131 = vpop.f32.mrb[0].mxu0
    %v3132 = vpop.f32.mrb[0].mxu0
    %v3133 = vpop.f32.mrb[0].mxu0
    %3134 = vdwg.mxu0
    %v3135 = vadd.f32 %v3130, %v356
    %v3136 = vtanh.pop %v3135
    %v3137 = vadd.f32 %v3130, %v357
    %v3138 = vtanh.pop %v3137
    %v3139 = vmul.f32 %v3136, 1.5
    %v3140 = vmul.f32 %v3138, 0.5
    %v3141 = vsub.f32 %v3139, %v3140
    %v3142 = vpack.c.bf16 %v3141, %v3141
    %3143 = vmatprep.subr.bf16.mxu0 %v1165
    %3144 = vmatpush1.bf16.msra.mxu0 %v1164
    %3145 = vmatprep.subr.bf16.mxu0 %v1173
    %3146 = vmatpush1.bf16.msra.mxu0 %v1172
    %3147 = vmatprep.subr.bf16.mxu0 %v1181
    %3148 = vmatpush1.bf16.msra.mxu0 %v1180
    %3149 = vmatprep.subr.bf16.mxu0 %v1189
    %3150 = vmatpush1.bf16.msra.mxu0 %v1188
    %3151 = vmatprep.subr.bf16.mxu0 %v1197
    %3152 = vmatpush1.bf16.msra.mxu0 %v1196
    %3153 = vmatprep.subr.bf16.mxu0 %v1205
    %3154 = vmatpush1.bf16.msra.mxu0 %v1204
    %3155 = vmatprep.subr.bf16.mxu0 %v1213
    %3156 = vmatpush1.bf16.msra.mxu0 %v1212
    %3157 = vmatprep.subr.bf16.mxu0 %v1221
    %3158 = vmatpush1.bf16.msra.mxu0 %v1220
    %3159 = vmatprep.subr.bf16.mxu0 0
    %3160 = vmatpush1.bf16.msra.mxu0 0
    %3161 = vmatprep.subr.bf16.mxu0 0
    %3162 = vmatpush1.bf16.msra.mxu0 0
    %3163 = vmatprep.subr.bf16.mxu0 0
    %3164 = vmatpush1.bf16.msra.mxu0 0
    %3165 = vmatprep.subr.bf16.mxu0 0
    %3166 = vmatpush1.bf16.msra.mxu0 0
    %3167 = vmatprep.subr.bf16.mxu0 0
    %3168 = vmatpush1.bf16.msra.mxu0 0
    %3169 = vmatprep.subr.bf16.mxu0 0
    %3170 = vmatpush1.bf16.msra.mxu0 0
    %3171 = vmatprep.subr.bf16.mxu0 0
    %3172 = vmatpush1.bf16.msra.mxu0 0
    %3173 = vmatprep.subr.bf16.mxu0 0
    %3174 = vmatpush1.bf16.msra.mxu0 0
    %3175 = vmatprep.mubr.bf16.mxu0 0
    %3176 = vmatmul.mubr.bf16.gmra.mrb[0].mxu0 %v3142
    %v3177 = vpop.f32.mrb[0].mxu0
    %v3178 = vadd.f32 0.0, %v3177
    %v3179 = vpop.f32.mrb[0].mxu0
    %v3180 = vadd.f32 0.0, %v3179
    %v3181 = vpop.f32.mrb[0].mxu0
    %v3182 = vpop.f32.mrb[0].mxu0
    %3183 = vdwg.mxu0
    %3184 = vmatprep.subr.bf16.mxu0 %v1167
    %3185 = vmatpush1.bf16.msra.mxu0 %v1166
    %3186 = vmatprep.subr.bf16.mxu0 %v1175
    %3187 = vmatpush1.bf16.msra.mxu0 %v1174
    %3188 = vmatprep.subr.bf16.mxu0 %v1183
    %3189 = vmatpush1.bf16.msra.mxu0 %v1182
    %3190 = vmatprep.subr.bf16.mxu0 %v1191
    %3191 = vmatpush1.bf16.msra.mxu0 %v1190
    %3192 = vmatprep.subr.bf16.mxu0 %v1199
    %3193 = vmatpush1.bf16.msra.mxu0 %v1198
    %3194 = vmatprep.subr.bf16.mxu0 %v1207
    %3195 = vmatpush1.bf16.msra.mxu0 %v1206
    %3196 = vmatprep.subr.bf16.mxu0 %v1215
    %3197 = vmatpush1.bf16.msra.mxu0 %v1214
    %3198 = vmatprep.subr.bf16.mxu0 %v1223
    %3199 = vmatpush1.bf16.msra.mxu0 %v1222
    %3200 = vmatprep.subr.bf16.mxu0 0
    %3201 = vmatpush1.bf16.msra.mxu0 0
    %3202 = vmatprep.subr.bf16.mxu0 0
    %3203 = vmatpush1.bf16.msra.mxu0 0
    %3204 = vmatprep.subr.bf16.mxu0 0
    %3205 = vmatpush1.bf16.msra.mxu0 0
    %3206 = vmatprep.subr.bf16.mxu0 0
    %3207 = vmatpush1.bf16.msra.mxu0 0
    %3208 = vmatprep.subr.bf16.mxu0 0
    %3209 = vmatpush1.bf16.msra.mxu0 0
    %3210 = vmatprep.subr.bf16.mxu0 0
    %3211 = vmatpush1.bf16.msra.mxu0 0
    %3212 = vmatprep.subr.bf16.mxu0 0
    %3213 = vmatpush1.bf16.msra.mxu0 0
    %3214 = vmatprep.subr.bf16.mxu0 0
    %3215 = vmatpush1.bf16.msra.mxu0 0
    %3216 = vmatprep.mubr.bf16.mxu0 0
    %3217 = vmatmul.mubr.bf16.gmra.mrb[0].mxu0 %v3142
    %v3218 = vpop.f32.mrb[0].mxu0
    %v3219 = vadd.f32 0.0, %v3218
    %v3220 = vpop.f32.mrb[0].mxu0
    %v3221 = vadd.f32 0.0, %v3220
    %v3222 = vpop.f32.mrb[0].mxu0
    %v3223 = vpop.f32.mrb[0].mxu0
    %3224 = vdwg.mxu0
    %3225 = vmatprep.subr.bf16.mxu0 %v1169
    %3226 = vmatpush1.bf16.msra.mxu0 %v1168
    %3227 = vmatprep.subr.bf16.mxu0 %v1177
    %3228 = vmatpush1.bf16.msra.mxu0 %v1176
    %3229 = vmatprep.subr.bf16.mxu0 %v1185
    %3230 = vmatpush1.bf16.msra.mxu0 %v1184
    %3231 = vmatprep.subr.bf16.mxu0 %v1193
    %3232 = vmatpush1.bf16.msra.mxu0 %v1192
    %3233 = vmatprep.subr.bf16.mxu0 %v1201
    %3234 = vmatpush1.bf16.msra.mxu0 %v1200
    %3235 = vmatprep.subr.bf16.mxu0 %v1209
    %3236 = vmatpush1.bf16.msra.mxu0 %v1208
    %3237 = vmatprep.subr.bf16.mxu0 %v1217
    %3238 = vmatpush1.bf16.msra.mxu0 %v1216
    %3239 = vmatprep.subr.bf16.mxu0 %v1225
    %3240 = vmatpush1.bf16.msra.mxu0 %v1224
    %3241 = vmatprep.subr.bf16.mxu0 0
    %3242 = vmatpush1.bf16.msra.mxu0 0
    %3243 = vmatprep.subr.bf16.mxu0 0
    %3244 = vmatpush1.bf16.msra.mxu0 0
    %3245 = vmatprep.subr.bf16.mxu0 0
    %3246 = vmatpush1.bf16.msra.mxu0 0
    %3247 = vmatprep.subr.bf16.mxu0 0
    %3248 = vmatpush1.bf16.msra.mxu0 0
    %3249 = vmatprep.subr.bf16.mxu0 0
    %3250 = vmatpush1.bf16.msra.mxu0 0
    %3251 = vmatprep.subr.bf16.mxu0 0
    %3252 = vmatpush1.bf16.msra.mxu0 0
    %3253 = vmatprep.subr.bf16.mxu0 0
    %3254 = vmatpush1.bf16.msra.mxu0 0
    %3255 = vmatprep.subr.bf16.mxu0 0
    %3256 = vmatpush1.bf16.msra.mxu0 0
    %3257 = vmatprep.mubr.bf16.mxu0 0
    %3258 = vmatmul.mubr.bf16.gmra.mrb[0].mxu0 %v3142
    %v3259 = vpop.f32.mrb[0].mxu0
    %v3260 = vadd.f32 0.0, %v3259
    %v3261 = vpop.f32.mrb[0].mxu0
    %v3262 = vadd.f32 0.0, %v3261
    %v3263 = vpop.f32.mrb[0].mxu0
    %v3264 = vpop.f32.mrb[0].mxu0
    %3265 = vdwg.mxu0
    %3266 = vmatprep.subr.bf16.mxu0 %v1171
    %3267 = vmatpush1.bf16.msra.mxu0 %v1170
    %3268 = vmatprep.subr.bf16.mxu0 %v1179
    %3269 = vmatpush1.bf16.msra.mxu0 %v1178
    %3270 = vmatprep.subr.bf16.mxu0 %v1187
    %3271 = vmatpush1.bf16.msra.mxu0 %v1186
    %3272 = vmatprep.subr.bf16.mxu0 %v1195
    %3273 = vmatpush1.bf16.msra.mxu0 %v1194
    %3274 = vmatprep.subr.bf16.mxu0 %v1203
    %3275 = vmatpush1.bf16.msra.mxu0 %v1202
    %3276 = vmatprep.subr.bf16.mxu0 %v1211
    %3277 = vmatpush1.bf16.msra.mxu0 %v1210
    %3278 = vmatprep.subr.bf16.mxu0 %v1219
    %3279 = vmatpush1.bf16.msra.mxu0 %v1218
    %3280 = vmatprep.subr.bf16.mxu0 %v1227
    %3281 = vmatpush1.bf16.msra.mxu0 %v1226
    %3282 = vmatprep.subr.bf16.mxu0 0
    %3283 = vmatpush1.bf16.msra.mxu0 0
    %3284 = vmatprep.subr.bf16.mxu0 0
    %3285 = vmatpush1.bf16.msra.mxu0 0
    %3286 = vmatprep.subr.bf16.mxu0 0
    %3287 = vmatpush1.bf16.msra.mxu0 0
    %3288 = vmatprep.subr.bf16.mxu0 0
    %3289 = vmatpush1.bf16.msra.mxu0 0
    %3290 = vmatprep.subr.bf16.mxu0 0
    %3291 = vmatpush1.bf16.msra.mxu0 0
    %3292 = vmatprep.subr.bf16.mxu0 0
    %3293 = vmatpush1.bf16.msra.mxu0 0
    %3294 = vmatprep.subr.bf16.mxu0 0
    %3295 = vmatpush1.bf16.msra.mxu0 0
    %3296 = vmatprep.subr.bf16.mxu0 0
    %3297 = vmatpush1.bf16.msra.mxu0 0
    %3298 = vmatprep.mubr.bf16.mxu0 0
    %3299 = vmatmul.mubr.bf16.gmra.mrb[0].mxu0 %v3142
    %v3300 = vpop.f32.mrb[0].mxu0
    %v3301 = vadd.f32 0.0, %v3300
    %v3302 = vpop.f32.mrb[0].mxu0
    %v3303 = vadd.f32 0.0, %v3302
    %v3304 = vpop.f32.mrb[0].mxu0
    %v3305 = vpop.f32.mrb[0].mxu0
    %3306 = vdwg.mxu0
    %s3307 = sld [smem:[#allocation3 + %s2914]]
    %v3308 = vstv %s3307
    %v3309 = vmul.f32 %v3308, %v2912
    %v3310 = vmul.f32 %v3308, %v2913
    %s3311 = sld [smem:[#allocation7 + %s2914]]
    %v3312 = vstv %s3311
    %v3313 = vmul.f32 %v3312, %v3178
    %v3314 = vmul.f32 %v3312, %v3180
    %v3315 = vmul.f32 %v3312, %v3219
    %v3316 = vmul.f32 %v3312, %v3221
    %v3317 = vmul.f32 %v3312, %v3260
    %v3318 = vmul.f32 %v3312, %v3262
    %v3319 = vmul.f32 %v3312, %v3301
    %v3320 = vmul.f32 %v3312, %v3303
    %v3329 = vcombine.low %v3313, %v3314
    %v3330 = vcombine.low %v3315, %v3316
    %v3332 = vunpack.c.l.s4 1983009808
    %v3333 = vunpack.c.0.s8 %v3332
    %v3334 = vlaneseq
    %v3335 = vshrl.u32 %v3334, 7
    %v3336 = vsub.s32 %v3333, %v3335
    %v3337 = vrot.slane %v3329, %v3336
    %v3339 = vunpack.c.l.s4 1983009808
    %v3340 = vunpack.c.0.s8 %v3339
    %v3341 = vlaneseq
    %v3342 = vshrl.u32 %v3341, 7
    %v3343 = vsub.s32 %v3340, %v3342
    %v3344 = vrot.slane %v3330, %v3343
    %v3345 = vcombine.low %v3337, %v3344
    %v3346 = vcombine.low %v3317, %v3318
    %v3347 = vcombine.low %v3319, %v3320
    %v3349 = vunpack.c.l.s4 1983009808
    %v3350 = vunpack.c.0.s8 %v3349
    %v3351 = vlaneseq
    %v3352 = vshrl.u32 %v3351, 7
    %v3353 = vsub.s32 %v3350, %v3352
    %v3354 = vrot.slane %v3346, %v3353
    %v3356 = vunpack.c.l.s4 1983009808
    %v3357 = vunpack.c.0.s8 %v3356
    %v3358 = vlaneseq
    %v3359 = vshrl.u32 %v3358, 7
    %v3360 = vsub.s32 %v3357, %v3359
    %v3361 = vrot.slane %v3347, %v3360
    %v3362 = vcombine.low %v3354, %v3361
    %v3365 = vsub.f32 %v3309, %v3345
    %v3366 = vsub.f32 %v3310, %v3362
    %s3367 = scalar_lea.vmem [#allocation19], 32
    %v3368 = vld [vmem:[%s3367] sm:$0xff]
    %v3369 = vunpack.c.l.bf16 %v3368
    %v3370 = vunpack.c.h.bf16 %v3368
    %s3371 = sld [smem:[#allocation9 + %s2914]]
    %v3372 = vstv %s3371
    %v3373 = vmul.f32 %v3372, %v3369
    %v3374 = vmul.f32 %v3372, %v3370
    %v3375 = vadd.f32 %v3365, %v3373
    %v3376 = vadd.f32 %v3366, %v3374
    %s3377 = sadd.s32 %s360, 5
    %v3380 = vcombine.high %v3375, %v3375
    %v3382 = vunpack.c.l.s4 1983009808
    %v3383 = vunpack.c.0.s8 %v3382
    %v3384 = vlaneseq
    %v3385 = vshrl.u32 %v3384, 7
    %v3386 = vsub.s32 %v3383, %v3385
    %v3387 = vrot.slane %v3375, %v3386
    %v3389 = vunpack.c.l.s4 1983009808
    %v3390 = vunpack.c.0.s8 %v3389
    %v3391 = vlaneseq
    %v3392 = vshrl.u32 %v3391, 7
    %v3393 = vsub.s32 %v3390, %v3392
    %v3394 = vrot.slane %v3380, %v3393
    %v3395 = vcombine.high %v3387, %v3387
    %v3396 = vcombine.high %v3394, %v3394
    %v3397 = vcombine.high %v3376, %v3376
    %v3399 = vunpack.c.l.s4 1983009808
    %v3400 = vunpack.c.0.s8 %v3399
    %v3401 = vlaneseq
    %v3402 = vshrl.u32 %v3401, 7
    %v3403 = vsub.s32 %v3400, %v3402
    %v3404 = vrot.slane %v3376, %v3403
    %v3406 = vunpack.c.l.s4 1983009808
    %v3407 = vunpack.c.0.s8 %v3406
    %v3408 = vlaneseq
    %v3409 = vshrl.u32 %v3408, 7
    %v3410 = vsub.s32 %v3407, %v3409
    %v3411 = vrot.slane %v3397, %v3410
    %v3412 = vcombine.high %v3404, %v3404
    %v3413 = vcombine.high %v3411, %v3411
    %v3422 = vpack.c.bf16 %v3387, %v3387
    %v3423 = vpack.c.bf16 %v3395, %v3395
    %v3424 = vpack.c.bf16 %v3394, %v3394
    %v3425 = vpack.c.bf16 %v3396, %v3396
    %v3426 = vpack.c.bf16 %v3404, %v3404
    %v3427 = vpack.c.bf16 %v3412, %v3412
    %v3428 = vpack.c.bf16 %v3411, %v3411
    %v3429 = vpack.c.bf16 %v3413, %v3413
    %s3430 = scalar_lea.vmem [#allocation17], 5
    %v3431 = vld [vmem:[%s3430] sm:$0x1]
    %v3433 = vlaneseq
    %v3434 = vshrl.u32 %v3433, 7
    %v3435 = vsub.s32 0, %v3434
    %v3436 = vrot.slane %v3431, %v3435
    %3438 = vmatprep.subr.bf16.mxu0 0
    %3439 = vmatpush1.bf16.msra.mxu0 %v676
    %3440 = vmatprep.subr.bf16.mxu0 0
    %3441 = vmatpush1.bf16.msra.mxu0 %v677
    %3442 = vmatprep.subr.bf16.mxu0 0
    %3443 = vmatpush1.bf16.msra.mxu0 %v678
    %3444 = vmatprep.subr.bf16.mxu0 0
    %3445 = vmatpush1.bf16.msra.mxu0 %v679
    %3446 = vmatprep.subr.bf16.mxu0 0
    %3447 = vmatpush1.bf16.msra.mxu0 %v680
    %3448 = vmatprep.subr.bf16.mxu0 0
    %3449 = vmatpush1.bf16.msra.mxu0 %v681
    %3450 = vmatprep.subr.bf16.mxu0 0
    %3451 = vmatpush1.bf16.msra.mxu0 %v682
    %3452 = vmatprep.subr.bf16.mxu0 0
    %3453 = vmatpush1.bf16.msra.mxu0 %v683
    %3454 = vmatprep.subr.bf16.mxu0 0
    %3455 = vmatpush1.bf16.msra.mxu0 %v684
    %3456 = vmatprep.subr.bf16.mxu0 0
    %3457 = vmatpush1.bf16.msra.mxu0 %v685
    %3458 = vmatprep.subr.bf16.mxu0 0
    %3459 = vmatpush1.bf16.msra.mxu0 %v686
    %3460 = vmatprep.subr.bf16.mxu0 0
    %3461 = vmatpush1.bf16.msra.mxu0 %v687
    %3462 = vmatprep.subr.bf16.mxu0 0
    %3463 = vmatpush1.bf16.msra.mxu0 %v688
    %3464 = vmatprep.subr.bf16.mxu0 0
    %3465 = vmatpush1.bf16.msra.mxu0 %v689
    %3466 = vmatprep.subr.bf16.mxu0 0
    %3467 = vmatpush1.bf16.msra.mxu0 %v690
    %3468 = vmatprep.subr.bf16.mxu0 0
    %3469 = vmatpush1.bf16.msra.mxu0 %v691
    %3470 = vmatprep.mubr.bf16.mxu0 %v3423
    %3471 = vmatmul.mubr.bf16.gmra.mrb[0].mxu0 %v3422
    %v3472 = vpop.f32.mrb[0].mxu0
    %v3473 = vadd.f32 %v3436, %v3472
    %v3474 = vpop.f32.mrb[0].mxu0
    %v3475 = vpop.f32.mrb[0].mxu0
    %v3476 = vpop.f32.mrb[0].mxu0
    %3477 = vdwg.mxu0
    %3478 = vmatprep.subr.bf16.mxu0 0
    %3479 = vmatpush1.bf16.msra.mxu0 %v692
    %3480 = vmatprep.subr.bf16.mxu0 0
    %3481 = vmatpush1.bf16.msra.mxu0 %v693
    %3482 = vmatprep.subr.bf16.mxu0 0
    %3483 = vmatpush1.bf16.msra.mxu0 %v694
    %3484 = vmatprep.subr.bf16.mxu0 0
    %3485 = vmatpush1.bf16.msra.mxu0 %v695
    %3486 = vmatprep.subr.bf16.mxu0 0
    %3487 = vmatpush1.bf16.msra.mxu0 %v696
    %3488 = vmatprep.subr.bf16.mxu0 0
    %3489 = vmatpush1.bf16.msra.mxu0 %v697
    %3490 = vmatprep.subr.bf16.mxu0 0
    %3491 = vmatpush1.bf16.msra.mxu0 %v698
    %3492 = vmatprep.subr.bf16.mxu0 0
    %3493 = vmatpush1.bf16.msra.mxu0 %v699
    %3494 = vmatprep.subr.bf16.mxu0 0
    %3495 = vmatpush1.bf16.msra.mxu0 %v700
    %3496 = vmatprep.subr.bf16.mxu0 0
    %3497 = vmatpush1.bf16.msra.mxu0 %v701
    %3498 = vmatprep.subr.bf16.mxu0 0
    %3499 = vmatpush1.bf16.msra.mxu0 %v702
    %3500 = vmatprep.subr.bf16.mxu0 0
    %3501 = vmatpush1.bf16.msra.mxu0 %v703
    %3502 = vmatprep.subr.bf16.mxu0 0
    %3503 = vmatpush1.bf16.msra.mxu0 %v704
    %3504 = vmatprep.subr.bf16.mxu0 0
    %3505 = vmatpush1.bf16.msra.mxu0 %v705
    %3506 = vmatprep.subr.bf16.mxu0 0
    %3507 = vmatpush1.bf16.msra.mxu0 %v706
    %3508 = vmatprep.subr.bf16.mxu0 0
    %3509 = vmatpush1.bf16.msra.mxu0 %v707
    %3510 = vmatprep.mubr.bf16.mxu0 %v3425
    %3511 = vmatmul.mubr.bf16.gmra.mrb[0].mxu0 %v3424
    %v3512 = vpop.f32.mrb[0].mxu0
    %v3513 = vadd.f32 %v3473, %v3512
    %v3514 = vpop.f32.mrb[0].mxu0
    %v3515 = vpop.f32.mrb[0].mxu0
    %v3516 = vpop.f32.mrb[0].mxu0
    %3517 = vdwg.mxu0
    %3518 = vmatprep.subr.bf16.mxu0 0
    %3519 = vmatpush1.bf16.msra.mxu0 %v708
    %3520 = vmatprep.subr.bf16.mxu0 0
    %3521 = vmatpush1.bf16.msra.mxu0 %v709
    %3522 = vmatprep.subr.bf16.mxu0 0
    %3523 = vmatpush1.bf16.msra.mxu0 %v710
    %3524 = vmatprep.subr.bf16.mxu0 0
    %3525 = vmatpush1.bf16.msra.mxu0 %v711
    %3526 = vmatprep.subr.bf16.mxu0 0
    %3527 = vmatpush1.bf16.msra.mxu0 %v712
    %3528 = vmatprep.subr.bf16.mxu0 0
    %3529 = vmatpush1.bf16.msra.mxu0 %v713
    %3530 = vmatprep.subr.bf16.mxu0 0
    %3531 = vmatpush1.bf16.msra.mxu0 %v714
    %3532 = vmatprep.subr.bf16.mxu0 0
    %3533 = vmatpush1.bf16.msra.mxu0 %v715
    %3534 = vmatprep.subr.bf16.mxu0 0
    %3535 = vmatpush1.bf16.msra.mxu0 %v716
    %3536 = vmatprep.subr.bf16.mxu0 0
    %3537 = vmatpush1.bf16.msra.mxu0 %v717
    %3538 = vmatprep.subr.bf16.mxu0 0
    %3539 = vmatpush1.bf16.msra.mxu0 %v718
    %3540 = vmatprep.subr.bf16.mxu0 0
    %3541 = vmatpush1.bf16.msra.mxu0 %v719
    %3542 = vmatprep.subr.bf16.mxu0 0
    %3543 = vmatpush1.bf16.msra.mxu0 %v720
    %3544 = vmatprep.subr.bf16.mxu0 0
    %3545 = vmatpush1.bf16.msra.mxu0 %v721
    %3546 = vmatprep.subr.bf16.mxu0 0
    %3547 = vmatpush1.bf16.msra.mxu0 %v722
    %3548 = vmatprep.subr.bf16.mxu0 0
    %3549 = vmatpush1.bf16.msra.mxu0 %v723
    %3550 = vmatprep.mubr.bf16.mxu0 %v3427
    %3551 = vmatmul.mubr.bf16.gmra.mrb[0].mxu0 %v3426
    %v3552 = vpop.f32.mrb[0].mxu0
    %v3553 = vadd.f32 %v3513, %v3552
    %v3554 = vpop.f32.mrb[0].mxu0
    %v3555 = vpop.f32.mrb[0].mxu0
    %v3556 = vpop.f32.mrb[0].mxu0
    %3557 = vdwg.mxu0
    %3558 = vmatprep.subr.bf16.mxu0 0
    %3559 = vmatpush1.bf16.msra.mxu0 %v724
    %3560 = vmatprep.subr.bf16.mxu0 0
    %3561 = vmatpush1.bf16.msra.mxu0 %v725
    %3562 = vmatprep.subr.bf16.mxu0 0
    %3563 = vmatpush1.bf16.msra.mxu0 %v726
    %3564 = vmatprep.subr.bf16.mxu0 0
    %3565 = vmatpush1.bf16.msra.mxu0 %v727
    %3566 = vmatprep.subr.bf16.mxu0 0
    %3567 = vmatpush1.bf16.msra.mxu0 %v728
    %3568 = vmatprep.subr.bf16.mxu0 0
    %3569 = vmatpush1.bf16.msra.mxu0 %v729
    %3570 = vmatprep.subr.bf16.mxu0 0
    %3571 = vmatpush1.bf16.msra.mxu0 %v730
    %3572 = vmatprep.subr.bf16.mxu0 0
    %3573 = vmatpush1.bf16.msra.mxu0 %v731
    %3574 = vmatprep.subr.bf16.mxu0 0
    %3575 = vmatpush1.bf16.msra.mxu0 %v732
    %3576 = vmatprep.subr.bf16.mxu0 0
    %3577 = vmatpush1.bf16.msra.mxu0 %v733
    %3578 = vmatprep.subr.bf16.mxu0 0
    %3579 = vmatpush1.bf16.msra.mxu0 %v734
    %3580 = vmatprep.subr.bf16.mxu0 0
    %3581 = vmatpush1.bf16.msra.mxu0 %v735
    %3582 = vmatprep.subr.bf16.mxu0 0
    %3583 = vmatpush1.bf16.msra.mxu0 %v736
    %3584 = vmatprep.subr.bf16.mxu0 0
    %3585 = vmatpush1.bf16.msra.mxu0 %v737
    %3586 = vmatprep.subr.bf16.mxu0 0
    %3587 = vmatpush1.bf16.msra.mxu0 %v738
    %3588 = vmatprep.subr.bf16.mxu0 0
    %3589 = vmatpush1.bf16.msra.mxu0 %v739
    %3590 = vmatprep.mubr.bf16.mxu0 %v3429
    %3591 = vmatmul.mubr.bf16.gmra.mrb[0].mxu0 %v3428
    %v3592 = vpop.f32.mrb[0].mxu0
    %v3593 = vadd.f32 %v3553, %v3592
    %v3594 = vpop.f32.mrb[0].mxu0
    %v3595 = vpop.f32.mrb[0].mxu0
    %v3596 = vpop.f32.mrb[0].mxu0
    %3597 = vdwg.mxu0
    %v3598 = vadd.f32 %v3593, %v356
    %v3599 = vtanh.pop %v3598
    %v3600 = vadd.f32 %v3593, %v357
    %v3601 = vtanh.pop %v3600
    %v3602 = vmul.f32 %v3599, 1.5
    %v3603 = vmul.f32 %v3601, 0.5
    %v3604 = vsub.f32 %v3602, %v3603
    %v3605 = vpack.c.bf16 %v3604, %v3604
    %3606 = vmatprep.subr.bf16.mxu0 %v1165
    %3607 = vmatpush1.bf16.msra.mxu0 %v1164
    %3608 = vmatprep.subr.bf16.mxu0 %v1173
    %3609 = vmatpush1.bf16.msra.mxu0 %v1172
    %3610 = vmatprep.subr.bf16.mxu0 %v1181
    %3611 = vmatpush1.bf16.msra.mxu0 %v1180
    %3612 = vmatprep.subr.bf16.mxu0 %v1189
    %3613 = vmatpush1.bf16.msra.mxu0 %v1188
    %3614 = vmatprep.subr.bf16.mxu0 %v1197
    %3615 = vmatpush1.bf16.msra.mxu0 %v1196
    %3616 = vmatprep.subr.bf16.mxu0 %v1205
    %3617 = vmatpush1.bf16.msra.mxu0 %v1204
    %3618 = vmatprep.subr.bf16.mxu0 %v1213
    %3619 = vmatpush1.bf16.msra.mxu0 %v1212
    %3620 = vmatprep.subr.bf16.mxu0 %v1221
    %3621 = vmatpush1.bf16.msra.mxu0 %v1220
    %3622 = vmatprep.subr.bf16.mxu0 0
    %3623 = vmatpush1.bf16.msra.mxu0 0
    %3624 = vmatprep.subr.bf16.mxu0 0
    %3625 = vmatpush1.bf16.msra.mxu0 0
    %3626 = vmatprep.subr.bf16.mxu0 0
    %3627 = vmatpush1.bf16.msra.mxu0 0
    %3628 = vmatprep.subr.bf16.mxu0 0
    %3629 = vmatpush1.bf16.msra.mxu0 0
    %3630 = vmatprep.subr.bf16.mxu0 0
    %3631 = vmatpush1.bf16.msra.mxu0 0
    %3632 = vmatprep.subr.bf16.mxu0 0
    %3633 = vmatpush1.bf16.msra.mxu0 0
    %3634 = vmatprep.subr.bf16.mxu0 0
    %3635 = vmatpush1.bf16.msra.mxu0 0
    %3636 = vmatprep.subr.bf16.mxu0 0
    %3637 = vmatpush1.bf16.msra.mxu0 0
    %3638 = vmatprep.mubr.bf16.mxu0 0
    %3639 = vmatmul.mubr.bf16.gmra.mrb[0].mxu0 %v3605
    %v3640 = vpop.f32.mrb[0].mxu0
    %v3641 = vadd.f32 0.0, %v3640
    %v3642 = vpop.f32.mrb[0].mxu0
    %v3643 = vadd.f32 0.0, %v3642
    %v3644 = vpop.f32.mrb[0].mxu0
    %v3645 = vpop.f32.mrb[0].mxu0
    %3646 = vdwg.mxu0
    %3647 = vmatprep.subr.bf16.mxu0 %v1167
    %3648 = vmatpush1.bf16.msra.mxu0 %v1166
    %3649 = vmatprep.subr.bf16.mxu0 %v1175
    %3650 = vmatpush1.bf16.msra.mxu0 %v1174
    %3651 = vmatprep.subr.bf16.mxu0 %v1183
    %3652 = vmatpush1.bf16.msra.mxu0 %v1182
    %3653 = vmatprep.subr.bf16.mxu0 %v1191
    %3654 = vmatpush1.bf16.msra.mxu0 %v1190
    %3655 = vmatprep.subr.bf16.mxu0 %v1199
    %3656 = vmatpush1.bf16.msra.mxu0 %v1198
    %3657 = vmatprep.subr.bf16.mxu0 %v1207
    %3658 = vmatpush1.bf16.msra.mxu0 %v1206
    %3659 = vmatprep.subr.bf16.mxu0 %v1215
    %3660 = vmatpush1.bf16.msra.mxu0 %v1214
    %3661 = vmatprep.subr.bf16.mxu0 %v1223
    %3662 = vmatpush1.bf16.msra.mxu0 %v1222
    %3663 = vmatprep.subr.bf16.mxu0 0
    %3664 = vmatpush1.bf16.msra.mxu0 0
    %3665 = vmatprep.subr.bf16.mxu0 0
    %3666 = vmatpush1.bf16.msra.mxu0 0
    %3667 = vmatprep.subr.bf16.mxu0 0
    %3668 = vmatpush1.bf16.msra.mxu0 0
    %3669 = vmatprep.subr.bf16.mxu0 0
    %3670 = vmatpush1.bf16.msra.mxu0 0
    %3671 = vmatprep.subr.bf16.mxu0 0
    %3672 = vmatpush1.bf16.msra.mxu0 0
    %3673 = vmatprep.subr.bf16.mxu0 0
    %3674 = vmatpush1.bf16.msra.mxu0 0
    %3675 = vmatprep.subr.bf16.mxu0 0
    %3676 = vmatpush1.bf16.msra.mxu0 0
    %3677 = vmatprep.subr.bf16.mxu0 0
    %3678 = vmatpush1.bf16.msra.mxu0 0
    %3679 = vmatprep.mubr.bf16.mxu0 0
    %3680 = vmatmul.mubr.bf16.gmra.mrb[0].mxu0 %v3605
    %v3681 = vpop.f32.mrb[0].mxu0
    %v3682 = vadd.f32 0.0, %v3681
    %v3683 = vpop.f32.mrb[0].mxu0
    %v3684 = vadd.f32 0.0, %v3683
    %v3685 = vpop.f32.mrb[0].mxu0
    %v3686 = vpop.f32.mrb[0].mxu0
    %3687 = vdwg.mxu0
    %3688 = vmatprep.subr.bf16.mxu0 %v1169
    %3689 = vmatpush1.bf16.msra.mxu0 %v1168
    %3690 = vmatprep.subr.bf16.mxu0 %v1177
    %3691 = vmatpush1.bf16.msra.mxu0 %v1176
    %3692 = vmatprep.subr.bf16.mxu0 %v1185
    %3693 = vmatpush1.bf16.msra.mxu0 %v1184
    %3694 = vmatprep.subr.bf16.mxu0 %v1193
    %3695 = vmatpush1.bf16.msra.mxu0 %v1192
    %3696 = vmatprep.subr.bf16.mxu0 %v1201
    %3697 = vmatpush1.bf16.msra.mxu0 %v1200
    %3698 = vmatprep.subr.bf16.mxu0 %v1209
    %3699 = vmatpush1.bf16.msra.mxu0 %v1208
    %3700 = vmatprep.subr.bf16.mxu0 %v1217
    %3701 = vmatpush1.bf16.msra.mxu0 %v1216
    %3702 = vmatprep.subr.bf16.mxu0 %v1225
    %3703 = vmatpush1.bf16.msra.mxu0 %v1224
    %3704 = vmatprep.subr.bf16.mxu0 0
    %3705 = vmatpush1.bf16.msra.mxu0 0
    %3706 = vmatprep.subr.bf16.mxu0 0
    %3707 = vmatpush1.bf16.msra.mxu0 0
    %3708 = vmatprep.subr.bf16.mxu0 0
    %3709 = vmatpush1.bf16.msra.mxu0 0
    %3710 = vmatprep.subr.bf16.mxu0 0
    %3711 = vmatpush1.bf16.msra.mxu0 0
    %3712 = vmatprep.subr.bf16.mxu0 0
    %3713 = vmatpush1.bf16.msra.mxu0 0
    %3714 = vmatprep.subr.bf16.mxu0 0
    %3715 = vmatpush1.bf16.msra.mxu0 0
    %3716 = vmatprep.subr.bf16.mxu0 0
    %3717 = vmatpush1.bf16.msra.mxu0 0
    %3718 = vmatprep.subr.bf16.mxu0 0
    %3719 = vmatpush1.bf16.msra.mxu0 0
    %3720 = vmatprep.mubr.bf16.mxu0 0
    %3721 = vmatmul.mubr.bf16.gmra.mrb[0].mxu0 %v3605
    %v3722 = vpop.f32.mrb[0].mxu0
    %v3723 = vadd.f32 0.0, %v3722
    %v3724 = vpop.f32.mrb[0].mxu0
    %v3725 = vadd.f32 0.0, %v3724
    %v3726 = vpop.f32.mrb[0].mxu0
    %v3727 = vpop.f32.mrb[0].mxu0
    %3728 = vdwg.mxu0
    %3729 = vmatprep.subr.bf16.mxu0 %v1171
    %3730 = vmatpush1.bf16.msra.mxu0 %v1170
    %3731 = vmatprep.subr.bf16.mxu0 %v1179
    %3732 = vmatpush1.bf16.msra.mxu0 %v1178
    %3733 = vmatprep.subr.bf16.mxu0 %v1187
    %3734 = vmatpush1.bf16.msra.mxu0 %v1186
    %3735 = vmatprep.subr.bf16.mxu0 %v1195
    %3736 = vmatpush1.bf16.msra.mxu0 %v1194
    %3737 = vmatprep.subr.bf16.mxu0 %v1203
    %3738 = vmatpush1.bf16.msra.mxu0 %v1202
    %3739 = vmatprep.subr.bf16.mxu0 %v1211
    %3740 = vmatpush1.bf16.msra.mxu0 %v1210
    %3741 = vmatprep.subr.bf16.mxu0 %v1219
    %3742 = vmatpush1.bf16.msra.mxu0 %v1218
    %3743 = vmatprep.subr.bf16.mxu0 %v1227
    %3744 = vmatpush1.bf16.msra.mxu0 %v1226
    %3745 = vmatprep.subr.bf16.mxu0 0
    %3746 = vmatpush1.bf16.msra.mxu0 0
    %3747 = vmatprep.subr.bf16.mxu0 0
    %3748 = vmatpush1.bf16.msra.mxu0 0
    %3749 = vmatprep.subr.bf16.mxu0 0
    %3750 = vmatpush1.bf16.msra.mxu0 0
    %3751 = vmatprep.subr.bf16.mxu0 0
    %3752 = vmatpush1.bf16.msra.mxu0 0
    %3753 = vmatprep.subr.bf16.mxu0 0
    %3754 = vmatpush1.bf16.msra.mxu0 0
    %3755 = vmatprep.subr.bf16.mxu0 0
    %3756 = vmatpush1.bf16.msra.mxu0 0
    %3757 = vmatprep.subr.bf16.mxu0 0
    %3758 = vmatpush1.bf16.msra.mxu0 0
    %3759 = vmatprep.subr.bf16.mxu0 0
    %3760 = vmatpush1.bf16.msra.mxu0 0
    %3761 = vmatprep.mubr.bf16.mxu0 0
    %3762 = vmatmul.mubr.bf16.gmra.mrb[0].mxu0 %v3605
    %v3763 = vpop.f32.mrb[0].mxu0
    %v3764 = vadd.f32 0.0, %v3763
    %v3765 = vpop.f32.mrb[0].mxu0
    %v3766 = vadd.f32 0.0, %v3765
    %v3767 = vpop.f32.mrb[0].mxu0
    %v3768 = vpop.f32.mrb[0].mxu0
    %3769 = vdwg.mxu0
    %s3770 = sld [smem:[#allocation3 + %s3377]]
    %v3771 = vstv %s3770
    %v3772 = vmul.f32 %v3771, %v3375
    %v3773 = vmul.f32 %v3771, %v3376
    %s3774 = sld [smem:[#allocation7 + %s3377]]
    %v3775 = vstv %s3774
    %v3776 = vmul.f32 %v3775, %v3641
    %v3777 = vmul.f32 %v3775, %v3643
    %v3778 = vmul.f32 %v3775, %v3682
    %v3779 = vmul.f32 %v3775, %v3684
    %v3780 = vmul.f32 %v3775, %v3723
    %v3781 = vmul.f32 %v3775, %v3725
    %v3782 = vmul.f32 %v3775, %v3764
    %v3783 = vmul.f32 %v3775, %v3766
    %v3792 = vcombine.low %v3776, %v3777
    %v3793 = vcombine.low %v3778, %v3779
    %v3795 = vunpack.c.l.s4 1983009808
    %v3796 = vunpack.c.0.s8 %v3795
    %v3797 = vlaneseq
    %v3798 = vshrl.u32 %v3797, 7
    %v3799 = vsub.s32 %v3796, %v3798
    %v3800 = vrot.slane %v3792, %v3799
    %v3802 = vunpack.c.l.s4 1983009808
    %v3803 = vunpack.c.0.s8 %v3802
    %v3804 = vlaneseq
    %v3805 = vshrl.u32 %v3804, 7
    %v3806 = vsub.s32 %v3803, %v3805
    %v3807 = vrot.slane %v3793, %v3806
    %v3808 = vcombine.low %v3800, %v3807
    %v3809 = vcombine.low %v3780, %v3781
    %v3810 = vcombine.low %v3782, %v3783
    %v3812 = vunpack.c.l.s4 1983009808
    %v3813 = vunpack.c.0.s8 %v3812
    %v3814 = vlaneseq
    %v3815 = vshrl.u32 %v3814, 7
    %v3816 = vsub.s32 %v3813, %v3815
    %v3817 = vrot.slane %v3809, %v3816
    %v3819 = vunpack.c.l.s4 1983009808
    %v3820 = vunpack.c.0.s8 %v3819
    %v3821 = vlaneseq
    %v3822 = vshrl.u32 %v3821, 7
    %v3823 = vsub.s32 %v3820, %v3822
    %v3824 = vrot.slane %v3810, %v3823
    %v3825 = vcombine.low %v3817, %v3824
    %v3828 = vsub.f32 %v3772, %v3808
    %v3829 = vsub.f32 %v3773, %v3825
    %s3830 = scalar_lea.vmem [#allocation19], 40
    %v3831 = vld [vmem:[%s3830] sm:$0xff]
    %v3832 = vunpack.c.l.bf16 %v3831
    %v3833 = vunpack.c.h.bf16 %v3831
    %s3834 = sld [smem:[#allocation9 + %s3377]]
    %v3835 = vstv %s3834
    %v3836 = vmul.f32 %v3835, %v3832
    %v3837 = vmul.f32 %v3835, %v3833
    %v3838 = vadd.f32 %v3828, %v3836
    %v3839 = vadd.f32 %v3829, %v3837
    %s3840 = sadd.s32 %s360, 6
    %v3843 = vcombine.high %v3838, %v3838
    %v3845 = vunpack.c.l.s4 1983009808
    %v3846 = vunpack.c.0.s8 %v3845
    %v3847 = vlaneseq
    %v3848 = vshrl.u32 %v3847, 7
    %v3849 = vsub.s32 %v3846, %v3848
    %v3850 = vrot.slane %v3838, %v3849
    %v3852 = vunpack.c.l.s4 1983009808
    %v3853 = vunpack.c.0.s8 %v3852
    %v3854 = vlaneseq
    %v3855 = vshrl.u32 %v3854, 7
    %v3856 = vsub.s32 %v3853, %v3855
    %v3857 = vrot.slane %v3843, %v3856
    %v3858 = vcombine.high %v3850, %v3850
    %v3859 = vcombine.high %v3857, %v3857
    %v3860 = vcombine.high %v3839, %v3839
    %v3862 = vunpack.c.l.s4 1983009808
    %v3863 = vunpack.c.0.s8 %v3862
    %v3864 = vlaneseq
    %v3865 = vshrl.u32 %v3864, 7
    %v3866 = vsub.s32 %v3863, %v3865
    %v3867 = vrot.slane %v3839, %v3866
    %v3869 = vunpack.c.l.s4 1983009808
    %v3870 = vunpack.c.0.s8 %v3869
    %v3871 = vlaneseq
    %v3872 = vshrl.u32 %v3871, 7
    %v3873 = vsub.s32 %v3870, %v3872
    %v3874 = vrot.slane %v3860, %v3873
    %v3875 = vcombine.high %v3867, %v3867
    %v3876 = vcombine.high %v3874, %v3874
    %v3885 = vpack.c.bf16 %v3850, %v3850
    %v3886 = vpack.c.bf16 %v3858, %v3858
    %v3887 = vpack.c.bf16 %v3857, %v3857
    %v3888 = vpack.c.bf16 %v3859, %v3859
    %v3889 = vpack.c.bf16 %v3867, %v3867
    %v3890 = vpack.c.bf16 %v3875, %v3875
    %v3891 = vpack.c.bf16 %v3874, %v3874
    %v3892 = vpack.c.bf16 %v3876, %v3876
    %s3893 = scalar_lea.vmem [#allocation17], 6
    %v3894 = vld [vmem:[%s3893] sm:$0x1]
    %v3896 = vlaneseq
    %v3897 = vshrl.u32 %v3896, 7
    %v3898 = vsub.s32 0, %v3897
    %v3899 = vrot.slane %v3894, %v3898
    %3901 = vmatprep.subr.bf16.mxu0 0
    %3902 = vmatpush1.bf16.msra.mxu0 %v676
    %3903 = vmatprep.subr.bf16.mxu0 0
    %3904 = vmatpush1.bf16.msra.mxu0 %v677
    %3905 = vmatprep.subr.bf16.mxu0 0
    %3906 = vmatpush1.bf16.msra.mxu0 %v678
    %3907 = vmatprep.subr.bf16.mxu0 0
    %3908 = vmatpush1.bf16.msra.mxu0 %v679
    %3909 = vmatprep.subr.bf16.mxu0 0
    %3910 = vmatpush1.bf16.msra.mxu0 %v680
    %3911 = vmatprep.subr.bf16.mxu0 0
    %3912 = vmatpush1.bf16.msra.mxu0 %v681
    %3913 = vmatprep.subr.bf16.mxu0 0
    %3914 = vmatpush1.bf16.msra.mxu0 %v682
    %3915 = vmatprep.subr.bf16.mxu0 0
    %3916 = vmatpush1.bf16.msra.mxu0 %v683
    %3917 = vmatprep.subr.bf16.mxu0 0
    %3918 = vmatpush1.bf16.msra.mxu0 %v684
    %3919 = vmatprep.subr.bf16.mxu0 0
    %3920 = vmatpush1.bf16.msra.mxu0 %v685
    %3921 = vmatprep.subr.bf16.mxu0 0
    %3922 = vmatpush1.bf16.msra.mxu0 %v686
    %3923 = vmatprep.subr.bf16.mxu0 0
    %3924 = vmatpush1.bf16.msra.mxu0 %v687
    %3925 = vmatprep.subr.bf16.mxu0 0
    %3926 = vmatpush1.bf16.msra.mxu0 %v688
    %3927 = vmatprep.subr.bf16.mxu0 0
    %3928 = vmatpush1.bf16.msra.mxu0 %v689
    %3929 = vmatprep.subr.bf16.mxu0 0
    %3930 = vmatpush1.bf16.msra.mxu0 %v690
    %3931 = vmatprep.subr.bf16.mxu0 0
    %3932 = vmatpush1.bf16.msra.mxu0 %v691
    %3933 = vmatprep.mubr.bf16.mxu0 %v3886
    %3934 = vmatmul.mubr.bf16.gmra.mrb[0].mxu0 %v3885
    %v3935 = vpop.f32.mrb[0].mxu0
    %v3936 = vadd.f32 %v3899, %v3935
    %v3937 = vpop.f32.mrb[0].mxu0
    %v3938 = vpop.f32.mrb[0].mxu0
    %v3939 = vpop.f32.mrb[0].mxu0
    %3940 = vdwg.mxu0
    %3941 = vmatprep.subr.bf16.mxu0 0
    %3942 = vmatpush1.bf16.msra.mxu0 %v692
    %3943 = vmatprep.subr.bf16.mxu0 0
    %3944 = vmatpush1.bf16.msra.mxu0 %v693
    %3945 = vmatprep.subr.bf16.mxu0 0
    %3946 = vmatpush1.bf16.msra.mxu0 %v694
    %3947 = vmatprep.subr.bf16.mxu0 0
    %3948 = vmatpush1.bf16.msra.mxu0 %v695
    %3949 = vmatprep.subr.bf16.mxu0 0
    %3950 = vmatpush1.bf16.msra.mxu0 %v696
    %3951 = vmatprep.subr.bf16.mxu0 0
    %3952 = vmatpush1.bf16.msra.mxu0 %v697
    %3953 = vmatprep.subr.bf16.mxu0 0
    %3954 = vmatpush1.bf16.msra.mxu0 %v698
    %3955 = vmatprep.subr.bf16.mxu0 0
    %3956 = vmatpush1.bf16.msra.mxu0 %v699
    %3957 = vmatprep.subr.bf16.mxu0 0
    %3958 = vmatpush1.bf16.msra.mxu0 %v700
    %3959 = vmatprep.subr.bf16.mxu0 0
    %3960 = vmatpush1.bf16.msra.mxu0 %v701
    %3961 = vmatprep.subr.bf16.mxu0 0
    %3962 = vmatpush1.bf16.msra.mxu0 %v702
    %3963 = vmatprep.subr.bf16.mxu0 0
    %3964 = vmatpush1.bf16.msra.mxu0 %v703
    %3965 = vmatprep.subr.bf16.mxu0 0
    %3966 = vmatpush1.bf16.msra.mxu0 %v704
    %3967 = vmatprep.subr.bf16.mxu0 0
    %3968 = vmatpush1.bf16.msra.mxu0 %v705
    %3969 = vmatprep.subr.bf16.mxu0 0
    %3970 = vmatpush1.bf16.msra.mxu0 %v706
    %3971 = vmatprep.subr.bf16.mxu0 0
    %3972 = vmatpush1.bf16.msra.mxu0 %v707
    %3973 = vmatprep.mubr.bf16.mxu0 %v3888
    %3974 = vmatmul.mubr.bf16.gmra.mrb[0].mxu0 %v3887
    %v3975 = vpop.f32.mrb[0].mxu0
    %v3976 = vadd.f32 %v3936, %v3975
    %v3977 = vpop.f32.mrb[0].mxu0
    %v3978 = vpop.f32.mrb[0].mxu0
    %v3979 = vpop.f32.mrb[0].mxu0
    %3980 = vdwg.mxu0
    %3981 = vmatprep.subr.bf16.mxu0 0
    %3982 = vmatpush1.bf16.msra.mxu0 %v708
    %3983 = vmatprep.subr.bf16.mxu0 0
    %3984 = vmatpush1.bf16.msra.mxu0 %v709
    %3985 = vmatprep.subr.bf16.mxu0 0
    %3986 = vmatpush1.bf16.msra.mxu0 %v710
    %3987 = vmatprep.subr.bf16.mxu0 0
    %3988 = vmatpush1.bf16.msra.mxu0 %v711
    %3989 = vmatprep.subr.bf16.mxu0 0
    %3990 = vmatpush1.bf16.msra.mxu0 %v712
    %3991 = vmatprep.subr.bf16.mxu0 0
    %3992 = vmatpush1.bf16.msra.mxu0 %v713
    %3993 = vmatprep.subr.bf16.mxu0 0
    %3994 = vmatpush1.bf16.msra.mxu0 %v714
    %3995 = vmatprep.subr.bf16.mxu0 0
    %3996 = vmatpush1.bf16.msra.mxu0 %v715
    %3997 = vmatprep.subr.bf16.mxu0 0
    %3998 = vmatpush1.bf16.msra.mxu0 %v716
    %3999 = vmatprep.subr.bf16.mxu0 0
    %4000 = vmatpush1.bf16.msra.mxu0 %v717
    %4001 = vmatprep.subr.bf16.mxu0 0
    %4002 = vmatpush1.bf16.msra.mxu0 %v718
    %4003 = vmatprep.subr.bf16.mxu0 0
    %4004 = vmatpush1.bf16.msra.mxu0 %v719
    %4005 = vmatprep.subr.bf16.mxu0 0
    %4006 = vmatpush1.bf16.msra.mxu0 %v720
    %4007 = vmatprep.subr.bf16.mxu0 0
    %4008 = vmatpush1.bf16.msra.mxu0 %v721
    %4009 = vmatprep.subr.bf16.mxu0 0
    %4010 = vmatpush1.bf16.msra.mxu0 %v722
    %4011 = vmatprep.subr.bf16.mxu0 0
    %4012 = vmatpush1.bf16.msra.mxu0 %v723
    %4013 = vmatprep.mubr.bf16.mxu0 %v3890
    %4014 = vmatmul.mubr.bf16.gmra.mrb[0].mxu0 %v3889
    %v4015 = vpop.f32.mrb[0].mxu0
    %v4016 = vadd.f32 %v3976, %v4015
    %v4017 = vpop.f32.mrb[0].mxu0
    %v4018 = vpop.f32.mrb[0].mxu0
    %v4019 = vpop.f32.mrb[0].mxu0
    %4020 = vdwg.mxu0
    %4021 = vmatprep.subr.bf16.mxu0 0
    %4022 = vmatpush1.bf16.msra.mxu0 %v724
    %4023 = vmatprep.subr.bf16.mxu0 0
    %4024 = vmatpush1.bf16.msra.mxu0 %v725
    %4025 = vmatprep.subr.bf16.mxu0 0
    %4026 = vmatpush1.bf16.msra.mxu0 %v726
    %4027 = vmatprep.subr.bf16.mxu0 0
    %4028 = vmatpush1.bf16.msra.mxu0 %v727
    %4029 = vmatprep.subr.bf16.mxu0 0
    %4030 = vmatpush1.bf16.msra.mxu0 %v728
    %4031 = vmatprep.subr.bf16.mxu0 0
    %4032 = vmatpush1.bf16.msra.mxu0 %v729
    %4033 = vmatprep.subr.bf16.mxu0 0
    %4034 = vmatpush1.bf16.msra.mxu0 %v730
    %4035 = vmatprep.subr.bf16.mxu0 0
    %4036 = vmatpush1.bf16.msra.mxu0 %v731
    %4037 = vmatprep.subr.bf16.mxu0 0
    %4038 = vmatpush1.bf16.msra.mxu0 %v732
    %4039 = vmatprep.subr.bf16.mxu0 0
    %4040 = vmatpush1.bf16.msra.mxu0 %v733
    %4041 = vmatprep.subr.bf16.mxu0 0
    %4042 = vmatpush1.bf16.msra.mxu0 %v734
    %4043 = vmatprep.subr.bf16.mxu0 0
    %4044 = vmatpush1.bf16.msra.mxu0 %v735
    %4045 = vmatprep.subr.bf16.mxu0 0
    %4046 = vmatpush1.bf16.msra.mxu0 %v736
    %4047 = vmatprep.subr.bf16.mxu0 0
    %4048 = vmatpush1.bf16.msra.mxu0 %v737
    %4049 = vmatprep.subr.bf16.mxu0 0
    %4050 = vmatpush1.bf16.msra.mxu0 %v738
    %4051 = vmatprep.subr.bf16.mxu0 0
    %4052 = vmatpush1.bf16.msra.mxu0 %v739
    %4053 = vmatprep.mubr.bf16.mxu0 %v3892
    %4054 = vmatmul.mubr.bf16.gmra.mrb[0].mxu0 %v3891
    %v4055 = vpop.f32.mrb[0].mxu0
    %v4056 = vadd.f32 %v4016, %v4055
    %v4057 = vpop.f32.mrb[0].mxu0
    %v4058 = vpop.f32.mrb[0].mxu0
    %v4059 = vpop.f32.mrb[0].mxu0
    %4060 = vdwg.mxu0
    %v4061 = vadd.f32 %v4056, %v356
    %v4062 = vtanh.pop %v4061
    %v4063 = vadd.f32 %v4056, %v357
    %v4064 = vtanh.pop %v4063
    %v4065 = vmul.f32 %v4062, 1.5
    %v4066 = vmul.f32 %v4064, 0.5
    %v4067 = vsub.f32 %v4065, %v4066
    %v4068 = vpack.c.bf16 %v4067, %v4067
    %4069 = vmatprep.subr.bf16.mxu0 %v1165
    %4070 = vmatpush1.bf16.msra.mxu0 %v1164
    %4071 = vmatprep.subr.bf16.mxu0 %v1173
    %4072 = vmatpush1.bf16.msra.mxu0 %v1172
    %4073 = vmatprep.subr.bf16.mxu0 %v1181
    %4074 = vmatpush1.bf16.msra.mxu0 %v1180
    %4075 = vmatprep.subr.bf16.mxu0 %v1189
    %4076 = vmatpush1.bf16.msra.mxu0 %v1188
    %4077 = vmatprep.subr.bf16.mxu0 %v1197
    %4078 = vmatpush1.bf16.msra.mxu0 %v1196
    %4079 = vmatprep.subr.bf16.mxu0 %v1205
    %4080 = vmatpush1.bf16.msra.mxu0 %v1204
    %4081 = vmatprep.subr.bf16.mxu0 %v1213
    %4082 = vmatpush1.bf16.msra.mxu0 %v1212
    %4083 = vmatprep.subr.bf16.mxu0 %v1221
    %4084 = vmatpush1.bf16.msra.mxu0 %v1220
    %4085 = vmatprep.subr.bf16.mxu0 0
    %4086 = vmatpush1.bf16.msra.mxu0 0
    %4087 = vmatprep.subr.bf16.mxu0 0
    %4088 = vmatpush1.bf16.msra.mxu0 0
    %4089 = vmatprep.subr.bf16.mxu0 0
    %4090 = vmatpush1.bf16.msra.mxu0 0
    %4091 = vmatprep.subr.bf16.mxu0 0
    %4092 = vmatpush1.bf16.msra.mxu0 0
    %4093 = vmatprep.subr.bf16.mxu0 0
    %4094 = vmatpush1.bf16.msra.mxu0 0
    %4095 = vmatprep.subr.bf16.mxu0 0
    %4096 = vmatpush1.bf16.msra.mxu0 0
    %4097 = vmatprep.subr.bf16.mxu0 0
    %4098 = vmatpush1.bf16.msra.mxu0 0
    %4099 = vmatprep.subr.bf16.mxu0 0
    %4100 = vmatpush1.bf16.msra.mxu0 0
    %4101 = vmatprep.mubr.bf16.mxu0 0
    %4102 = vmatmul.mubr.bf16.gmra.mrb[0].mxu0 %v4068
    %v4103 = vpop.f32.mrb[0].mxu0
    %v4104 = vadd.f32 0.0, %v4103
    %v4105 = vpop.f32.mrb[0].mxu0
    %v4106 = vadd.f32 0.0, %v4105
    %v4107 = vpop.f32.mrb[0].mxu0
    %v4108 = vpop.f32.mrb[0].mxu0
    %4109 = vdwg.mxu0
    %4110 = vmatprep.subr.bf16.mxu0 %v1167
    %4111 = vmatpush1.bf16.msra.mxu0 %v1166
    %4112 = vmatprep.subr.bf16.mxu0 %v1175
    %4113 = vmatpush1.bf16.msra.mxu0 %v1174
    %4114 = vmatprep.subr.bf16.mxu0 %v1183
    %4115 = vmatpush1.bf16.msra.mxu0 %v1182
    %4116 = vmatprep.subr.bf16.mxu0 %v1191
    %4117 = vmatpush1.bf16.msra.mxu0 %v1190
    %4118 = vmatprep.subr.bf16.mxu0 %v1199
    %4119 = vmatpush1.bf16.msra.mxu0 %v1198
    %4120 = vmatprep.subr.bf16.mxu0 %v1207
    %4121 = vmatpush1.bf16.msra.mxu0 %v1206
    %4122 = vmatprep.subr.bf16.mxu0 %v1215
    %4123 = vmatpush1.bf16.msra.mxu0 %v1214
    %4124 = vmatprep.subr.bf16.mxu0 %v1223
    %4125 = vmatpush1.bf16.msra.mxu0 %v1222
    %4126 = vmatprep.subr.bf16.mxu0 0
    %4127 = vmatpush1.bf16.msra.mxu0 0
    %4128 = vmatprep.subr.bf16.mxu0 0
    %4129 = vmatpush1.bf16.msra.mxu0 0
    %4130 = vmatprep.subr.bf16.mxu0 0
    %4131 = vmatpush1.bf16.msra.mxu0 0
    %4132 = vmatprep.subr.bf16.mxu0 0
    %4133 = vmatpush1.bf16.msra.mxu0 0
    %4134 = vmatprep.subr.bf16.mxu0 0
    %4135 = vmatpush1.bf16.msra.mxu0 0
    %4136 = vmatprep.subr.bf16.mxu0 0
    %4137 = vmatpush1.bf16.msra.mxu0 0
    %4138 = vmatprep.subr.bf16.mxu0 0
    %4139 = vmatpush1.bf16.msra.mxu0 0
    %4140 = vmatprep.subr.bf16.mxu0 0
    %4141 = vmatpush1.bf16.msra.mxu0 0
    %4142 = vmatprep.mubr.bf16.mxu0 0
    %4143 = vmatmul.mubr.bf16.gmra.mrb[0].mxu0 %v4068
    %v4144 = vpop.f32.mrb[0].mxu0
    %v4145 = vadd.f32 0.0, %v4144
    %v4146 = vpop.f32.mrb[0].mxu0
    %v4147 = vadd.f32 0.0, %v4146
    %v4148 = vpop.f32.mrb[0].mxu0
    %v4149 = vpop.f32.mrb[0].mxu0
    %4150 = vdwg.mxu0
    %4151 = vmatprep.subr.bf16.mxu0 %v1169
    %4152 = vmatpush1.bf16.msra.mxu0 %v1168
    %4153 = vmatprep.subr.bf16.mxu0 %v1177
    %4154 = vmatpush1.bf16.msra.mxu0 %v1176
    %4155 = vmatprep.subr.bf16.mxu0 %v1185
    %4156 = vmatpush1.bf16.msra.mxu0 %v1184
    %4157 = vmatprep.subr.bf16.mxu0 %v1193
    %4158 = vmatpush1.bf16.msra.mxu0 %v1192
    %4159 = vmatprep.subr.bf16.mxu0 %v1201
    %4160 = vmatpush1.bf16.msra.mxu0 %v1200
    %4161 = vmatprep.subr.bf16.mxu0 %v1209
    %4162 = vmatpush1.bf16.msra.mxu0 %v1208
    %4163 = vmatprep.subr.bf16.mxu0 %v1217
    %4164 = vmatpush1.bf16.msra.mxu0 %v1216
    %4165 = vmatprep.subr.bf16.mxu0 %v1225
    %4166 = vmatpush1.bf16.msra.mxu0 %v1224
    %4167 = vmatprep.subr.bf16.mxu0 0
    %4168 = vmatpush1.bf16.msra.mxu0 0
    %4169 = vmatprep.subr.bf16.mxu0 0
    %4170 = vmatpush1.bf16.msra.mxu0 0
    %4171 = vmatprep.subr.bf16.mxu0 0
    %4172 = vmatpush1.bf16.msra.mxu0 0
    %4173 = vmatprep.subr.bf16.mxu0 0
    %4174 = vmatpush1.bf16.msra.mxu0 0
    %4175 = vmatprep.subr.bf16.mxu0 0
    %4176 = vmatpush1.bf16.msra.mxu0 0
    %4177 = vmatprep.subr.bf16.mxu0 0
    %4178 = vmatpush1.bf16.msra.mxu0 0
    %4179 = vmatprep.subr.bf16.mxu0 0
    %4180 = vmatpush1.bf16.msra.mxu0 0
    %4181 = vmatprep.subr.bf16.mxu0 0
    %4182 = vmatpush1.bf16.msra.mxu0 0
    %4183 = vmatprep.mubr.bf16.mxu0 0
    %4184 = vmatmul.mubr.bf16.gmra.mrb[0].mxu0 %v4068
    %v4185 = vpop.f32.mrb[0].mxu0
    %v4186 = vadd.f32 0.0, %v4185
    %v4187 = vpop.f32.mrb[0].mxu0
    %v4188 = vadd.f32 0.0, %v4187
    %v4189 = vpop.f32.mrb[0].mxu0
    %v4190 = vpop.f32.mrb[0].mxu0
    %4191 = vdwg.mxu0
    %4192 = vmatprep.subr.bf16.mxu0 %v1171
    %4193 = vmatpush1.bf16.msra.mxu0 %v1170
    %4194 = vmatprep.subr.bf16.mxu0 %v1179
    %4195 = vmatpush1.bf16.msra.mxu0 %v1178
    %4196 = vmatprep.subr.bf16.mxu0 %v1187
    %4197 = vmatpush1.bf16.msra.mxu0 %v1186
    %4198 = vmatprep.subr.bf16.mxu0 %v1195
    %4199 = vmatpush1.bf16.msra.mxu0 %v1194
    %4200 = vmatprep.subr.bf16.mxu0 %v1203
    %4201 = vmatpush1.bf16.msra.mxu0 %v1202
    %4202 = vmatprep.subr.bf16.mxu0 %v1211
    %4203 = vmatpush1.bf16.msra.mxu0 %v1210
    %4204 = vmatprep.subr.bf16.mxu0 %v1219
    %4205 = vmatpush1.bf16.msra.mxu0 %v1218
    %4206 = vmatprep.subr.bf16.mxu0 %v1227
    %4207 = vmatpush1.bf16.msra.mxu0 %v1226
    %4208 = vmatprep.subr.bf16.mxu0 0
    %4209 = vmatpush1.bf16.msra.mxu0 0
    %4210 = vmatprep.subr.bf16.mxu0 0
    %4211 = vmatpush1.bf16.msra.mxu0 0
    %4212 = vmatprep.subr.bf16.mxu0 0
    %4213 = vmatpush1.bf16.msra.mxu0 0
    %4214 = vmatprep.subr.bf16.mxu0 0
    %4215 = vmatpush1.bf16.msra.mxu0 0
    %4216 = vmatprep.subr.bf16.mxu0 0
    %4217 = vmatpush1.bf16.msra.mxu0 0
    %4218 = vmatprep.subr.bf16.mxu0 0
    %4219 = vmatpush1.bf16.msra.mxu0 0
    %4220 = vmatprep.subr.bf16.mxu0 0
    %4221 = vmatpush1.bf16.msra.mxu0 0
    %4222 = vmatprep.subr.bf16.mxu0 0
    %4223 = vmatpush1.bf16.msra.mxu0 0
    %4224 = vmatprep.mubr.bf16.mxu0 0
    %4225 = vmatmul.mubr.bf16.gmra.mrb[0].mxu0 %v4068
    %v4226 = vpop.f32.mrb[0].mxu0
    %v4227 = vadd.f32 0.0, %v4226
    %v4228 = vpop.f32.mrb[0].mxu0
    %v4229 = vadd.f32 0.0, %v4228
    %v4230 = vpop.f32.mrb[0].mxu0
    %v4231 = vpop.f32.mrb[0].mxu0
    %4232 = vdwg.mxu0
    %s4233 = sld [smem:[#allocation3 + %s3840]]
    %v4234 = vstv %s4233
    %v4235 = vmul.f32 %v4234, %v3838
    %v4236 = vmul.f32 %v4234, %v3839
    %s4237 = sld [smem:[#allocation7 + %s3840]]
    %v4238 = vstv %s4237
    %v4239 = vmul.f32 %v4238, %v4104
    %v4240 = vmul.f32 %v4238, %v4106
    %v4241 = vmul.f32 %v4238, %v4145
    %v4242 = vmul.f32 %v4238, %v4147
    %v4243 = vmul.f32 %v4238, %v4186
    %v4244 = vmul.f32 %v4238, %v4188
    %v4245 = vmul.f32 %v4238, %v4227
    %v4246 = vmul.f32 %v4238, %v4229
    %v4255 = vcombine.low %v4239, %v4240
    %v4256 = vcombine.low %v4241, %v4242
    %v4258 = vunpack.c.l.s4 1983009808
    %v4259 = vunpack.c.0.s8 %v4258
    %v4260 = vlaneseq
    %v4261 = vshrl.u32 %v4260, 7
    %v4262 = vsub.s32 %v4259, %v4261
    %v4263 = vrot.slane %v4255, %v4262
    %v4265 = vunpack.c.l.s4 1983009808
    %v4266 = vunpack.c.0.s8 %v4265
    %v4267 = vlaneseq
    %v4268 = vshrl.u32 %v4267, 7
    %v4269 = vsub.s32 %v4266, %v4268
    %v4270 = vrot.slane %v4256, %v4269
    %v4271 = vcombine.low %v4263, %v4270
    %v4272 = vcombine.low %v4243, %v4244
    %v4273 = vcombine.low %v4245, %v4246
    %v4275 = vunpack.c.l.s4 1983009808
    %v4276 = vunpack.c.0.s8 %v4275
    %v4277 = vlaneseq
    %v4278 = vshrl.u32 %v4277, 7
    %v4279 = vsub.s32 %v4276, %v4278
    %v4280 = vrot.slane %v4272, %v4279
    %v4282 = vunpack.c.l.s4 1983009808
    %v4283 = vunpack.c.0.s8 %v4282
    %v4284 = vlaneseq
    %v4285 = vshrl.u32 %v4284, 7
    %v4286 = vsub.s32 %v4283, %v4285
    %v4287 = vrot.slane %v4273, %v4286
    %v4288 = vcombine.low %v4280, %v4287
    %v4291 = vsub.f32 %v4235, %v4271
    %v4292 = vsub.f32 %v4236, %v4288
    %s4293 = scalar_lea.vmem [#allocation19], 48
    %v4294 = vld [vmem:[%s4293] sm:$0xff]
    %v4295 = vunpack.c.l.bf16 %v4294
    %v4296 = vunpack.c.h.bf16 %v4294
    %s4297 = sld [smem:[#allocation9 + %s3840]]
    %v4298 = vstv %s4297
    %v4299 = vmul.f32 %v4298, %v4295
    %v4300 = vmul.f32 %v4298, %v4296
    %v4301 = vadd.f32 %v4291, %v4299
    %v4302 = vadd.f32 %v4292, %v4300
    %s4303 = sadd.s32 %s360, 7
    %v4306 = vcombine.high %v4301, %v4301
    %v4308 = vunpack.c.l.s4 1983009808
    %v4309 = vunpack.c.0.s8 %v4308
    %v4310 = vlaneseq
    %v4311 = vshrl.u32 %v4310, 7
    %v4312 = vsub.s32 %v4309, %v4311
    %v4313 = vrot.slane %v4301, %v4312
    %v4315 = vunpack.c.l.s4 1983009808
    %v4316 = vunpack.c.0.s8 %v4315
    %v4317 = vlaneseq
    %v4318 = vshrl.u32 %v4317, 7
    %v4319 = vsub.s32 %v4316, %v4318
    %v4320 = vrot.slane %v4306, %v4319
    %v4321 = vcombine.high %v4313, %v4313
    %v4322 = vcombine.high %v4320, %v4320
    %v4323 = vcombine.high %v4302, %v4302
    %v4325 = vunpack.c.l.s4 1983009808
    %v4326 = vunpack.c.0.s8 %v4325
    %v4327 = vlaneseq
    %v4328 = vshrl.u32 %v4327, 7
    %v4329 = vsub.s32 %v4326, %v4328
    %v4330 = vrot.slane %v4302, %v4329
    %v4332 = vunpack.c.l.s4 1983009808
    %v4333 = vunpack.c.0.s8 %v4332
    %v4334 = vlaneseq
    %v4335 = vshrl.u32 %v4334, 7
    %v4336 = vsub.s32 %v4333, %v4335
    %v4337 = vrot.slane %v4323, %v4336
    %v4338 = vcombine.high %v4330, %v4330
    %v4339 = vcombine.high %v4337, %v4337
    %v4348 = vpack.c.bf16 %v4313, %v4313
    %v4349 = vpack.c.bf16 %v4321, %v4321
    %v4350 = vpack.c.bf16 %v4320, %v4320
    %v4351 = vpack.c.bf16 %v4322, %v4322
    %v4352 = vpack.c.bf16 %v4330, %v4330
    %v4353 = vpack.c.bf16 %v4338, %v4338
    %v4354 = vpack.c.bf16 %v4337, %v4337
    %v4355 = vpack.c.bf16 %v4339, %v4339
    %s4356 = scalar_lea.vmem [#allocation17], 7
    %v4357 = vld [vmem:[%s4356] sm:$0x1]
    %v4359 = vlaneseq
    %v4360 = vshrl.u32 %v4359, 7
    %v4361 = vsub.s32 0, %v4360
    %v4362 = vrot.slane %v4357, %v4361
    %4364 = vmatprep.subr.bf16.mxu0 0
    %4365 = vmatpush1.bf16.msra.mxu0 %v676
    %4366 = vmatprep.subr.bf16.mxu0 0
    %4367 = vmatpush1.bf16.msra.mxu0 %v677
    %4368 = vmatprep.subr.bf16.mxu0 0
    %4369 = vmatpush1.bf16.msra.mxu0 %v678
    %4370 = vmatprep.subr.bf16.mxu0 0
    %4371 = vmatpush1.bf16.msra.mxu0 %v679
    %4372 = vmatprep.subr.bf16.mxu0 0
    %4373 = vmatpush1.bf16.msra.mxu0 %v680
    %4374 = vmatprep.subr.bf16.mxu0 0
    %4375 = vmatpush1.bf16.msra.mxu0 %v681
    %4376 = vmatprep.subr.bf16.mxu0 0
    %4377 = vmatpush1.bf16.msra.mxu0 %v682
    %4378 = vmatprep.subr.bf16.mxu0 0
    %4379 = vmatpush1.bf16.msra.mxu0 %v683
    %4380 = vmatprep.subr.bf16.mxu0 0
    %4381 = vmatpush1.bf16.msra.mxu0 %v684
    %4382 = vmatprep.subr.bf16.mxu0 0
    %4383 = vmatpush1.bf16.msra.mxu0 %v685
    %4384 = vmatprep.subr.bf16.mxu0 0
    %4385 = vmatpush1.bf16.msra.mxu0 %v686
    %4386 = vmatprep.subr.bf16.mxu0 0
    %4387 = vmatpush1.bf16.msra.mxu0 %v687
    %4388 = vmatprep.subr.bf16.mxu0 0
    %4389 = vmatpush1.bf16.msra.mxu0 %v688
    %4390 = vmatprep.subr.bf16.mxu0 0
    %4391 = vmatpush1.bf16.msra.mxu0 %v689
    %4392 = vmatprep.subr.bf16.mxu0 0
    %4393 = vmatpush1.bf16.msra.mxu0 %v690
    %4394 = vmatprep.subr.bf16.mxu0 0
    %4395 = vmatpush1.bf16.msra.mxu0 %v691
    %4396 = vmatprep.mubr.bf16.mxu0 %v4349
    %4397 = vmatmul.mubr.bf16.gmra.mrb[0].mxu0 %v4348
    %v4398 = vpop.f32.mrb[0].mxu0
    %v4399 = vadd.f32 %v4362, %v4398
    %v4400 = vpop.f32.mrb[0].mxu0
    %v4401 = vpop.f32.mrb[0].mxu0
    %v4402 = vpop.f32.mrb[0].mxu0
    %4403 = vdwg.mxu0
    %4404 = vmatprep.subr.bf16.mxu0 0
    %4405 = vmatpush1.bf16.msra.mxu0 %v692
    %4406 = vmatprep.subr.bf16.mxu0 0
    %4407 = vmatpush1.bf16.msra.mxu0 %v693
    %4408 = vmatprep.subr.bf16.mxu0 0
    %4409 = vmatpush1.bf16.msra.mxu0 %v694
    %4410 = vmatprep.subr.bf16.mxu0 0
    %4411 = vmatpush1.bf16.msra.mxu0 %v695
    %4412 = vmatprep.subr.bf16.mxu0 0
    %4413 = vmatpush1.bf16.msra.mxu0 %v696
    %4414 = vmatprep.subr.bf16.mxu0 0
    %4415 = vmatpush1.bf16.msra.mxu0 %v697
    %4416 = vmatprep.subr.bf16.mxu0 0
    %4417 = vmatpush1.bf16.msra.mxu0 %v698
    %4418 = vmatprep.subr.bf16.mxu0 0
    %4419 = vmatpush1.bf16.msra.mxu0 %v699
    %4420 = vmatprep.subr.bf16.mxu0 0
    %4421 = vmatpush1.bf16.msra.mxu0 %v700
    %4422 = vmatprep.subr.bf16.mxu0 0
    %4423 = vmatpush1.bf16.msra.mxu0 %v701
    %4424 = vmatprep.subr.bf16.mxu0 0
    %4425 = vmatpush1.bf16.msra.mxu0 %v702
    %4426 = vmatprep.subr.bf16.mxu0 0
    %4427 = vmatpush1.bf16.msra.mxu0 %v703
    %4428 = vmatprep.subr.bf16.mxu0 0
    %4429 = vmatpush1.bf16.msra.mxu0 %v704
    %4430 = vmatprep.subr.bf16.mxu0 0
    %4431 = vmatpush1.bf16.msra.mxu0 %v705
    %4432 = vmatprep.subr.bf16.mxu0 0
    %4433 = vmatpush1.bf16.msra.mxu0 %v706
    %4434 = vmatprep.subr.bf16.mxu0 0
    %4435 = vmatpush1.bf16.msra.mxu0 %v707
    %4436 = vmatprep.mubr.bf16.mxu0 %v4351
    %4437 = vmatmul.mubr.bf16.gmra.mrb[0].mxu0 %v4350
    %v4438 = vpop.f32.mrb[0].mxu0
    %v4439 = vadd.f32 %v4399, %v4438
    %v4440 = vpop.f32.mrb[0].mxu0
    %v4441 = vpop.f32.mrb[0].mxu0
    %v4442 = vpop.f32.mrb[0].mxu0
    %4443 = vdwg.mxu0
    %4444 = vmatprep.subr.bf16.mxu0 0
    %4445 = vmatpush1.bf16.msra.mxu0 %v708
    %4446 = vmatprep.subr.bf16.mxu0 0
    %4447 = vmatpush1.bf16.msra.mxu0 %v709
    %4448 = vmatprep.subr.bf16.mxu0 0
    %4449 = vmatpush1.bf16.msra.mxu0 %v710
    %4450 = vmatprep.subr.bf16.mxu0 0
    %4451 = vmatpush1.bf16.msra.mxu0 %v711
    %4452 = vmatprep.subr.bf16.mxu0 0
    %4453 = vmatpush1.bf16.msra.mxu0 %v712
    %4454 = vmatprep.subr.bf16.mxu0 0
    %4455 = vmatpush1.bf16.msra.mxu0 %v713
    %4456 = vmatprep.subr.bf16.mxu0 0
    %4457 = vmatpush1.bf16.msra.mxu0 %v714
    %4458 = vmatprep.subr.bf16.mxu0 0
    %4459 = vmatpush1.bf16.msra.mxu0 %v715
    %4460 = vmatprep.subr.bf16.mxu0 0
    %4461 = vmatpush1.bf16.msra.mxu0 %v716
    %4462 = vmatprep.subr.bf16.mxu0 0
    %4463 = vmatpush1.bf16.msra.mxu0 %v717
    %4464 = vmatprep.subr.bf16.mxu0 0
    %4465 = vmatpush1.bf16.msra.mxu0 %v718
    %4466 = vmatprep.subr.bf16.mxu0 0
    %4467 = vmatpush1.bf16.msra.mxu0 %v719
    %4468 = vmatprep.subr.bf16.mxu0 0
    %4469 = vmatpush1.bf16.msra.mxu0 %v720
    %4470 = vmatprep.subr.bf16.mxu0 0
    %4471 = vmatpush1.bf16.msra.mxu0 %v721
    %4472 = vmatprep.subr.bf16.mxu0 0
    %4473 = vmatpush1.bf16.msra.mxu0 %v722
    %4474 = vmatprep.subr.bf16.mxu0 0
    %4475 = vmatpush1.bf16.msra.mxu0 %v723
    %4476 = vmatprep.mubr.bf16.mxu0 %v4353
    %4477 = vmatmul.mubr.bf16.gmra.mrb[0].mxu0 %v4352
    %v4478 = vpop.f32.mrb[0].mxu0
    %v4479 = vadd.f32 %v4439, %v4478
    %v4480 = vpop.f32.mrb[0].mxu0
    %v4481 = vpop.f32.mrb[0].mxu0
    %v4482 = vpop.f32.mrb[0].mxu0
    %4483 = vdwg.mxu0
    %4484 = vmatprep.subr.bf16.mxu0 0
    %4485 = vmatpush1.bf16.msra.mxu0 %v724
    %4486 = vmatprep.subr.bf16.mxu0 0
    %4487 = vmatpush1.bf16.msra.mxu0 %v725
    %4488 = vmatprep.subr.bf16.mxu0 0
    %4489 = vmatpush1.bf16.msra.mxu0 %v726
    %4490 = vmatprep.subr.bf16.mxu0 0
    %4491 = vmatpush1.bf16.msra.mxu0 %v727
    %4492 = vmatprep.subr.bf16.mxu0 0
    %4493 = vmatpush1.bf16.msra.mxu0 %v728
    %4494 = vmatprep.subr.bf16.mxu0 0
    %4495 = vmatpush1.bf16.msra.mxu0 %v729
    %4496 = vmatprep.subr.bf16.mxu0 0
    %4497 = vmatpush1.bf16.msra.mxu0 %v730
    %4498 = vmatprep.subr.bf16.mxu0 0
    %4499 = vmatpush1.bf16.msra.mxu0 %v731
    %4500 = vmatprep.subr.bf16.mxu0 0
    %4501 = vmatpush1.bf16.msra.mxu0 %v732
    %4502 = vmatprep.subr.bf16.mxu0 0
    %4503 = vmatpush1.bf16.msra.mxu0 %v733
    %4504 = vmatprep.subr.bf16.mxu0 0
    %4505 = vmatpush1.bf16.msra.mxu0 %v734
    %4506 = vmatprep.subr.bf16.mxu0 0
    %4507 = vmatpush1.bf16.msra.mxu0 %v735
    %4508 = vmatprep.subr.bf16.mxu0 0
    %4509 = vmatpush1.bf16.msra.mxu0 %v736
    %4510 = vmatprep.subr.bf16.mxu0 0
    %4511 = vmatpush1.bf16.msra.mxu0 %v737
    %4512 = vmatprep.subr.bf16.mxu0 0
    %4513 = vmatpush1.bf16.msra.mxu0 %v738
    %4514 = vmatprep.subr.bf16.mxu0 0
    %4515 = vmatpush1.bf16.msra.mxu0 %v739
    %4516 = vmatprep.mubr.bf16.mxu0 %v4355
    %4517 = vmatmul.mubr.bf16.gmra.mrb[0].mxu0 %v4354
    %v4518 = vpop.f32.mrb[0].mxu0
    %v4519 = vadd.f32 %v4479, %v4518
    %v4520 = vpop.f32.mrb[0].mxu0
    %v4521 = vpop.f32.mrb[0].mxu0
    %v4522 = vpop.f32.mrb[0].mxu0
    %4523 = vdwg.mxu0
    %v4524 = vadd.f32 %v4519, %v356
    %v4525 = vtanh.pop %v4524
    %v4526 = vadd.f32 %v4519, %v357
    %v4527 = vtanh.pop %v4526
    %v4528 = vmul.f32 %v4525, 1.5
    %v4529 = vmul.f32 %v4527, 0.5
    %v4530 = vsub.f32 %v4528, %v4529
    %v4531 = vpack.c.bf16 %v4530, %v4530
    %4532 = vmatprep.subr.bf16.mxu0 %v1165
    %4533 = vmatpush1.bf16.msra.mxu0 %v1164
    %4534 = vmatprep.subr.bf16.mxu0 %v1173
    %4535 = vmatpush1.bf16.msra.mxu0 %v1172
    %4536 = vmatprep.subr.bf16.mxu0 %v1181
    %4537 = vmatpush1.bf16.msra.mxu0 %v1180
    %4538 = vmatprep.subr.bf16.mxu0 %v1189
    %4539 = vmatpush1.bf16.msra.mxu0 %v1188
    %4540 = vmatprep.subr.bf16.mxu0 %v1197
    %4541 = vmatpush1.bf16.msra.mxu0 %v1196
    %4542 = vmatprep.subr.bf16.mxu0 %v1205
    %4543 = vmatpush1.bf16.msra.mxu0 %v1204
    %4544 = vmatprep.subr.bf16.mxu0 %v1213
    %4545 = vmatpush1.bf16.msra.mxu0 %v1212
    %4546 = vmatprep.subr.bf16.mxu0 %v1221
    %4547 = vmatpush1.bf16.msra.mxu0 %v1220
    %4548 = vmatprep.subr.bf16.mxu0 0
    %4549 = vmatpush1.bf16.msra.mxu0 0
    %4550 = vmatprep.subr.bf16.mxu0 0
    %4551 = vmatpush1.bf16.msra.mxu0 0
    %4552 = vmatprep.subr.bf16.mxu0 0
    %4553 = vmatpush1.bf16.msra.mxu0 0
    %4554 = vmatprep.subr.bf16.mxu0 0
    %4555 = vmatpush1.bf16.msra.mxu0 0
    %4556 = vmatprep.subr.bf16.mxu0 0
    %4557 = vmatpush1.bf16.msra.mxu0 0
    %4558 = vmatprep.subr.bf16.mxu0 0
    %4559 = vmatpush1.bf16.msra.mxu0 0
    %4560 = vmatprep.subr.bf16.mxu0 0
    %4561 = vmatpush1.bf16.msra.mxu0 0
    %4562 = vmatprep.subr.bf16.mxu0 0
    %4563 = vmatpush1.bf16.msra.mxu0 0
    %4564 = vmatprep.mubr.bf16.mxu0 0
    %4565 = vmatmul.mubr.bf16.gmra.mrb[0].mxu0 %v4531
    %v4566 = vpop.f32.mrb[0].mxu0
    %v4567 = vadd.f32 0.0, %v4566
    %v4568 = vpop.f32.mrb[0].mxu0
    %v4569 = vadd.f32 0.0, %v4568
    %v4570 = vpop.f32.mrb[0].mxu0
    %v4571 = vpop.f32.mrb[0].mxu0
    %4572 = vdwg.mxu0
    %4573 = vmatprep.subr.bf16.mxu0 %v1167
    %4574 = vmatpush1.bf16.msra.mxu0 %v1166
    %4575 = vmatprep.subr.bf16.mxu0 %v1175
    %4576 = vmatpush1.bf16.msra.mxu0 %v1174
    %4577 = vmatprep.subr.bf16.mxu0 %v1183
    %4578 = vmatpush1.bf16.msra.mxu0 %v1182
    %4579 = vmatprep.subr.bf16.mxu0 %v1191
    %4580 = vmatpush1.bf16.msra.mxu0 %v1190
    %4581 = vmatprep.subr.bf16.mxu0 %v1199
    %4582 = vmatpush1.bf16.msra.mxu0 %v1198
    %4583 = vmatprep.subr.bf16.mxu0 %v1207
    %4584 = vmatpush1.bf16.msra.mxu0 %v1206
    %4585 = vmatprep.subr.bf16.mxu0 %v1215
    %4586 = vmatpush1.bf16.msra.mxu0 %v1214
    %4587 = vmatprep.subr.bf16.mxu0 %v1223
    %4588 = vmatpush1.bf16.msra.mxu0 %v1222
    %4589 = vmatprep.subr.bf16.mxu0 0
    %4590 = vmatpush1.bf16.msra.mxu0 0
    %4591 = vmatprep.subr.bf16.mxu0 0
    %4592 = vmatpush1.bf16.msra.mxu0 0
    %4593 = vmatprep.subr.bf16.mxu0 0
    %4594 = vmatpush1.bf16.msra.mxu0 0
    %4595 = vmatprep.subr.bf16.mxu0 0
    %4596 = vmatpush1.bf16.msra.mxu0 0
    %4597 = vmatprep.subr.bf16.mxu0 0
    %4598 = vmatpush1.bf16.msra.mxu0 0
    %4599 = vmatprep.subr.bf16.mxu0 0
    %4600 = vmatpush1.bf16.msra.mxu0 0
    %4601 = vmatprep.subr.bf16.mxu0 0
    %4602 = vmatpush1.bf16.msra.mxu0 0
    %4603 = vmatprep.subr.bf16.mxu0 0
    %4604 = vmatpush1.bf16.msra.mxu0 0
    %4605 = vmatprep.mubr.bf16.mxu0 0
    %4606 = vmatmul.mubr.bf16.gmra.mrb[0].mxu0 %v4531
    %v4607 = vpop.f32.mrb[0].mxu0
    %v4608 = vadd.f32 0.0, %v4607
    %v4609 = vpop.f32.mrb[0].mxu0
    %v4610 = vadd.f32 0.0, %v4609
    %v4611 = vpop.f32.mrb[0].mxu0
    %v4612 = vpop.f32.mrb[0].mxu0
    %4613 = vdwg.mxu0
    %4614 = vmatprep.subr.bf16.mxu0 %v1169
    %4615 = vmatpush1.bf16.msra.mxu0 %v1168
    %4616 = vmatprep.subr.bf16.mxu0 %v1177
    %4617 = vmatpush1.bf16.msra.mxu0 %v1176
    %4618 = vmatprep.subr.bf16.mxu0 %v1185
    %4619 = vmatpush1.bf16.msra.mxu0 %v1184
    %4620 = vmatprep.subr.bf16.mxu0 %v1193
    %4621 = vmatpush1.bf16.msra.mxu0 %v1192
    %4622 = vmatprep.subr.bf16.mxu0 %v1201
    %4623 = vmatpush1.bf16.msra.mxu0 %v1200
    %4624 = vmatprep.subr.bf16.mxu0 %v1209
    %4625 = vmatpush1.bf16.msra.mxu0 %v1208
    %4626 = vmatprep.subr.bf16.mxu0 %v1217
    %4627 = vmatpush1.bf16.msra.mxu0 %v1216
    %4628 = vmatprep.subr.bf16.mxu0 %v1225
    %4629 = vmatpush1.bf16.msra.mxu0 %v1224
    %4630 = vmatprep.subr.bf16.mxu0 0
    %4631 = vmatpush1.bf16.msra.mxu0 0
    %4632 = vmatprep.subr.bf16.mxu0 0
    %4633 = vmatpush1.bf16.msra.mxu0 0
    %4634 = vmatprep.subr.bf16.mxu0 0
    %4635 = vmatpush1.bf16.msra.mxu0 0
    %4636 = vmatprep.subr.bf16.mxu0 0
    %4637 = vmatpush1.bf16.msra.mxu0 0
    %4638 = vmatprep.subr.bf16.mxu0 0
    %4639 = vmatpush1.bf16.msra.mxu0 0
    %4640 = vmatprep.subr.bf16.mxu0 0
    %4641 = vmatpush1.bf16.msra.mxu0 0
    %4642 = vmatprep.subr.bf16.mxu0 0
    %4643 = vmatpush1.bf16.msra.mxu0 0
    %4644 = vmatprep.subr.bf16.mxu0 0
    %4645 = vmatpush1.bf16.msra.mxu0 0
    %4646 = vmatprep.mubr.bf16.mxu0 0
    %4647 = vmatmul.mubr.bf16.gmra.mrb[0].mxu0 %v4531
    %v4648 = vpop.f32.mrb[0].mxu0
    %v4649 = vadd.f32 0.0, %v4648
    %v4650 = vpop.f32.mrb[0].mxu0
    %v4651 = vadd.f32 0.0, %v4650
    %v4652 = vpop.f32.mrb[0].mxu0
    %v4653 = vpop.f32.mrb[0].mxu0
    %4654 = vdwg.mxu0
    %4655 = vmatprep.subr.bf16.mxu0 %v1171
    %4656 = vmatpush1.bf16.msra.mxu0 %v1170
    %4657 = vmatprep.subr.bf16.mxu0 %v1179
    %4658 = vmatpush1.bf16.msra.mxu0 %v1178
    %4659 = vmatprep.subr.bf16.mxu0 %v1187
    %4660 = vmatpush1.bf16.msra.mxu0 %v1186
    %4661 = vmatprep.subr.bf16.mxu0 %v1195
    %4662 = vmatpush1.bf16.msra.mxu0 %v1194
    %4663 = vmatprep.subr.bf16.mxu0 %v1203
    %4664 = vmatpush1.bf16.msra.mxu0 %v1202
    %4665 = vmatprep.subr.bf16.mxu0 %v1211
    %4666 = vmatpush1.bf16.msra.mxu0 %v1210
    %4667 = vmatprep.subr.bf16.mxu0 %v1219
    %4668 = vmatpush1.bf16.msra.mxu0 %v1218
    %4669 = vmatprep.subr.bf16.mxu0 %v1227
    %4670 = vmatpush1.bf16.msra.mxu0 %v1226
    %4671 = vmatprep.subr.bf16.mxu0 0
    %4672 = vmatpush1.bf16.msra.mxu0 0
    %4673 = vmatprep.subr.bf16.mxu0 0
    %4674 = vmatpush1.bf16.msra.mxu0 0
    %4675 = vmatprep.subr.bf16.mxu0 0
    %4676 = vmatpush1.bf16.msra.mxu0 0
    %4677 = vmatprep.subr.bf16.mxu0 0
    %4678 = vmatpush1.bf16.msra.mxu0 0
    %4679 = vmatprep.subr.bf16.mxu0 0
    %4680 = vmatpush1.bf16.msra.mxu0 0
    %4681 = vmatprep.subr.bf16.mxu0 0
    %4682 = vmatpush1.bf16.msra.mxu0 0
    %4683 = vmatprep.subr.bf16.mxu0 0
    %4684 = vmatpush1.bf16.msra.mxu0 0
    %4685 = vmatprep.subr.bf16.mxu0 0
    %4686 = vmatpush1.bf16.msra.mxu0 0
    %4687 = vmatprep.mubr.bf16.mxu0 0
    %4688 = vmatmul.mubr.bf16.gmra.mrb[0].mxu0 %v4531
    %v4689 = vpop.f32.mrb[0].mxu0
    %v4690 = vadd.f32 0.0, %v4689
    %v4691 = vpop.f32.mrb[0].mxu0
    %v4692 = vadd.f32 0.0, %v4691
    %v4693 = vpop.f32.mrb[0].mxu0
    %v4694 = vpop.f32.mrb[0].mxu0
    %4695 = vdwg.mxu0
    %s4696 = sld [smem:[#allocation3 + %s4303]]
    %v4697 = vstv %s4696
    %v4698 = vmul.f32 %v4697, %v4301
    %v4699 = vmul.f32 %v4697, %v4302
    %s4700 = sld [smem:[#allocation7 + %s4303]]
    %v4701 = vstv %s4700
    %v4702 = vmul.f32 %v4701, %v4567
    %v4703 = vmul.f32 %v4701, %v4569
    %v4704 = vmul.f32 %v4701, %v4608
    %v4705 = vmul.f32 %v4701, %v4610
    %v4706 = vmul.f32 %v4701, %v4649
    %v4707 = vmul.f32 %v4701, %v4651
    %v4708 = vmul.f32 %v4701, %v4690
    %v4709 = vmul.f32 %v4701, %v4692
    %v4718 = vcombine.low %v4702, %v4703
    %v4719 = vcombine.low %v4704, %v4705
    %v4721 = vunpack.c.l.s4 1983009808
    %v4722 = vunpack.c.0.s8 %v4721
    %v4723 = vlaneseq
    %v4724 = vshrl.u32 %v4723, 7
    %v4725 = vsub.s32 %v4722, %v4724
    %v4726 = vrot.slane %v4718, %v4725
    %v4728 = vunpack.c.l.s4 1983009808
    %v4729 = vunpack.c.0.s8 %v4728
    %v4730 = vlaneseq
    %v4731 = vshrl.u32 %v4730, 7
    %v4732 = vsub.s32 %v4729, %v4731
    %v4733 = vrot.slane %v4719, %v4732
    %v4734 = vcombine.low %v4726, %v4733
    %v4735 = vcombine.low %v4706, %v4707
    %v4736 = vcombine.low %v4708, %v4709
    %v4738 = vunpack.c.l.s4 1983009808
    %v4739 = vunpack.c.0.s8 %v4738
    %v4740 = vlaneseq
    %v4741 = vshrl.u32 %v4740, 7
    %v4742 = vsub.s32 %v4739, %v4741
    %v4743 = vrot.slane %v4735, %v4742
    %v4745 = vunpack.c.l.s4 1983009808
    %v4746 = vunpack.c.0.s8 %v4745
    %v4747 = vlaneseq
    %v4748 = vshrl.u32 %v4747, 7
    %v4749 = vsub.s32 %v4746, %v4748
    %v4750 = vrot.slane %v4736, %v4749
    %v4751 = vcombine.low %v4743, %v4750
    %v4754 = vsub.f32 %v4698, %v4734
    %v4755 = vsub.f32 %v4699, %v4751
    %s4756 = scalar_lea.vmem [#allocation19], 56
    %v4757 = vld [vmem:[%s4756] sm:$0xff]
    %v4758 = vunpack.c.l.bf16 %v4757
    %v4759 = vunpack.c.h.bf16 %v4757
    %s4760 = sld [smem:[#allocation9 + %s4303]]
    %v4761 = vstv %s4760
    %v4762 = vmul.f32 %v4761, %v4758
    %v4763 = vmul.f32 %v4761, %v4759
    %v4764 = vadd.f32 %v4754, %v4762
    %v4765 = vadd.f32 %v4755, %v4763
    %4766 = vst [vmem:[#allocation2] sm:$0xff] %v4764
    %4767 = vst [vmem:[#allocation2 + $0x8] sm:$0xff] %v4765
    // Predicated region
    $region86: #{sample.1} parent=1 // pred_check
      %p4768 = pneg %p156
    $region87: #{sample.1} parent=1 // pred_check_branch
      %4770 = sbr.rel (%p4768) target = $region89
    $region88: #{sample.1} parent=1 // pred_region
      %v4771 = vmax.f32 %v4764, -1.0
      %v4772 = vmax.f32 %v4765, -1.0
      %v4773 = vmin.f32 %v4771, 1.0
      %v4774 = vmin.f32 %v4772, 1.0
      %4775 = vst [vmem:[#allocation20] sm:$0xff] %v4773
      %4776 = vst [vmem:[#allocation20 + $0x8] sm:$0xff] %v4774
    $region89: #{sample.1} parent=1 // pred_fallthru
      _
    // Predicated region
    $region90: #{sample.1} parent=1 // pred_check
      _
    $region91: #{sample.1} parent=1 // pred_check_branch
      %4778 = sbr.rel (0) target = $region93
    $region92: #{sample.1} parent=1 // pred_region
      %s4780 = ssub.s32 256, 256
      %4781 = vsyncadd [#allocation5], %s4780
      %s4783 = sshll.u32 [#allocation20], 4
      %s4784 = int_to_ptr.vmem [resolvable:$true] %s4783
      %4786 = dma.vmem_to_hbm [thread:$0]  %s4784, 256, %s10, [#allocation5]
    $region93: #{sample.1} parent=1 // pred_fallthru
      _
    // Predicated region
    $region94: #{sample.1} parent=1 // pred_check
      _
    $region95: #{sample.1} parent=1 // pred_check_branch
      %4788 = sbr.rel (0) target = $region97
    $region96: #{sample.1} parent=1 // pred_region
      %4789 = dma.done [#allocation5], 256
    $region97: #{sample.1} parent=1 // pred_fallthru
      _
    %4790 = vsyncpa [#allocation4], 1
    %4791 = vsyncpa [#allocation12], 1
    %4792 = vsyncpa [#allocation15], 1
    %4793 = vsyncpa [#allocation18], 1
    %4794 = vsyncpa [#allocation5], 1
    %4795 = vsyncpa [#allocation6], 1
    %4796 = vsyncpa [#allocation8], 1

</llo_original>
